<compile_context>
chip_gen: v7x
topology: tpu7x:2x2x1
jax: 0.10.0
libtpu: 0.0.40
codegen_flags: <defaults>
</compile_context>

<pallas_src>
import functools

import jax
import jax.numpy as jnp
import numpy as np
from jax.experimental import pallas as pl
from jax.experimental.pallas import tpu as pltpu


def _ilog2(n):
    assert n > 0 and (n & (n - 1)) == 0, f"{n} must be a power of two"
    return n.bit_length() - 1


# ----------------------------------------------------------------------------
# In-kernel helpers (operate on values / VMEM scratch refs, channel-major)
# ----------------------------------------------------------------------------
def _upsample2x_matrix(h_in, w_in):
    """0/1 matrix UT (h_in*w_in, 4*h_in*w_in): UT[q, p] = 1 iff input pixel q is
    the nearest-neighbour source of output pixel p (2x upsample, row-major)."""
    p_in = h_in * w_in
    w_out = 2 * w_in
    p_out = 4 * p_in
    q_idx = jax.lax.broadcasted_iota(jnp.int32, (p_in, p_out), 0)
    p_idx = jax.lax.broadcasted_iota(jnp.int32, (p_in, p_out), 1)
    row_o = p_idx >> _ilog2(w_out)
    col_o = p_idx & (w_out - 1)
    src = ((row_o >> 1) << _ilog2(w_in)) | (col_o >> 1)
    return jnp.where(q_idx == src, 1.0, 0.0).astype(jnp.float32)


def _conv3x3_im2col(x, pad_ref, patch_ref, w_t, h, w):
    """3x3 stride-1 'SAME' conv in channel-major layout via one im2col matmul.

    x        : (Cin, h*w) value, pixel index p = row*w + col.
    pad_ref  : (Cin, h*w + 2*w + 2) VMEM scratch; border lanes are zero.
    patch_ref: (9*Cin, h*w) VMEM scratch holding the im2col matrix.
    w_t      : (Cout, 9*Cin) value, columns ordered ((dy+1)*3 + (dx+1))*Cin + ci.
    Returns (Cout, h*w) float32.
    """
    cin, p = x.shape
    base = w + 1
    pad_ref[:, base:base + p] = x  # interior; borders stay zero ('SAME' pad)

    # Column-validity masks (handle the intra-row wrap of the flat pixel index).
    lane = jax.lax.broadcasted_iota(jnp.int32, (1, p), 1)
    col = lane & (w - 1)
    m_left = jnp.where(col >= 1, 1.0, 0.0)        # tap dx = -1 invalid at col 0
    m_right = jnp.where(col <= w - 2, 1.0, 0.0)   # tap dx = +1 invalid at col w-1

    for t in range(9):
        dy, dx = t // 3 - 1, t % 3 - 1
        start = base + dy * w + dx
        tap = pad_ref[:, start:start + p]
        if dx == -1:
            tap = tap * m_left
        elif dx == 1:
            tap = tap * m_right
        patch_ref[t * cin:(t + 1) * cin, :] = tap   # sublane-aligned block store

    # Single MXU matmul: (Cout, 9*Cin) @ (9*Cin, h*w)  (lane-dense N = pixels).
    return jnp.dot(w_t, patch_ref[...], preferred_element_type=jnp.float32)


def _batchnorm_lrelu(acts, gamma, beta, alpha, eps=1e-5):
    """Training-mode BatchNorm2d (batch statistics) + optional LeakyReLU.
    acts: list of per-sample (C, P) activations (channel-major)."""
    n = sum(a.shape[1] for a in acts)  # python int: B * H * W
    total = acts[0].sum(axis=1, keepdims=True)
    for a in acts[1:]:
        total = total + a.sum(axis=1, keepdims=True)
    mean = total / n
    sq = ((acts[0] - mean) ** 2).sum(axis=1, keepdims=True)
    for a in acts[1:]:
        sq = sq + ((a - mean) ** 2).sum(axis=1, keepdims=True)
    scale = gamma * jax.lax.rsqrt(sq / n + eps)
    shift = beta - mean * scale
    outs = []
    for a in acts:
        y = a * scale + shift
        if alpha is not None:
            y = jnp.where(y >= 0, y, alpha * y)
        outs.append(y)
    return outs


# ----------------------------------------------------------------------------
# Fully fused generator kernel
# ----------------------------------------------------------------------------
def generator_kernel(z_ref, wl1_ref, bl1_ref, w1_ref, w2_ref, w3_ref, b3_ref,
                     g1_ref, be1_ref, g2_ref, be2_ref, g3_ref, be3_ref,
                     o_ref,
                     deint_ref, pad1_ref, pad2_ref, pad3_ref,
                     patch1_ref, patch2_ref, patch3_ref,
                     *, batch, ngf, init_size, img_size, nc):
    del nc  # implied by o_ref / w3 shapes
    c0 = 2 * ngf
    ss = init_size * init_size
    h1 = w1 = 2 * init_size
    h2 = w2 = img_size

    # Zero the conv padding buffers once; interiors are fully rewritten before
    # every use, border lanes stay zero and provide the 'SAME' padding.
    pad1_ref[...] = jnp.zeros_like(pad1_ref)
    pad2_ref[...] = jnp.zeros_like(pad2_ref)
    pad3_ref[...] = jnp.zeros_like(pad3_ref)

    wc1 = w1_ref[...]
    wc2 = w2_ref[...]
    wc3 = w3_ref[...]

    # ---- l1: (B, nz) @ (nz, 2*ngf*s*s) + bias ----------------------------
    flat = jnp.dot(z_ref[...], wl1_ref[...],
                   preferred_element_type=jnp.float32) + bl1_ref[...]

    # torch .view(B, 2*ngf, s, s): de-interleave each row into a channel-major
    # (C0, s*s) tile via a tiny VMEM scratch (avoids lane-splitting reshapes).
    acts = []
    for b in range(batch):
        for c in range(c0):
            deint_ref[c:c + 1, :] = flat[b:b + 1, c * ss:(c + 1) * ss]
        acts.append(deint_ref[...])

    # ---- BatchNorm2d(2*ngf), no activation -------------------------------
    acts = _batchnorm_lrelu(acts, g1_ref[...], be1_ref[...], alpha=None)

    # ---- Upsample x2 -> Conv3x3(2ngf->2ngf) -> BN -> LeakyReLU(0.2) -------
    up1 = _upsample2x_matrix(init_size, init_size)            # (s*s, h1*w1)
    acts = [jnp.dot(a, up1, preferred_element_type=jnp.float32) for a in acts]
    acts = [_conv3x3_im2col(a, pad1_ref, patch1_ref, wc1, h1, w1) for a in acts]
    acts = _batchnorm_lrelu(acts, g2_ref[...], be2_ref[...], alpha=0.2)

    # ---- Upsample x2 -> Conv3x3(2ngf->ngf) -> BN -> LeakyReLU(0.2) --------
    up2 = _upsample2x_matrix(h1, w1)                          # (h1*w1, h2*w2)
    acts = [jnp.dot(a, up2, preferred_element_type=jnp.float32) for a in acts]
    acts = [_conv3x3_im2col(a, pad2_ref, patch2_ref, wc2, h2, w2) for a in acts]
    acts = _batchnorm_lrelu(acts, g3_ref[...], be3_ref[...], alpha=0.2)

    # ---- Conv3x3(ngf->nc) + bias + Sigmoid, stored as NC(H*W) -------------
    for b in range(batch):
        y = _conv3x3_im2col(acts[b], pad3_ref, patch3_ref, wc3, h2, w2)
        y = jax.nn.sigmoid(y + b3_ref[...])
        o_ref[b, :, :] = y.astype(o_ref.dtype)    # lane-dense (nc, H*W) store


# ----------------------------------------------------------------------------
# Wrapper: weight layout prep + single pallas_call
# ----------------------------------------------------------------------------
def generator_forward(z, params, *, ngf, img_size, nc):
    init_size = img_size // 4
    assert init_size & (init_size - 1) == 0, "init_size must be a power of two"
    batch, _ = z.shape
    c0 = 2 * ngf
    ss = init_size * init_size
    p1 = (2 * init_size) ** 2
    p2 = img_size * img_size
    w_mid = 2 * init_size
    f32 = jnp.float32

    # Tiny one-off weight layout prep (parameters only, no activations).
    w_l1 = params["w_l1"].astype(f32)                          # (nz, c0*ss)
    b_l1 = params["b_l1"].reshape(1, c0 * ss).astype(f32)
    w1_t = params["w_c1"].reshape(9 * c0, c0).T.astype(f32)    # (c0, 9*c0)
    w2_t = params["w_c2"].reshape(9 * c0, ngf).T.astype(f32)   # (ngf, 9*c0)
    w3_t = params["w_c3"].reshape(9 * ngf, nc).T.astype(f32)   # (nc, 9*ngf)
    b3 = params["b_c3"].reshape(nc, 1).astype(f32)
    g1 = params["g1"].reshape(c0, 1).astype(f32)
    be1 = params["be1"].reshape(c0, 1).astype(f32)
    g2 = params["g2"].reshape(c0, 1).astype(f32)
    be2 = params["be2"].reshape(c0, 1).astype(f32)
    g3 = params["g3"].reshape(ngf, 1).astype(f32)
    be3 = params["be3"].reshape(ngf, 1).astype(f32)

    inputs = (z.astype(f32), w_l1, b_l1, w1_t, w2_t, w3_t, b3,
              g1, be1, g2, be2, g3, be3)

    kernel = functools.partial(
        generator_kernel, batch=batch, ngf=ngf,
        init_size=init_size, img_size=img_size, nc=nc)

    def _full(a):
        return pl.BlockSpec(a.shape, lambda i, n=a.ndim: (0,) * n)

    out = pl.pallas_call(
        kernel,
        grid=(1,),
        out_shape=jax.ShapeDtypeStruct((batch, nc, p2), f32),
        in_specs=[_full(a) for a in inputs],
        out_specs=pl.BlockSpec((batch, nc, p2), lambda i: (0, 0, 0)),
        scratch_shapes=[
            pltpu.VMEM((c0, ss), f32),                         # de-interleave
            pltpu.VMEM((c0, p1 + 2 * w_mid + 2), f32),         # conv1 pad buf
            pltpu.VMEM((c0, p2 + 2 * img_size + 2), f32),      # conv2 pad buf
            pltpu.VMEM((ngf, p2 + 2 * img_size + 2), f32),     # conv3 pad buf
            pltpu.VMEM((9 * c0, p1), f32),                     # conv1 patches
            pltpu.VMEM((9 * c0, p2), f32),                     # conv2 patches
            pltpu.VMEM((9 * ngf, p2), f32),                    # conv3 patches
        ],
        compiler_params=pltpu.CompilerParams(
            dimension_semantics=("arbitrary",)),
    )(*inputs)

    # (B, nc, H*W) -> (B, nc, H, W): free metadata reshape, output is NCHW.
    return out.reshape(batch, nc, img_size, img_size)


# ----------------------------------------------------------------------------
# Pure-JAX reference (for correctness check)
# ----------------------------------------------------------------------------
def _upsample2x_ref(x_nhwc):
    return jnp.repeat(jnp.repeat(x_nhwc, 2, axis=1), 2, axis=2)


def generator_reference(z, params, *, ngf, img_size, nc):
    init_size = img_size // 4
    B = z.shape[0]

    def bn(x, g, b):
        m = x.mean(axis=(0, 1, 2))
        v = ((x - m) ** 2).mean(axis=(0, 1, 2))
        return (x - m) / jnp.sqrt(v + 1e-5) * g + b

    def conv(x, w):
        return jax.lax.conv_general_dilated(
            x, w, (1, 1), "SAME", dimension_numbers=("NHWC", "HWIO", "NHWC"))

    def leaky(x):
        return jnp.where(x >= 0, x, 0.2 * x)

    x = z @ params["w_l1"] + params["b_l1"]
    x = x.reshape(B, 2 * ngf, init_size, init_size).transpose(0, 2, 3, 1)
    x = bn(x, params["g1"], params["be1"])
    x = _upsample2x_ref(x)
    x = conv(x, params["w_c1"])
    x = leaky(bn(x, params["g2"], params["be2"]))
    x = _upsample2x_ref(x)
    x = conv(x, params["w_c2"])
    x = leaky(bn(x, params["g3"], params["be3"]))
    x = jax.nn.sigmoid(conv(x, params["w_c3"]) + params["b_c3"])
    return x.transpose(0, 3, 1, 2)


# ----------------------------------------------------------------------------
if __name__ == "__main__":
    # Small shapes consistent with the module: nz=16, ngf=8, img_size=16, nc=3.
    B, nz, ngf, img_size, nc = 2, 16, 8, 16, 3
    init_size = img_size // 4
    D = 2 * ngf * init_size * init_size

    key = jax.random.PRNGKey(0)
    ks = jax.random.split(key, 8)
    params = {
        "w_l1": 0.05 * jax.random.normal(ks[0], (nz, D), jnp.float32),
        "b_l1": 0.05 * jax.random.normal(ks[1], (D,), jnp.float32),
        "w_c1": 0.05 * jax.random.normal(ks[2], (3, 3, 2 * ngf, 2 * ngf), jnp.float32),
        "w_c2": 0.05 * jax.random.normal(ks[3], (3, 3, 2 * ngf, ngf), jnp.float32),
        "w_c3": 0.05 * jax.random.normal(ks[4], (3, 3, ngf, nc), jnp.float32),
        "b_c3": 0.05 * jax.random.normal(ks[5], (nc,), jnp.float32),
        # BatchNorm affine params (fresh torch module: gamma=1, beta=0)
        "g1": jnp.ones((2 * ngf,), jnp.float32),
        "be1": jnp.zeros((2 * ngf,), jnp.float32),
        "g2": jnp.ones((2 * ngf,), jnp.float32),
        "be2": jnp.zeros((2 * ngf,), jnp.float32),
        "g3": jnp.ones((ngf,), jnp.float32),
        "be3": jnp.zeros((ngf,), jnp.float32),
    }

    z = jax.random.normal(ks[6], (B, nz), jnp.float32)

    img = generator_forward(z, params, ngf=ngf, img_size=img_size, nc=nc)
    img = jax.block_until_ready(img)

    ref = generator_reference(z, params, ngf=ngf, img_size=img_size, nc=nc)
    ref = jax.block_until_ready(ref)

    assert img.shape == (B, nc, img_size, img_size), img.shape
    np.testing.assert_allclose(np.asarray(img), np.asarray(ref),
                               rtol=1e-4, atol=1e-4)

    print("KERNEL_OK")
</pallas_src>

<mosaic_0001>
module attributes {stable_mosaic.version = 11 : i64} {
  func.func @generator_kernel(%arg0: i32, %arg1: memref<2x16xf32, #tpu.memory_space<vmem>>, %arg2: memref<16x256xf32, #tpu.memory_space<vmem>>, %arg3: memref<1x256xf32, #tpu.memory_space<vmem>>, %arg4: memref<16x144xf32, #tpu.memory_space<vmem>>, %arg5: memref<8x144xf32, #tpu.memory_space<vmem>>, %arg6: memref<3x72xf32, #tpu.memory_space<vmem>>, %arg7: memref<3x1xf32, #tpu.memory_space<vmem>>, %arg8: memref<16x1xf32, #tpu.memory_space<vmem>>, %arg9: memref<16x1xf32, #tpu.memory_space<vmem>>, %arg10: memref<16x1xf32, #tpu.memory_space<vmem>>, %arg11: memref<16x1xf32, #tpu.memory_space<vmem>>, %arg12: memref<8x1xf32, #tpu.memory_space<vmem>>, %arg13: memref<8x1xf32, #tpu.memory_space<vmem>>, %arg14: memref<2x3x256xf32, #tpu.memory_space<vmem>>, %arg15: memref<16x16xf32, #tpu.memory_space<vmem>>, %arg16: memref<16x82xf32, #tpu.memory_space<vmem>>, %arg17: memref<16x290xf32, #tpu.memory_space<vmem>>, %arg18: memref<8x290xf32, #tpu.memory_space<vmem>>, %arg19: memref<144x64xf32, #tpu.memory_space<vmem>>, %arg20: memref<144x256xf32, #tpu.memory_space<vmem>>, %arg21: memref<72x256xf32, #tpu.memory_space<vmem>>) attributes {dimension_semantics = [#tpu.dimension_semantics<arbitrary>], iteration_bounds = array<i64: 1>, scalar_prefetch = 0 : i64, scratch_operands = 7 : i64, tpu.core_type = #tpu.core_type<tc>, window_params = [{pipeline_mode = #tpu.pipeline_mode<synchronous>, transform_indices = @transform_0, window_bounds = array<i64: 2, 16>}, {pipeline_mode = #tpu.pipeline_mode<synchronous>, transform_indices = @transform_1, window_bounds = array<i64: 16, 256>}, {pipeline_mode = #tpu.pipeline_mode<synchronous>, transform_indices = @transform_2, window_bounds = array<i64: 1, 256>}, {pipeline_mode = #tpu.pipeline_mode<synchronous>, transform_indices = @transform_3, window_bounds = array<i64: 16, 144>}, {pipeline_mode = #tpu.pipeline_mode<synchronous>, transform_indices = @transform_4, window_bounds = array<i64: 8, 144>}, {pipeline_mode = #tpu.pipeline_mode<synchronous>, transform_indices = @transform_5, window_bounds = array<i64: 3, 72>}, {pipeline_mode = #tpu.pipeline_mode<synchronous>, transform_indices = @transform_6, window_bounds = array<i64: 3, 1>}, {pipeline_mode = #tpu.pipeline_mode<synchronous>, transform_indices = @transform_7, window_bounds = array<i64: 16, 1>}, {pipeline_mode = #tpu.pipeline_mode<synchronous>, transform_indices = @transform_8, window_bounds = array<i64: 16, 1>}, {pipeline_mode = #tpu.pipeline_mode<synchronous>, transform_indices = @transform_9, window_bounds = array<i64: 16, 1>}, {pipeline_mode = #tpu.pipeline_mode<synchronous>, transform_indices = @transform_10, window_bounds = array<i64: 16, 1>}, {pipeline_mode = #tpu.pipeline_mode<synchronous>, transform_indices = @transform_11, window_bounds = array<i64: 8, 1>}, {pipeline_mode = #tpu.pipeline_mode<synchronous>, transform_indices = @transform_12, window_bounds = array<i64: 8, 1>}, {pipeline_mode = #tpu.pipeline_mode<synchronous>, transform_indices = @transform_13, window_bounds = array<i64: 2, 3, 256>}]} {
    %cst = arith.constant 0.000000e+00 : f32
    %0 = vector.broadcast %cst : f32 to vector<16x82xf32>
    %c0 = arith.constant 0 : index
    %c0_0 = arith.constant 0 : index
    %1 = vector.load %arg16[%c0, %c0_0] : memref<16x82xf32, #tpu.memory_space<vmem>>, vector<16x82xf32>
    tpu.vector_store %arg16[%c0, %c0_0], %0 {strides = array<i32>} : memref<16x82xf32, #tpu.memory_space<vmem>>, vector<16x82xf32>,
    %cst_1 = arith.constant 0.000000e+00 : f32
    %2 = vector.broadcast %cst_1 : f32 to vector<16x290xf32>
    %c0_2 = arith.constant 0 : index
    %c0_3 = arith.constant 0 : index
    %3 = vector.load %arg17[%c0_2, %c0_3] : memref<16x290xf32, #tpu.memory_space<vmem>>, vector<16x290xf32>
    tpu.vector_store %arg17[%c0_2, %c0_3], %2 {strides = array<i32>} : memref<16x290xf32, #tpu.memory_space<vmem>>, vector<16x290xf32>,
    %cst_4 = arith.constant 0.000000e+00 : f32
    %4 = vector.broadcast %cst_4 : f32 to vector<8x290xf32>
    %c0_5 = arith.constant 0 : index
    %c0_6 = arith.constant 0 : index
    %5 = vector.load %arg18[%c0_5, %c0_6] : memref<8x290xf32, #tpu.memory_space<vmem>>, vector<8x290xf32>
    tpu.vector_store %arg18[%c0_5, %c0_6], %4 {strides = array<i32>} : memref<8x290xf32, #tpu.memory_space<vmem>>, vector<8x290xf32>,
    %c0_7 = arith.constant 0 : index
    %c0_8 = arith.constant 0 : index
    %6 = vector.load %arg4[%c0_7, %c0_8] : memref<16x144xf32, #tpu.memory_space<vmem>>, vector<16x144xf32>
    %c0_9 = arith.constant 0 : index
    %c0_10 = arith.constant 0 : index
    %7 = vector.load %arg5[%c0_9, %c0_10] : memref<8x144xf32, #tpu.memory_space<vmem>>, vector<8x144xf32>
    %c0_11 = arith.constant 0 : index
    %c0_12 = arith.constant 0 : index
    %8 = vector.load %arg6[%c0_11, %c0_12] : memref<3x72xf32, #tpu.memory_space<vmem>>, vector<3x72xf32>
    %c0_13 = arith.constant 0 : index
    %c0_14 = arith.constant 0 : index
    %9 = vector.load %arg1[%c0_13, %c0_14] : memref<2x16xf32, #tpu.memory_space<vmem>>, vector<2x16xf32>
    %c0_15 = arith.constant 0 : index
    %c0_16 = arith.constant 0 : index
    %10 = vector.load %arg2[%c0_15, %c0_16] : memref<16x256xf32, #tpu.memory_space<vmem>>, vector<16x256xf32>
    %cst_17 = arith.constant dense<0.000000e+00> : vector<2x256xf32>
    %11 = tpu.matmul %9, %10, %cst_17 {dimension_numbers = #tpu.dot_dimension_numbers<[1], [0], [0], [1], [0, 0, 1, 1], [], []>} : vector<2x16xf32>, vector<16x256xf32>, vector<2x256xf32> -> vector<2x256xf32>
    %c0_18 = arith.constant 0 : index
    %c0_19 = arith.constant 0 : index
    %12 = vector.load %arg3[%c0_18, %c0_19] : memref<1x256xf32, #tpu.memory_space<vmem>>, vector<1x256xf32>
    %13 = vector.broadcast %12 : vector<1x256xf32> to vector<2x256xf32>
    %14 = arith.addf %11, %13 : vector<2x256xf32>
    %15 = vector.extract_strided_slice %14 {offsets = [0, 0], sizes = [1, 16], strides = [1, 1]} : vector<2x256xf32> to vector<1x16xf32>
    %c0_20 = arith.constant 0 : index
    %c0_21 = arith.constant 0 : index
    %16 = vector.load %arg15[%c0_20, %c0_21] : memref<16x16xf32, #tpu.memory_space<vmem>>, vector<1x16xf32>
    tpu.vector_store %arg15[%c0_20, %c0_21], %15 {strides = array<i32>} : memref<16x16xf32, #tpu.memory_space<vmem>>, vector<1x16xf32>,
    %17 = vector.extract_strided_slice %14 {offsets = [0, 16], sizes = [1, 16], strides = [1, 1]} : vector<2x256xf32> to vector<1x16xf32>
    %c1 = arith.constant 1 : index
    %c0_22 = arith.constant 0 : index
    %18 = vector.load %arg15[%c1, %c0_22] : memref<16x16xf32, #tpu.memory_space<vmem>>, vector<1x16xf32>
    tpu.vector_store %arg15[%c1, %c0_22], %17 {strides = array<i32>} : memref<16x16xf32, #tpu.memory_space<vmem>>, vector<1x16xf32>,
    %19 = vector.extract_strided_slice %14 {offsets = [0, 32], sizes = [1, 16], strides = [1, 1]} : vector<2x256xf32> to vector<1x16xf32>
    %c2 = arith.constant 2 : index
    %c0_23 = arith.constant 0 : index
    %20 = vector.load %arg15[%c2, %c0_23] : memref<16x16xf32, #tpu.memory_space<vmem>>, vector<1x16xf32>
    tpu.vector_store %arg15[%c2, %c0_23], %19 {strides = array<i32>} : memref<16x16xf32, #tpu.memory_space<vmem>>, vector<1x16xf32>,
    %21 = vector.extract_strided_slice %14 {offsets = [0, 48], sizes = [1, 16], strides = [1, 1]} : vector<2x256xf32> to vector<1x16xf32>
    %c3 = arith.constant 3 : index
    %c0_24 = arith.constant 0 : index
    %22 = vector.load %arg15[%c3, %c0_24] : memref<16x16xf32, #tpu.memory_space<vmem>>, vector<1x16xf32>
    tpu.vector_store %arg15[%c3, %c0_24], %21 {strides = array<i32>} : memref<16x16xf32, #tpu.memory_space<vmem>>, vector<1x16xf32>,
    %23 = vector.extract_strided_slice %14 {offsets = [0, 64], sizes = [1, 16], strides = [1, 1]} : vector<2x256xf32> to vector<1x16xf32>
    %c4 = arith.constant 4 : index
    %c0_25 = arith.constant 0 : index
    %24 = vector.load %arg15[%c4, %c0_25] : memref<16x16xf32, #tpu.memory_space<vmem>>, vector<1x16xf32>
    tpu.vector_store %arg15[%c4, %c0_25], %23 {strides = array<i32>} : memref<16x16xf32, #tpu.memory_space<vmem>>, vector<1x16xf32>,
    %25 = vector.extract_strided_slice %14 {offsets = [0, 80], sizes = [1, 16], strides = [1, 1]} : vector<2x256xf32> to vector<1x16xf32>
    %c5 = arith.constant 5 : index
    %c0_26 = arith.constant 0 : index
    %26 = vector.load %arg15[%c5, %c0_26] : memref<16x16xf32, #tpu.memory_space<vmem>>, vector<1x16xf32>
    tpu.vector_store %arg15[%c5, %c0_26], %25 {strides = array<i32>} : memref<16x16xf32, #tpu.memory_space<vmem>>, vector<1x16xf32>,
    %27 = vector.extract_strided_slice %14 {offsets = [0, 96], sizes = [1, 16], strides = [1, 1]} : vector<2x256xf32> to vector<1x16xf32>
    %c6 = arith.constant 6 : index
    %c0_27 = arith.constant 0 : index
    %28 = vector.load %arg15[%c6, %c0_27] : memref<16x16xf32, #tpu.memory_space<vmem>>, vector<1x16xf32>
    tpu.vector_store %arg15[%c6, %c0_27], %27 {strides = array<i32>} : memref<16x16xf32, #tpu.memory_space<vmem>>, vector<1x16xf32>,
    %29 = vector.extract_strided_slice %14 {offsets = [0, 112], sizes = [1, 16], strides = [1, 1]} : vector<2x256xf32> to vector<1x16xf32>
    %c7 = arith.constant 7 : index
    %c0_28 = arith.constant 0 : index
    %30 = vector.load %arg15[%c7, %c0_28] : memref<16x16xf32, #tpu.memory_space<vmem>>, vector<1x16xf32>
    tpu.vector_store %arg15[%c7, %c0_28], %29 {strides = array<i32>} : memref<16x16xf32, #tpu.memory_space<vmem>>, vector<1x16xf32>,
    %31 = vector.extract_strided_slice %14 {offsets = [0, 128], sizes = [1, 16], strides = [1, 1]} : vector<2x256xf32> to vector<1x16xf32>
    %c8 = arith.constant 8 : index
    %c0_29 = arith.constant 0 : index
    %32 = vector.load %arg15[%c8, %c0_29] : memref<16x16xf32, #tpu.memory_space<vmem>>, vector<1x16xf32>
    tpu.vector_store %arg15[%c8, %c0_29], %31 {strides = array<i32>} : memref<16x16xf32, #tpu.memory_space<vmem>>, vector<1x16xf32>,
    %33 = vector.extract_strided_slice %14 {offsets = [0, 144], sizes = [1, 16], strides = [1, 1]} : vector<2x256xf32> to vector<1x16xf32>
    %c9 = arith.constant 9 : index
    %c0_30 = arith.constant 0 : index
    %34 = vector.load %arg15[%c9, %c0_30] : memref<16x16xf32, #tpu.memory_space<vmem>>, vector<1x16xf32>
    tpu.vector_store %arg15[%c9, %c0_30], %33 {strides = array<i32>} : memref<16x16xf32, #tpu.memory_space<vmem>>, vector<1x16xf32>,
    %35 = vector.extract_strided_slice %14 {offsets = [0, 160], sizes = [1, 16], strides = [1, 1]} : vector<2x256xf32> to vector<1x16xf32>
    %c10 = arith.constant 10 : index
    %c0_31 = arith.constant 0 : index
    %36 = vector.load %arg15[%c10, %c0_31] : memref<16x16xf32, #tpu.memory_space<vmem>>, vector<1x16xf32>
    tpu.vector_store %arg15[%c10, %c0_31], %35 {strides = array<i32>} : memref<16x16xf32, #tpu.memory_space<vmem>>, vector<1x16xf32>,
    %37 = vector.extract_strided_slice %14 {offsets = [0, 176], sizes = [1, 16], strides = [1, 1]} : vector<2x256xf32> to vector<1x16xf32>
    %c11 = arith.constant 11 : index
    %c0_32 = arith.constant 0 : index
    %38 = vector.load %arg15[%c11, %c0_32] : memref<16x16xf32, #tpu.memory_space<vmem>>, vector<1x16xf32>
    tpu.vector_store %arg15[%c11, %c0_32], %37 {strides = array<i32>} : memref<16x16xf32, #tpu.memory_space<vmem>>, vector<1x16xf32>,
    %39 = vector.extract_strided_slice %14 {offsets = [0, 192], sizes = [1, 16], strides = [1, 1]} : vector<2x256xf32> to vector<1x16xf32>
    %c12 = arith.constant 12 : index
    %c0_33 = arith.constant 0 : index
    %40 = vector.load %arg15[%c12, %c0_33] : memref<16x16xf32, #tpu.memory_space<vmem>>, vector<1x16xf32>
    tpu.vector_store %arg15[%c12, %c0_33], %39 {strides = array<i32>} : memref<16x16xf32, #tpu.memory_space<vmem>>, vector<1x16xf32>,
    %41 = vector.extract_strided_slice %14 {offsets = [0, 208], sizes = [1, 16], strides = [1, 1]} : vector<2x256xf32> to vector<1x16xf32>
    %c13 = arith.constant 13 : index
    %c0_34 = arith.constant 0 : index
    %42 = vector.load %arg15[%c13, %c0_34] : memref<16x16xf32, #tpu.memory_space<vmem>>, vector<1x16xf32>
    tpu.vector_store %arg15[%c13, %c0_34], %41 {strides = array<i32>} : memref<16x16xf32, #tpu.memory_space<vmem>>, vector<1x16xf32>,
    %43 = vector.extract_strided_slice %14 {offsets = [0, 224], sizes = [1, 16], strides = [1, 1]} : vector<2x256xf32> to vector<1x16xf32>
    %c14 = arith.constant 14 : index
    %c0_35 = arith.constant 0 : index
    %44 = vector.load %arg15[%c14, %c0_35] : memref<16x16xf32, #tpu.memory_space<vmem>>, vector<1x16xf32>
    tpu.vector_store %arg15[%c14, %c0_35], %43 {strides = array<i32>} : memref<16x16xf32, #tpu.memory_space<vmem>>, vector<1x16xf32>,
    %45 = vector.extract_strided_slice %14 {offsets = [0, 240], sizes = [1, 16], strides = [1, 1]} : vector<2x256xf32> to vector<1x16xf32>
    %c15 = arith.constant 15 : index
    %c0_36 = arith.constant 0 : index
    %46 = vector.load %arg15[%c15, %c0_36] : memref<16x16xf32, #tpu.memory_space<vmem>>, vector<1x16xf32>
    tpu.vector_store %arg15[%c15, %c0_36], %45 {strides = array<i32>} : memref<16x16xf32, #tpu.memory_space<vmem>>, vector<1x16xf32>,
    %c0_37 = arith.constant 0 : index
    %c0_38 = arith.constant 0 : index
    %47 = vector.load %arg15[%c0_37, %c0_38] : memref<16x16xf32, #tpu.memory_space<vmem>>, vector<16x16xf32>
    %48 = vector.extract_strided_slice %14 {offsets = [1, 0], sizes = [1, 16], strides = [1, 1]} : vector<2x256xf32> to vector<1x16xf32>
    %c0_39 = arith.constant 0 : index
    %c0_40 = arith.constant 0 : index
    %49 = vector.load %arg15[%c0_39, %c0_40] : memref<16x16xf32, #tpu.memory_space<vmem>>, vector<1x16xf32>
    tpu.vector_store %arg15[%c0_39, %c0_40], %48 {strides = array<i32>} : memref<16x16xf32, #tpu.memory_space<vmem>>, vector<1x16xf32>,
    %50 = vector.extract_strided_slice %14 {offsets = [1, 16], sizes = [1, 16], strides = [1, 1]} : vector<2x256xf32> to vector<1x16xf32>
    %c1_41 = arith.constant 1 : index
    %c0_42 = arith.constant 0 : index
    %51 = vector.load %arg15[%c1_41, %c0_42] : memref<16x16xf32, #tpu.memory_space<vmem>>, vector<1x16xf32>
    tpu.vector_store %arg15[%c1_41, %c0_42], %50 {strides = array<i32>} : memref<16x16xf32, #tpu.memory_space<vmem>>, vector<1x16xf32>,
    %52 = vector.extract_strided_slice %14 {offsets = [1, 32], sizes = [1, 16], strides = [1, 1]} : vector<2x256xf32> to vector<1x16xf32>
    %c2_43 = arith.constant 2 : index
    %c0_44 = arith.constant 0 : index
    %53 = vector.load %arg15[%c2_43, %c0_44] : memref<16x16xf32, #tpu.memory_space<vmem>>, vector<1x16xf32>
    tpu.vector_store %arg15[%c2_43, %c0_44], %52 {strides = array<i32>} : memref<16x16xf32, #tpu.memory_space<vmem>>, vector<1x16xf32>,
    %54 = vector.extract_strided_slice %14 {offsets = [1, 48], sizes = [1, 16], strides = [1, 1]} : vector<2x256xf32> to vector<1x16xf32>
    %c3_45 = arith.constant 3 : index
    %c0_46 = arith.constant 0 : index
    %55 = vector.load %arg15[%c3_45, %c0_46] : memref<16x16xf32, #tpu.memory_space<vmem>>, vector<1x16xf32>
    tpu.vector_store %arg15[%c3_45, %c0_46], %54 {strides = array<i32>} : memref<16x16xf32, #tpu.memory_space<vmem>>, vector<1x16xf32>,
    %56 = vector.extract_strided_slice %14 {offsets = [1, 64], sizes = [1, 16], strides = [1, 1]} : vector<2x256xf32> to vector<1x16xf32>
    %c4_47 = arith.constant 4 : index
    %c0_48 = arith.constant 0 : index
    %57 = vector.load %arg15[%c4_47, %c0_48] : memref<16x16xf32, #tpu.memory_space<vmem>>, vector<1x16xf32>
    tpu.vector_store %arg15[%c4_47, %c0_48], %56 {strides = array<i32>} : memref<16x16xf32, #tpu.memory_space<vmem>>, vector<1x16xf32>,
    %58 = vector.extract_strided_slice %14 {offsets = [1, 80], sizes = [1, 16], strides = [1, 1]} : vector<2x256xf32> to vector<1x16xf32>
    %c5_49 = arith.constant 5 : index
    %c0_50 = arith.constant 0 : index
    %59 = vector.load %arg15[%c5_49, %c0_50] : memref<16x16xf32, #tpu.memory_space<vmem>>, vector<1x16xf32>
    tpu.vector_store %arg15[%c5_49, %c0_50], %58 {strides = array<i32>} : memref<16x16xf32, #tpu.memory_space<vmem>>, vector<1x16xf32>,
    %60 = vector.extract_strided_slice %14 {offsets = [1, 96], sizes = [1, 16], strides = [1, 1]} : vector<2x256xf32> to vector<1x16xf32>
    %c6_51 = arith.constant 6 : index
    %c0_52 = arith.constant 0 : index
    %61 = vector.load %arg15[%c6_51, %c0_52] : memref<16x16xf32, #tpu.memory_space<vmem>>, vector<1x16xf32>
    tpu.vector_store %arg15[%c6_51, %c0_52], %60 {strides = array<i32>} : memref<16x16xf32, #tpu.memory_space<vmem>>, vector<1x16xf32>,
    %62 = vector.extract_strided_slice %14 {offsets = [1, 112], sizes = [1, 16], strides = [1, 1]} : vector<2x256xf32> to vector<1x16xf32>
    %c7_53 = arith.constant 7 : index
    %c0_54 = arith.constant 0 : index
    %63 = vector.load %arg15[%c7_53, %c0_54] : memref<16x16xf32, #tpu.memory_space<vmem>>, vector<1x16xf32>
    tpu.vector_store %arg15[%c7_53, %c0_54], %62 {strides = array<i32>} : memref<16x16xf32, #tpu.memory_space<vmem>>, vector<1x16xf32>,
    %64 = vector.extract_strided_slice %14 {offsets = [1, 128], sizes = [1, 16], strides = [1, 1]} : vector<2x256xf32> to vector<1x16xf32>
    %c8_55 = arith.constant 8 : index
    %c0_56 = arith.constant 0 : index
    %65 = vector.load %arg15[%c8_55, %c0_56] : memref<16x16xf32, #tpu.memory_space<vmem>>, vector<1x16xf32>
    tpu.vector_store %arg15[%c8_55, %c0_56], %64 {strides = array<i32>} : memref<16x16xf32, #tpu.memory_space<vmem>>, vector<1x16xf32>,
    %66 = vector.extract_strided_slice %14 {offsets = [1, 144], sizes = [1, 16], strides = [1, 1]} : vector<2x256xf32> to vector<1x16xf32>
    %c9_57 = arith.constant 9 : index
    %c0_58 = arith.constant 0 : index
    %67 = vector.load %arg15[%c9_57, %c0_58] : memref<16x16xf32, #tpu.memory_space<vmem>>, vector<1x16xf32>
    tpu.vector_store %arg15[%c9_57, %c0_58], %66 {strides = array<i32>} : memref<16x16xf32, #tpu.memory_space<vmem>>, vector<1x16xf32>,
    %68 = vector.extract_strided_slice %14 {offsets = [1, 160], sizes = [1, 16], strides = [1, 1]} : vector<2x256xf32> to vector<1x16xf32>
    %c10_59 = arith.constant 10 : index
    %c0_60 = arith.constant 0 : index
    %69 = vector.load %arg15[%c10_59, %c0_60] : memref<16x16xf32, #tpu.memory_space<vmem>>, vector<1x16xf32>
    tpu.vector_store %arg15[%c10_59, %c0_60], %68 {strides = array<i32>} : memref<16x16xf32, #tpu.memory_space<vmem>>, vector<1x16xf32>,
    %70 = vector.extract_strided_slice %14 {offsets = [1, 176], sizes = [1, 16], strides = [1, 1]} : vector<2x256xf32> to vector<1x16xf32>
    %c11_61 = arith.constant 11 : index
    %c0_62 = arith.constant 0 : index
    %71 = vector.load %arg15[%c11_61, %c0_62] : memref<16x16xf32, #tpu.memory_space<vmem>>, vector<1x16xf32>
    tpu.vector_store %arg15[%c11_61, %c0_62], %70 {strides = array<i32>} : memref<16x16xf32, #tpu.memory_space<vmem>>, vector<1x16xf32>,
    %72 = vector.extract_strided_slice %14 {offsets = [1, 192], sizes = [1, 16], strides = [1, 1]} : vector<2x256xf32> to vector<1x16xf32>
    %c12_63 = arith.constant 12 : index
    %c0_64 = arith.constant 0 : index
    %73 = vector.load %arg15[%c12_63, %c0_64] : memref<16x16xf32, #tpu.memory_space<vmem>>, vector<1x16xf32>
    tpu.vector_store %arg15[%c12_63, %c0_64], %72 {strides = array<i32>} : memref<16x16xf32, #tpu.memory_space<vmem>>, vector<1x16xf32>,
    %74 = vector.extract_strided_slice %14 {offsets = [1, 208], sizes = [1, 16], strides = [1, 1]} : vector<2x256xf32> to vector<1x16xf32>
    %c13_65 = arith.constant 13 : index
    %c0_66 = arith.constant 0 : index
    %75 = vector.load %arg15[%c13_65, %c0_66] : memref<16x16xf32, #tpu.memory_space<vmem>>, vector<1x16xf32>
    tpu.vector_store %arg15[%c13_65, %c0_66], %74 {strides = array<i32>} : memref<16x16xf32, #tpu.memory_space<vmem>>, vector<1x16xf32>,
    %76 = vector.extract_strided_slice %14 {offsets = [1, 224], sizes = [1, 16], strides = [1, 1]} : vector<2x256xf32> to vector<1x16xf32>
    %c14_67 = arith.constant 14 : index
    %c0_68 = arith.constant 0 : index
    %77 = vector.load %arg15[%c14_67, %c0_68] : memref<16x16xf32, #tpu.memory_space<vmem>>, vector<1x16xf32>
    tpu.vector_store %arg15[%c14_67, %c0_68], %76 {strides = array<i32>} : memref<16x16xf32, #tpu.memory_space<vmem>>, vector<1x16xf32>,
    %78 = vector.extract_strided_slice %14 {offsets = [1, 240], sizes = [1, 16], strides = [1, 1]} : vector<2x256xf32> to vector<1x16xf32>
    %c15_69 = arith.constant 15 : index
    %c0_70 = arith.constant 0 : index
    %79 = vector.load %arg15[%c15_69, %c0_70] : memref<16x16xf32, #tpu.memory_space<vmem>>, vector<1x16xf32>
    tpu.vector_store %arg15[%c15_69, %c0_70], %78 {strides = array<i32>} : memref<16x16xf32, #tpu.memory_space<vmem>>, vector<1x16xf32>,
    %c0_71 = arith.constant 0 : index
    %c0_72 = arith.constant 0 : index
    %80 = vector.load %arg15[%c0_71, %c0_72] : memref<16x16xf32, #tpu.memory_space<vmem>>, vector<16x16xf32>
    %c0_73 = arith.constant 0 : index
    %c0_74 = arith.constant 0 : index
    %81 = vector.load %arg8[%c0_73, %c0_74] : memref<16x1xf32, #tpu.memory_space<vmem>>, vector<16x1xf32>
    %c0_75 = arith.constant 0 : index
    %c0_76 = arith.constant 0 : index
    %82 = vector.load %arg9[%c0_75, %c0_76] : memref<16x1xf32, #tpu.memory_space<vmem>>, vector<16x1xf32>
    %cst_77 = arith.constant dense<0.000000e+00> : vector<16xf32>
    %83 = vector.multi_reduction <add>, %47, %cst_77 [1] : vector<16x16xf32> to vector<16xf32>
    %84 = vector.shape_cast %83 : vector<16xf32> to vector<16x1xf32>
    %cst_78 = arith.constant dense<0.000000e+00> : vector<16xf32>
    %85 = vector.multi_reduction <add>, %80, %cst_78 [1] : vector<16x16xf32> to vector<16xf32>
    %86 = vector.shape_cast %85 : vector<16xf32> to vector<16x1xf32>
    %87 = arith.addf %84, %86 : vector<16x1xf32>
    %cst_79 = arith.constant 3.200000e+01 : f32
    %88 = vector.broadcast %cst_79 : f32 to vector<16x1xf32>
    %89 = arith.divf %87, %88 : vector<16x1xf32>
    %90 = vector.broadcast %89 : vector<16x1xf32> to vector<16x16xf32>
    %91 = arith.subf %47, %90 : vector<16x16xf32>
    %92 = arith.mulf %91, %91 : vector<16x16xf32>
    %cst_80 = arith.constant dense<0.000000e+00> : vector<16xf32>
    %93 = vector.multi_reduction <add>, %92, %cst_80 [1] : vector<16x16xf32> to vector<16xf32>
    %94 = vector.shape_cast %93 : vector<16xf32> to vector<16x1xf32>
    %95 = vector.broadcast %89 : vector<16x1xf32> to vector<16x16xf32>
    %96 = arith.subf %80, %95 : vector<16x16xf32>
    %97 = arith.mulf %96, %96 : vector<16x16xf32>
    %cst_81 = arith.constant dense<0.000000e+00> : vector<16xf32>
    %98 = vector.multi_reduction <add>, %97, %cst_81 [1] : vector<16x16xf32> to vector<16xf32>
    %99 = vector.shape_cast %98 : vector<16xf32> to vector<16x1xf32>
    %100 = arith.addf %94, %99 : vector<16x1xf32>
    %cst_82 = arith.constant 3.200000e+01 : f32
    %101 = vector.broadcast %cst_82 : f32 to vector<16x1xf32>
    %102 = arith.divf %100, %101 : vector<16x1xf32>
    %cst_83 = arith.constant 9.99999974E-6 : f32
    %103 = vector.broadcast %cst_83 : f32 to vector<16x1xf32>
    %104 = arith.addf %102, %103 : vector<16x1xf32>
    %105 = math.rsqrt %104 : vector<16x1xf32>
    %106 = arith.mulf %81, %105 : vector<16x1xf32>
    %107 = arith.mulf %89, %106 : vector<16x1xf32>
    %108 = arith.subf %82, %107 : vector<16x1xf32>
    %109 = vector.broadcast %106 : vector<16x1xf32> to vector<16x16xf32>
    %110 = arith.mulf %47, %109 : vector<16x16xf32>
    %111 = vector.broadcast %108 : vector<16x1xf32> to vector<16x16xf32>
    %112 = arith.addf %110, %111 : vector<16x16xf32>
    %113 = vector.broadcast %106 : vector<16x1xf32> to vector<16x16xf32>
    %114 = arith.mulf %80, %113 : vector<16x16xf32>
    %115 = vector.broadcast %108 : vector<16x1xf32> to vector<16x16xf32>
    %116 = arith.addf %114, %115 : vector<16x16xf32>
    %117 = tpu.iota {dimensions = array<i32: 0>} : vector<16x64xi32>
    %118 = tpu.iota {dimensions = array<i32: 1>} : vector<16x64xi32>
    %c3_i32 = arith.constant 3 : i32
    %119 = vector.broadcast %c3_i32 : i32 to vector<16x64xi32>
    %120 = arith.shrsi %118, %119 : vector<16x64xi32>
    %c7_i32 = arith.constant 7 : i32
    %121 = vector.broadcast %c7_i32 : i32 to vector<16x64xi32>
    %122 = arith.andi %118, %121 : vector<16x64xi32>
    %c1_i32 = arith.constant 1 : i32
    %123 = vector.broadcast %c1_i32 : i32 to vector<16x64xi32>
    %124 = arith.shrsi %120, %123 : vector<16x64xi32>
    %c2_i32 = arith.constant 2 : i32
    %125 = vector.broadcast %c2_i32 : i32 to vector<16x64xi32>
    %126 = arith.shli %124, %125 : vector<16x64xi32>
    %c1_i32_84 = arith.constant 1 : i32
    %127 = vector.broadcast %c1_i32_84 : i32 to vector<16x64xi32>
    %128 = arith.shrsi %122, %127 : vector<16x64xi32>
    %129 = arith.ori %126, %128 : vector<16x64xi32>
    %130 = arith.cmpi eq, %117, %129 : vector<16x64xi32>
    %cst_85 = arith.constant 1.000000e+00 : f32
    %cst_86 = arith.constant 0.000000e+00 : f32
    %131 = vector.broadcast %cst_85 : f32 to vector<16x64xf32>
    %132 = vector.broadcast %cst_86 : f32 to vector<16x64xf32>
    %133 = arith.select %130, %131, %132 : vector<16x64xi1>, vector<16x64xf32>
    %cst_87 = arith.constant dense<0.000000e+00> : vector<16x64xf32>
    %134 = tpu.matmul %112, %133, %cst_87 {dimension_numbers = #tpu.dot_dimension_numbers<[1], [0], [0], [1], [0, 0, 1, 1], [], []>} : vector<16x16xf32>, vector<16x64xf32>, vector<16x64xf32> -> vector<16x64xf32>
    %cst_88 = arith.constant dense<0.000000e+00> : vector<16x64xf32>
    %135 = tpu.matmul %116, %133, %cst_88 {dimension_numbers = #tpu.dot_dimension_numbers<[1], [0], [0], [1], [0, 0, 1, 1], [], []>} : vector<16x16xf32>, vector<16x64xf32>, vector<16x64xf32> -> vector<16x64xf32>
    %c0_89 = arith.constant 0 : index
    %c9_90 = arith.constant 9 : index
    %136 = vector.load %arg16[%c0_89, %c9_90] : memref<16x82xf32, #tpu.memory_space<vmem>>, vector<16x64xf32>
    tpu.vector_store %arg16[%c0_89, %c9_90], %134 {strides = array<i32>} : memref<16x82xf32, #tpu.memory_space<vmem>>, vector<16x64xf32>,
    %137 = tpu.iota {dimensions = array<i32: 1>} : vector<1x64xi32>
    %c7_i32_91 = arith.constant 7 : i32
    %138 = vector.broadcast %c7_i32_91 : i32 to vector<1x64xi32>
    %139 = arith.andi %137, %138 : vector<1x64xi32>
    %c1_i32_92 = arith.constant 1 : i32
    %140 = vector.broadcast %c1_i32_92 : i32 to vector<1x64xi32>
    %141 = arith.cmpi sge, %139, %140 : vector<1x64xi32>
    %cst_93 = arith.constant 1.000000e+00 : f32
    %cst_94 = arith.constant 0.000000e+00 : f32
    %142 = vector.broadcast %cst_93 : f32 to vector<1x64xf32>
    %143 = vector.broadcast %cst_94 : f32 to vector<1x64xf32>
    %144 = arith.select %141, %142, %143 : vector<1x64xi1>, vector<1x64xf32>
    %c6_i32 = arith.constant 6 : i32
    %145 = vector.broadcast %c6_i32 : i32 to vector<1x64xi32>
    %146 = arith.cmpi sle, %139, %145 : vector<1x64xi32>
    %cst_95 = arith.constant 1.000000e+00 : f32
    %cst_96 = arith.constant 0.000000e+00 : f32
    %147 = vector.broadcast %cst_95 : f32 to vector<1x64xf32>
    %148 = vector.broadcast %cst_96 : f32 to vector<1x64xf32>
    %149 = arith.select %146, %147, %148 : vector<1x64xi1>, vector<1x64xf32>
    %c0_97 = arith.constant 0 : index
    %c0_98 = arith.constant 0 : index
    %150 = vector.load %arg16[%c0_97, %c0_98] : memref<16x82xf32, #tpu.memory_space<vmem>>, vector<16x64xf32>
    %151 = vector.broadcast %144 : vector<1x64xf32> to vector<16x64xf32>
    %152 = arith.mulf %150, %151 : vector<16x64xf32>
    %c0_99 = arith.constant 0 : index
    %c0_100 = arith.constant 0 : index
    %153 = vector.load %arg19[%c0_99, %c0_100] : memref<144x64xf32, #tpu.memory_space<vmem>>, vector<16x64xf32>
    tpu.vector_store %arg19[%c0_99, %c0_100], %152 {strides = array<i32>} : memref<144x64xf32, #tpu.memory_space<vmem>>, vector<16x64xf32>,
    %c0_101 = arith.constant 0 : index
    %c1_102 = arith.constant 1 : index
    %154 = vector.load %arg16[%c0_101, %c1_102] : memref<16x82xf32, #tpu.memory_space<vmem>>, vector<16x64xf32>
    %c16 = arith.constant 16 : index
    %c0_103 = arith.constant 0 : index
    %155 = vector.load %arg19[%c16, %c0_103] : memref<144x64xf32, #tpu.memory_space<vmem>>, vector<16x64xf32>
    tpu.vector_store %arg19[%c16, %c0_103], %154 {strides = array<i32>} : memref<144x64xf32, #tpu.memory_space<vmem>>, vector<16x64xf32>,
    %c0_104 = arith.constant 0 : index
    %c2_105 = arith.constant 2 : index
    %156 = vector.load %arg16[%c0_104, %c2_105] : memref<16x82xf32, #tpu.memory_space<vmem>>, vector<16x64xf32>
    %157 = vector.broadcast %149 : vector<1x64xf32> to vector<16x64xf32>
    %158 = arith.mulf %156, %157 : vector<16x64xf32>
    %c32 = arith.constant 32 : index
    %c0_106 = arith.constant 0 : index
    %159 = vector.load %arg19[%c32, %c0_106] : memref<144x64xf32, #tpu.memory_space<vmem>>, vector<16x64xf32>
    tpu.vector_store %arg19[%c32, %c0_106], %158 {strides = array<i32>} : memref<144x64xf32, #tpu.memory_space<vmem>>, vector<16x64xf32>,
    %c0_107 = arith.constant 0 : index
    %c8_108 = arith.constant 8 : index
    %160 = vector.load %arg16[%c0_107, %c8_108] : memref<16x82xf32, #tpu.memory_space<vmem>>, vector<16x64xf32>
    %161 = vector.broadcast %144 : vector<1x64xf32> to vector<16x64xf32>
    %162 = arith.mulf %160, %161 : vector<16x64xf32>
    %c48 = arith.constant 48 : index
    %c0_109 = arith.constant 0 : index
    %163 = vector.load %arg19[%c48, %c0_109] : memref<144x64xf32, #tpu.memory_space<vmem>>, vector<16x64xf32>
    tpu.vector_store %arg19[%c48, %c0_109], %162 {strides = array<i32>} : memref<144x64xf32, #tpu.memory_space<vmem>>, vector<16x64xf32>,
    %c0_110 = arith.constant 0 : index
    %c9_111 = arith.constant 9 : index
    %164 = vector.load %arg16[%c0_110, %c9_111] : memref<16x82xf32, #tpu.memory_space<vmem>>, vector<16x64xf32>
    %c64 = arith.constant 64 : index
    %c0_112 = arith.constant 0 : index
    %165 = vector.load %arg19[%c64, %c0_112] : memref<144x64xf32, #tpu.memory_space<vmem>>, vector<16x64xf32>
    tpu.vector_store %arg19[%c64, %c0_112], %164 {strides = array<i32>} : memref<144x64xf32, #tpu.memory_space<vmem>>, vector<16x64xf32>,
    %c0_113 = arith.constant 0 : index
    %c10_114 = arith.constant 10 : index
    %166 = vector.load %arg16[%c0_113, %c10_114] : memref<16x82xf32, #tpu.memory_space<vmem>>, vector<16x64xf32>
    %167 = vector.broadcast %149 : vector<1x64xf32> to vector<16x64xf32>
    %168 = arith.mulf %166, %167 : vector<16x64xf32>
    %c80 = arith.constant 80 : index
    %c0_115 = arith.constant 0 : index
    %169 = vector.load %arg19[%c80, %c0_115] : memref<144x64xf32, #tpu.memory_space<vmem>>, vector<16x64xf32>
    tpu.vector_store %arg19[%c80, %c0_115], %168 {strides = array<i32>} : memref<144x64xf32, #tpu.memory_space<vmem>>, vector<16x64xf32>,
    %c0_116 = arith.constant 0 : index
    %c16_117 = arith.constant 16 : index
    %170 = vector.load %arg16[%c0_116, %c16_117] : memref<16x82xf32, #tpu.memory_space<vmem>>, vector<16x64xf32>
    %171 = vector.broadcast %144 : vector<1x64xf32> to vector<16x64xf32>
    %172 = arith.mulf %170, %171 : vector<16x64xf32>
    %c96 = arith.constant 96 : index
    %c0_118 = arith.constant 0 : index
    %173 = vector.load %arg19[%c96, %c0_118] : memref<144x64xf32, #tpu.memory_space<vmem>>, vector<16x64xf32>
    tpu.vector_store %arg19[%c96, %c0_118], %172 {strides = array<i32>} : memref<144x64xf32, #tpu.memory_space<vmem>>, vector<16x64xf32>,
    %c0_119 = arith.constant 0 : index
    %c17 = arith.constant 17 : index
    %174 = vector.load %arg16[%c0_119, %c17] : memref<16x82xf32, #tpu.memory_space<vmem>>, vector<16x64xf32>
    %c112 = arith.constant 112 : index
    %c0_120 = arith.constant 0 : index
    %175 = vector.load %arg19[%c112, %c0_120] : memref<144x64xf32, #tpu.memory_space<vmem>>, vector<16x64xf32>
    tpu.vector_store %arg19[%c112, %c0_120], %174 {strides = array<i32>} : memref<144x64xf32, #tpu.memory_space<vmem>>, vector<16x64xf32>,
    %c0_121 = arith.constant 0 : index
    %c18 = arith.constant 18 : index
    %176 = vector.load %arg16[%c0_121, %c18] : memref<16x82xf32, #tpu.memory_space<vmem>>, vector<16x64xf32>
    %177 = vector.broadcast %149 : vector<1x64xf32> to vector<16x64xf32>
    %178 = arith.mulf %176, %177 : vector<16x64xf32>
    %c128 = arith.constant 128 : index
    %c0_122 = arith.constant 0 : index
    %179 = vector.load %arg19[%c128, %c0_122] : memref<144x64xf32, #tpu.memory_space<vmem>>, vector<16x64xf32>
    tpu.vector_store %arg19[%c128, %c0_122], %178 {strides = array<i32>} : memref<144x64xf32, #tpu.memory_space<vmem>>, vector<16x64xf32>,
    %c0_123 = arith.constant 0 : index
    %c0_124 = arith.constant 0 : index
    %180 = vector.load %arg19[%c0_123, %c0_124] : memref<144x64xf32, #tpu.memory_space<vmem>>, vector<144x64xf32>
    %cst_125 = arith.constant dense<0.000000e+00> : vector<16x64xf32>
    %181 = tpu.matmul %6, %180, %cst_125 {dimension_numbers = #tpu.dot_dimension_numbers<[1], [0], [0], [1], [0, 0, 1, 1], [], []>} : vector<16x144xf32>, vector<144x64xf32>, vector<16x64xf32> -> vector<16x64xf32>
    %c0_126 = arith.constant 0 : index
    %c9_127 = arith.constant 9 : index
    %182 = vector.load %arg16[%c0_126, %c9_127] : memref<16x82xf32, #tpu.memory_space<vmem>>, vector<16x64xf32>
    tpu.vector_store %arg16[%c0_126, %c9_127], %135 {strides = array<i32>} : memref<16x82xf32, #tpu.memory_space<vmem>>, vector<16x64xf32>,
    %183 = tpu.iota {dimensions = array<i32: 1>} : vector<1x64xi32>
    %c7_i32_128 = arith.constant 7 : i32
    %184 = vector.broadcast %c7_i32_128 : i32 to vector<1x64xi32>
    %185 = arith.andi %183, %184 : vector<1x64xi32>
    %c1_i32_129 = arith.constant 1 : i32
    %186 = vector.broadcast %c1_i32_129 : i32 to vector<1x64xi32>
    %187 = arith.cmpi sge, %185, %186 : vector<1x64xi32>
    %cst_130 = arith.constant 1.000000e+00 : f32
    %cst_131 = arith.constant 0.000000e+00 : f32
    %188 = vector.broadcast %cst_130 : f32 to vector<1x64xf32>
    %189 = vector.broadcast %cst_131 : f32 to vector<1x64xf32>
    %190 = arith.select %187, %188, %189 : vector<1x64xi1>, vector<1x64xf32>
    %c6_i32_132 = arith.constant 6 : i32
    %191 = vector.broadcast %c6_i32_132 : i32 to vector<1x64xi32>
    %192 = arith.cmpi sle, %185, %191 : vector<1x64xi32>
    %cst_133 = arith.constant 1.000000e+00 : f32
    %cst_134 = arith.constant 0.000000e+00 : f32
    %193 = vector.broadcast %cst_133 : f32 to vector<1x64xf32>
    %194 = vector.broadcast %cst_134 : f32 to vector<1x64xf32>
    %195 = arith.select %192, %193, %194 : vector<1x64xi1>, vector<1x64xf32>
    %c0_135 = arith.constant 0 : index
    %c0_136 = arith.constant 0 : index
    %196 = vector.load %arg16[%c0_135, %c0_136] : memref<16x82xf32, #tpu.memory_space<vmem>>, vector<16x64xf32>
    %197 = vector.broadcast %190 : vector<1x64xf32> to vector<16x64xf32>
    %198 = arith.mulf %196, %197 : vector<16x64xf32>
    %c0_137 = arith.constant 0 : index
    %c0_138 = arith.constant 0 : index
    %199 = vector.load %arg19[%c0_137, %c0_138] : memref<144x64xf32, #tpu.memory_space<vmem>>, vector<16x64xf32>
    tpu.vector_store %arg19[%c0_137, %c0_138], %198 {strides = array<i32>} : memref<144x64xf32, #tpu.memory_space<vmem>>, vector<16x64xf32>,
    %c0_139 = arith.constant 0 : index
    %c1_140 = arith.constant 1 : index
    %200 = vector.load %arg16[%c0_139, %c1_140] : memref<16x82xf32, #tpu.memory_space<vmem>>, vector<16x64xf32>
    %c16_141 = arith.constant 16 : index
    %c0_142 = arith.constant 0 : index
    %201 = vector.load %arg19[%c16_141, %c0_142] : memref<144x64xf32, #tpu.memory_space<vmem>>, vector<16x64xf32>
    tpu.vector_store %arg19[%c16_141, %c0_142], %200 {strides = array<i32>} : memref<144x64xf32, #tpu.memory_space<vmem>>, vector<16x64xf32>,
    %c0_143 = arith.constant 0 : index
    %c2_144 = arith.constant 2 : index
    %202 = vector.load %arg16[%c0_143, %c2_144] : memref<16x82xf32, #tpu.memory_space<vmem>>, vector<16x64xf32>
    %203 = vector.broadcast %195 : vector<1x64xf32> to vector<16x64xf32>
    %204 = arith.mulf %202, %203 : vector<16x64xf32>
    %c32_145 = arith.constant 32 : index
    %c0_146 = arith.constant 0 : index
    %205 = vector.load %arg19[%c32_145, %c0_146] : memref<144x64xf32, #tpu.memory_space<vmem>>, vector<16x64xf32>
    tpu.vector_store %arg19[%c32_145, %c0_146], %204 {strides = array<i32>} : memref<144x64xf32, #tpu.memory_space<vmem>>, vector<16x64xf32>,
    %c0_147 = arith.constant 0 : index
    %c8_148 = arith.constant 8 : index
    %206 = vector.load %arg16[%c0_147, %c8_148] : memref<16x82xf32, #tpu.memory_space<vmem>>, vector<16x64xf32>
    %207 = vector.broadcast %190 : vector<1x64xf32> to vector<16x64xf32>
    %208 = arith.mulf %206, %207 : vector<16x64xf32>
    %c48_149 = arith.constant 48 : index
    %c0_150 = arith.constant 0 : index
    %209 = vector.load %arg19[%c48_149, %c0_150] : memref<144x64xf32, #tpu.memory_space<vmem>>, vector<16x64xf32>
    tpu.vector_store %arg19[%c48_149, %c0_150], %208 {strides = array<i32>} : memref<144x64xf32, #tpu.memory_space<vmem>>, vector<16x64xf32>,
    %c0_151 = arith.constant 0 : index
    %c9_152 = arith.constant 9 : index
    %210 = vector.load %arg16[%c0_151, %c9_152] : memref<16x82xf32, #tpu.memory_space<vmem>>, vector<16x64xf32>
    %c64_153 = arith.constant 64 : index
    %c0_154 = arith.constant 0 : index
    %211 = vector.load %arg19[%c64_153, %c0_154] : memref<144x64xf32, #tpu.memory_space<vmem>>, vector<16x64xf32>
    tpu.vector_store %arg19[%c64_153, %c0_154], %210 {strides = array<i32>} : memref<144x64xf32, #tpu.memory_space<vmem>>, vector<16x64xf32>,
    %c0_155 = arith.constant 0 : index
    %c10_156 = arith.constant 10 : index
    %212 = vector.load %arg16[%c0_155, %c10_156] : memref<16x82xf32, #tpu.memory_space<vmem>>, vector<16x64xf32>
    %213 = vector.broadcast %195 : vector<1x64xf32> to vector<16x64xf32>
    %214 = arith.mulf %212, %213 : vector<16x64xf32>
    %c80_157 = arith.constant 80 : index
    %c0_158 = arith.constant 0 : index
    %215 = vector.load %arg19[%c80_157, %c0_158] : memref<144x64xf32, #tpu.memory_space<vmem>>, vector<16x64xf32>
    tpu.vector_store %arg19[%c80_157, %c0_158], %214 {strides = array<i32>} : memref<144x64xf32, #tpu.memory_space<vmem>>, vector<16x64xf32>,
    %c0_159 = arith.constant 0 : index
    %c16_160 = arith.constant 16 : index
    %216 = vector.load %arg16[%c0_159, %c16_160] : memref<16x82xf32, #tpu.memory_space<vmem>>, vector<16x64xf32>
    %217 = vector.broadcast %190 : vector<1x64xf32> to vector<16x64xf32>
    %218 = arith.mulf %216, %217 : vector<16x64xf32>
    %c96_161 = arith.constant 96 : index
    %c0_162 = arith.constant 0 : index
    %219 = vector.load %arg19[%c96_161, %c0_162] : memref<144x64xf32, #tpu.memory_space<vmem>>, vector<16x64xf32>
    tpu.vector_store %arg19[%c96_161, %c0_162], %218 {strides = array<i32>} : memref<144x64xf32, #tpu.memory_space<vmem>>, vector<16x64xf32>,
    %c0_163 = arith.constant 0 : index
    %c17_164 = arith.constant 17 : index
    %220 = vector.load %arg16[%c0_163, %c17_164] : memref<16x82xf32, #tpu.memory_space<vmem>>, vector<16x64xf32>
    %c112_165 = arith.constant 112 : index
    %c0_166 = arith.constant 0 : index
    %221 = vector.load %arg19[%c112_165, %c0_166] : memref<144x64xf32, #tpu.memory_space<vmem>>, vector<16x64xf32>
    tpu.vector_store %arg19[%c112_165, %c0_166], %220 {strides = array<i32>} : memref<144x64xf32, #tpu.memory_space<vmem>>, vector<16x64xf32>,
    %c0_167 = arith.constant 0 : index
    %c18_168 = arith.constant 18 : index
    %222 = vector.load %arg16[%c0_167, %c18_168] : memref<16x82xf32, #tpu.memory_space<vmem>>, vector<16x64xf32>
    %223 = vector.broadcast %195 : vector<1x64xf32> to vector<16x64xf32>
    %224 = arith.mulf %222, %223 : vector<16x64xf32>
    %c128_169 = arith.constant 128 : index
    %c0_170 = arith.constant 0 : index
    %225 = vector.load %arg19[%c128_169, %c0_170] : memref<144x64xf32, #tpu.memory_space<vmem>>, vector<16x64xf32>
    tpu.vector_store %arg19[%c128_169, %c0_170], %224 {strides = array<i32>} : memref<144x64xf32, #tpu.memory_space<vmem>>, vector<16x64xf32>,
    %c0_171 = arith.constant 0 : index
    %c0_172 = arith.constant 0 : index
    %226 = vector.load %arg19[%c0_171, %c0_172] : memref<144x64xf32, #tpu.memory_space<vmem>>, vector<144x64xf32>
    %cst_173 = arith.constant dense<0.000000e+00> : vector<16x64xf32>
    %227 = tpu.matmul %6, %226, %cst_173 {dimension_numbers = #tpu.dot_dimension_numbers<[1], [0], [0], [1], [0, 0, 1, 1], [], []>} : vector<16x144xf32>, vector<144x64xf32>, vector<16x64xf32> -> vector<16x64xf32>
    %c0_174 = arith.constant 0 : index
    %c0_175 = arith.constant 0 : index
    %228 = vector.load %arg10[%c0_174, %c0_175] : memref<16x1xf32, #tpu.memory_space<vmem>>, vector<16x1xf32>
    %c0_176 = arith.constant 0 : index
    %c0_177 = arith.constant 0 : index
    %229 = vector.load %arg11[%c0_176, %c0_177] : memref<16x1xf32, #tpu.memory_space<vmem>>, vector<16x1xf32>
    %cst_178 = arith.constant dense<0.000000e+00> : vector<16xf32>
    %230 = vector.multi_reduction <add>, %181, %cst_178 [1] : vector<16x64xf32> to vector<16xf32>
    %231 = vector.shape_cast %230 : vector<16xf32> to vector<16x1xf32>
    %cst_179 = arith.constant dense<0.000000e+00> : vector<16xf32>
    %232 = vector.multi_reduction <add>, %227, %cst_179 [1] : vector<16x64xf32> to vector<16xf32>
    %233 = vector.shape_cast %232 : vector<16xf32> to vector<16x1xf32>
    %234 = arith.addf %231, %233 : vector<16x1xf32>
    %cst_180 = arith.constant 1.280000e+02 : f32
    %235 = vector.broadcast %cst_180 : f32 to vector<16x1xf32>
    %236 = arith.divf %234, %235 : vector<16x1xf32>
    %237 = vector.broadcast %236 : vector<16x1xf32> to vector<16x64xf32>
    %238 = arith.subf %181, %237 : vector<16x64xf32>
    %239 = arith.mulf %238, %238 : vector<16x64xf32>
    %cst_181 = arith.constant dense<0.000000e+00> : vector<16xf32>
    %240 = vector.multi_reduction <add>, %239, %cst_181 [1] : vector<16x64xf32> to vector<16xf32>
    %241 = vector.shape_cast %240 : vector<16xf32> to vector<16x1xf32>
    %242 = vector.broadcast %236 : vector<16x1xf32> to vector<16x64xf32>
    %243 = arith.subf %227, %242 : vector<16x64xf32>
    %244 = arith.mulf %243, %243 : vector<16x64xf32>
    %cst_182 = arith.constant dense<0.000000e+00> : vector<16xf32>
    %245 = vector.multi_reduction <add>, %244, %cst_182 [1] : vector<16x64xf32> to vector<16xf32>
    %246 = vector.shape_cast %245 : vector<16xf32> to vector<16x1xf32>
    %247 = arith.addf %241, %246 : vector<16x1xf32>
    %cst_183 = arith.constant 1.280000e+02 : f32
    %248 = vector.broadcast %cst_183 : f32 to vector<16x1xf32>
    %249 = arith.divf %247, %248 : vector<16x1xf32>
    %cst_184 = arith.constant 9.99999974E-6 : f32
    %250 = vector.broadcast %cst_184 : f32 to vector<16x1xf32>
    %251 = arith.addf %249, %250 : vector<16x1xf32>
    %252 = math.rsqrt %251 : vector<16x1xf32>
    %253 = arith.mulf %228, %252 : vector<16x1xf32>
    %254 = arith.mulf %236, %253 : vector<16x1xf32>
    %255 = arith.subf %229, %254 : vector<16x1xf32>
    %256 = vector.broadcast %253 : vector<16x1xf32> to vector<16x64xf32>
    %257 = arith.mulf %181, %256 : vector<16x64xf32>
    %258 = vector.broadcast %255 : vector<16x1xf32> to vector<16x64xf32>
    %259 = arith.addf %257, %258 : vector<16x64xf32>
    %cst_185 = arith.constant 0.000000e+00 : f32
    %260 = vector.broadcast %cst_185 : f32 to vector<16x64xf32>
    %261 = arith.cmpf oge, %259, %260 : vector<16x64xf32>
    %cst_186 = arith.constant 2.000000e-01 : f32
    %262 = vector.broadcast %cst_186 : f32 to vector<16x64xf32>
    %263 = arith.mulf %262, %259 : vector<16x64xf32>
    %264 = arith.select %261, %259, %263 : vector<16x64xi1>, vector<16x64xf32>
    %265 = vector.broadcast %253 : vector<16x1xf32> to vector<16x64xf32>
    %266 = arith.mulf %227, %265 : vector<16x64xf32>
    %267 = vector.broadcast %255 : vector<16x1xf32> to vector<16x64xf32>
    %268 = arith.addf %266, %267 : vector<16x64xf32>
    %cst_187 = arith.constant 0.000000e+00 : f32
    %269 = vector.broadcast %cst_187 : f32 to vector<16x64xf32>
    %270 = arith.cmpf oge, %268, %269 : vector<16x64xf32>
    %cst_188 = arith.constant 2.000000e-01 : f32
    %271 = vector.broadcast %cst_188 : f32 to vector<16x64xf32>
    %272 = arith.mulf %271, %268 : vector<16x64xf32>
    %273 = arith.select %270, %268, %272 : vector<16x64xi1>, vector<16x64xf32>
    %274 = tpu.iota {dimensions = array<i32: 0>} : vector<64x256xi32>
    %275 = tpu.iota {dimensions = array<i32: 1>} : vector<64x256xi32>
    %c4_i32 = arith.constant 4 : i32
    %276 = vector.broadcast %c4_i32 : i32 to vector<64x256xi32>
    %277 = arith.shrsi %275, %276 : vector<64x256xi32>
    %c15_i32 = arith.constant 15 : i32
    %278 = vector.broadcast %c15_i32 : i32 to vector<64x256xi32>
    %279 = arith.andi %275, %278 : vector<64x256xi32>
    %c1_i32_189 = arith.constant 1 : i32
    %280 = vector.broadcast %c1_i32_189 : i32 to vector<64x256xi32>
    %281 = arith.shrsi %277, %280 : vector<64x256xi32>
    %c3_i32_190 = arith.constant 3 : i32
    %282 = vector.broadcast %c3_i32_190 : i32 to vector<64x256xi32>
    %283 = arith.shli %281, %282 : vector<64x256xi32>
    %c1_i32_191 = arith.constant 1 : i32
    %284 = vector.broadcast %c1_i32_191 : i32 to vector<64x256xi32>
    %285 = arith.shrsi %279, %284 : vector<64x256xi32>
    %286 = arith.ori %283, %285 : vector<64x256xi32>
    %287 = arith.cmpi eq, %274, %286 : vector<64x256xi32>
    %cst_192 = arith.constant 1.000000e+00 : f32
    %cst_193 = arith.constant 0.000000e+00 : f32
    %288 = vector.broadcast %cst_192 : f32 to vector<64x256xf32>
    %289 = vector.broadcast %cst_193 : f32 to vector<64x256xf32>
    %290 = arith.select %287, %288, %289 : vector<64x256xi1>, vector<64x256xf32>
    %cst_194 = arith.constant dense<0.000000e+00> : vector<16x256xf32>
    %291 = tpu.matmul %264, %290, %cst_194 {dimension_numbers = #tpu.dot_dimension_numbers<[1], [0], [0], [1], [0, 0, 1, 1], [], []>} : vector<16x64xf32>, vector<64x256xf32>, vector<16x256xf32> -> vector<16x256xf32>
    %cst_195 = arith.constant dense<0.000000e+00> : vector<16x256xf32>
    %292 = tpu.matmul %273, %290, %cst_195 {dimension_numbers = #tpu.dot_dimension_numbers<[1], [0], [0], [1], [0, 0, 1, 1], [], []>} : vector<16x64xf32>, vector<64x256xf32>, vector<16x256xf32> -> vector<16x256xf32>
    %c0_196 = arith.constant 0 : index
    %c17_197 = arith.constant 17 : index
    %293 = vector.load %arg17[%c0_196, %c17_197] : memref<16x290xf32, #tpu.memory_space<vmem>>, vector<16x256xf32>
    tpu.vector_store %arg17[%c0_196, %c17_197], %291 {strides = array<i32>} : memref<16x290xf32, #tpu.memory_space<vmem>>, vector<16x256xf32>,
    %294 = tpu.iota {dimensions = array<i32: 1>} : vector<1x256xi32>
    %c15_i32_198 = arith.constant 15 : i32
    %295 = vector.broadcast %c15_i32_198 : i32 to vector<1x256xi32>
    %296 = arith.andi %294, %295 : vector<1x256xi32>
    %c1_i32_199 = arith.constant 1 : i32
    %297 = vector.broadcast %c1_i32_199 : i32 to vector<1x256xi32>
    %298 = arith.cmpi sge, %296, %297 : vector<1x256xi32>
    %cst_200 = arith.constant 1.000000e+00 : f32
    %cst_201 = arith.constant 0.000000e+00 : f32
    %299 = vector.broadcast %cst_200 : f32 to vector<1x256xf32>
    %300 = vector.broadcast %cst_201 : f32 to vector<1x256xf32>
    %301 = arith.select %298, %299, %300 : vector<1x256xi1>, vector<1x256xf32>
    %c14_i32 = arith.constant 14 : i32
    %302 = vector.broadcast %c14_i32 : i32 to vector<1x256xi32>
    %303 = arith.cmpi sle, %296, %302 : vector<1x256xi32>
    %cst_202 = arith.constant 1.000000e+00 : f32
    %cst_203 = arith.constant 0.000000e+00 : f32
    %304 = vector.broadcast %cst_202 : f32 to vector<1x256xf32>
    %305 = vector.broadcast %cst_203 : f32 to vector<1x256xf32>
    %306 = arith.select %303, %304, %305 : vector<1x256xi1>, vector<1x256xf32>
    %c0_204 = arith.constant 0 : index
    %c0_205 = arith.constant 0 : index
    %307 = vector.load %arg17[%c0_204, %c0_205] : memref<16x290xf32, #tpu.memory_space<vmem>>, vector<16x256xf32>
    %308 = vector.broadcast %301 : vector<1x256xf32> to vector<16x256xf32>
    %309 = arith.mulf %307, %308 : vector<16x256xf32>
    %c0_206 = arith.constant 0 : index
    %c0_207 = arith.constant 0 : index
    %310 = vector.load %arg20[%c0_206, %c0_207] : memref<144x256xf32, #tpu.memory_space<vmem>>, vector<16x256xf32>
    tpu.vector_store %arg20[%c0_206, %c0_207], %309 {strides = array<i32>} : memref<144x256xf32, #tpu.memory_space<vmem>>, vector<16x256xf32>,
    %c0_208 = arith.constant 0 : index
    %c1_209 = arith.constant 1 : index
    %311 = vector.load %arg17[%c0_208, %c1_209] : memref<16x290xf32, #tpu.memory_space<vmem>>, vector<16x256xf32>
    %c16_210 = arith.constant 16 : index
    %c0_211 = arith.constant 0 : index
    %312 = vector.load %arg20[%c16_210, %c0_211] : memref<144x256xf32, #tpu.memory_space<vmem>>, vector<16x256xf32>
    tpu.vector_store %arg20[%c16_210, %c0_211], %311 {strides = array<i32>} : memref<144x256xf32, #tpu.memory_space<vmem>>, vector<16x256xf32>,
    %c0_212 = arith.constant 0 : index
    %c2_213 = arith.constant 2 : index
    %313 = vector.load %arg17[%c0_212, %c2_213] : memref<16x290xf32, #tpu.memory_space<vmem>>, vector<16x256xf32>
    %314 = vector.broadcast %306 : vector<1x256xf32> to vector<16x256xf32>
    %315 = arith.mulf %313, %314 : vector<16x256xf32>
    %c32_214 = arith.constant 32 : index
    %c0_215 = arith.constant 0 : index
    %316 = vector.load %arg20[%c32_214, %c0_215] : memref<144x256xf32, #tpu.memory_space<vmem>>, vector<16x256xf32>
    tpu.vector_store %arg20[%c32_214, %c0_215], %315 {strides = array<i32>} : memref<144x256xf32, #tpu.memory_space<vmem>>, vector<16x256xf32>,
    %c0_216 = arith.constant 0 : index
    %c16_217 = arith.constant 16 : index
    %317 = vector.load %arg17[%c0_216, %c16_217] : memref<16x290xf32, #tpu.memory_space<vmem>>, vector<16x256xf32>
    %318 = vector.broadcast %301 : vector<1x256xf32> to vector<16x256xf32>
    %319 = arith.mulf %317, %318 : vector<16x256xf32>
    %c48_218 = arith.constant 48 : index
    %c0_219 = arith.constant 0 : index
    %320 = vector.load %arg20[%c48_218, %c0_219] : memref<144x256xf32, #tpu.memory_space<vmem>>, vector<16x256xf32>
    tpu.vector_store %arg20[%c48_218, %c0_219], %319 {strides = array<i32>} : memref<144x256xf32, #tpu.memory_space<vmem>>, vector<16x256xf32>,
    %c0_220 = arith.constant 0 : index
    %c17_221 = arith.constant 17 : index
    %321 = vector.load %arg17[%c0_220, %c17_221] : memref<16x290xf32, #tpu.memory_space<vmem>>, vector<16x256xf32>
    %c64_222 = arith.constant 64 : index
    %c0_223 = arith.constant 0 : index
    %322 = vector.load %arg20[%c64_222, %c0_223] : memref<144x256xf32, #tpu.memory_space<vmem>>, vector<16x256xf32>
    tpu.vector_store %arg20[%c64_222, %c0_223], %321 {strides = array<i32>} : memref<144x256xf32, #tpu.memory_space<vmem>>, vector<16x256xf32>,
    %c0_224 = arith.constant 0 : index
    %c18_225 = arith.constant 18 : index
    %323 = vector.load %arg17[%c0_224, %c18_225] : memref<16x290xf32, #tpu.memory_space<vmem>>, vector<16x256xf32>
    %324 = vector.broadcast %306 : vector<1x256xf32> to vector<16x256xf32>
    %325 = arith.mulf %323, %324 : vector<16x256xf32>
    %c80_226 = arith.constant 80 : index
    %c0_227 = arith.constant 0 : index
    %326 = vector.load %arg20[%c80_226, %c0_227] : memref<144x256xf32, #tpu.memory_space<vmem>>, vector<16x256xf32>
    tpu.vector_store %arg20[%c80_226, %c0_227], %325 {strides = array<i32>} : memref<144x256xf32, #tpu.memory_space<vmem>>, vector<16x256xf32>,
    %c0_228 = arith.constant 0 : index
    %c32_229 = arith.constant 32 : index
    %327 = vector.load %arg17[%c0_228, %c32_229] : memref<16x290xf32, #tpu.memory_space<vmem>>, vector<16x256xf32>
    %328 = vector.broadcast %301 : vector<1x256xf32> to vector<16x256xf32>
    %329 = arith.mulf %327, %328 : vector<16x256xf32>
    %c96_230 = arith.constant 96 : index
    %c0_231 = arith.constant 0 : index
    %330 = vector.load %arg20[%c96_230, %c0_231] : memref<144x256xf32, #tpu.memory_space<vmem>>, vector<16x256xf32>
    tpu.vector_store %arg20[%c96_230, %c0_231], %329 {strides = array<i32>} : memref<144x256xf32, #tpu.memory_space<vmem>>, vector<16x256xf32>,
    %c0_232 = arith.constant 0 : index
    %c33 = arith.constant 33 : index
    %331 = vector.load %arg17[%c0_232, %c33] : memref<16x290xf32, #tpu.memory_space<vmem>>, vector<16x256xf32>
    %c112_233 = arith.constant 112 : index
    %c0_234 = arith.constant 0 : index
    %332 = vector.load %arg20[%c112_233, %c0_234] : memref<144x256xf32, #tpu.memory_space<vmem>>, vector<16x256xf32>
    tpu.vector_store %arg20[%c112_233, %c0_234], %331 {strides = array<i32>} : memref<144x256xf32, #tpu.memory_space<vmem>>, vector<16x256xf32>,
    %c0_235 = arith.constant 0 : index
    %c34 = arith.constant 34 : index
    %333 = vector.load %arg17[%c0_235, %c34] : memref<16x290xf32, #tpu.memory_space<vmem>>, vector<16x256xf32>
    %334 = vector.broadcast %306 : vector<1x256xf32> to vector<16x256xf32>
    %335 = arith.mulf %333, %334 : vector<16x256xf32>
    %c128_236 = arith.constant 128 : index
    %c0_237 = arith.constant 0 : index
    %336 = vector.load %arg20[%c128_236, %c0_237] : memref<144x256xf32, #tpu.memory_space<vmem>>, vector<16x256xf32>
    tpu.vector_store %arg20[%c128_236, %c0_237], %335 {strides = array<i32>} : memref<144x256xf32, #tpu.memory_space<vmem>>, vector<16x256xf32>,
    %c0_238 = arith.constant 0 : index
    %c0_239 = arith.constant 0 : index
    %337 = vector.load %arg20[%c0_238, %c0_239] : memref<144x256xf32, #tpu.memory_space<vmem>>, vector<144x256xf32>
    %cst_240 = arith.constant dense<0.000000e+00> : vector<8x256xf32>
    %338 = tpu.matmul %7, %337, %cst_240 {dimension_numbers = #tpu.dot_dimension_numbers<[1], [0], [0], [1], [0, 0, 1, 1], [], []>} : vector<8x144xf32>, vector<144x256xf32>, vector<8x256xf32> -> vector<8x256xf32>
    %c0_241 = arith.constant 0 : index
    %c17_242 = arith.constant 17 : index
    %339 = vector.load %arg17[%c0_241, %c17_242] : memref<16x290xf32, #tpu.memory_space<vmem>>, vector<16x256xf32>
    tpu.vector_store %arg17[%c0_241, %c17_242], %292 {strides = array<i32>} : memref<16x290xf32, #tpu.memory_space<vmem>>, vector<16x256xf32>,
    %340 = tpu.iota {dimensions = array<i32: 1>} : vector<1x256xi32>
    %c15_i32_243 = arith.constant 15 : i32
    %341 = vector.broadcast %c15_i32_243 : i32 to vector<1x256xi32>
    %342 = arith.andi %340, %341 : vector<1x256xi32>
    %c1_i32_244 = arith.constant 1 : i32
    %343 = vector.broadcast %c1_i32_244 : i32 to vector<1x256xi32>
    %344 = arith.cmpi sge, %342, %343 : vector<1x256xi32>
    %cst_245 = arith.constant 1.000000e+00 : f32
    %cst_246 = arith.constant 0.000000e+00 : f32
    %345 = vector.broadcast %cst_245 : f32 to vector<1x256xf32>
    %346 = vector.broadcast %cst_246 : f32 to vector<1x256xf32>
    %347 = arith.select %344, %345, %346 : vector<1x256xi1>, vector<1x256xf32>
    %c14_i32_247 = arith.constant 14 : i32
    %348 = vector.broadcast %c14_i32_247 : i32 to vector<1x256xi32>
    %349 = arith.cmpi sle, %342, %348 : vector<1x256xi32>
    %cst_248 = arith.constant 1.000000e+00 : f32
    %cst_249 = arith.constant 0.000000e+00 : f32
    %350 = vector.broadcast %cst_248 : f32 to vector<1x256xf32>
    %351 = vector.broadcast %cst_249 : f32 to vector<1x256xf32>
    %352 = arith.select %349, %350, %351 : vector<1x256xi1>, vector<1x256xf32>
    %c0_250 = arith.constant 0 : index
    %c0_251 = arith.constant 0 : index
    %353 = vector.load %arg17[%c0_250, %c0_251] : memref<16x290xf32, #tpu.memory_space<vmem>>, vector<16x256xf32>
    %354 = vector.broadcast %347 : vector<1x256xf32> to vector<16x256xf32>
    %355 = arith.mulf %353, %354 : vector<16x256xf32>
    %c0_252 = arith.constant 0 : index
    %c0_253 = arith.constant 0 : index
    %356 = vector.load %arg20[%c0_252, %c0_253] : memref<144x256xf32, #tpu.memory_space<vmem>>, vector<16x256xf32>
    tpu.vector_store %arg20[%c0_252, %c0_253], %355 {strides = array<i32>} : memref<144x256xf32, #tpu.memory_space<vmem>>, vector<16x256xf32>,
    %c0_254 = arith.constant 0 : index
    %c1_255 = arith.constant 1 : index
    %357 = vector.load %arg17[%c0_254, %c1_255] : memref<16x290xf32, #tpu.memory_space<vmem>>, vector<16x256xf32>
    %c16_256 = arith.constant 16 : index
    %c0_257 = arith.constant 0 : index
    %358 = vector.load %arg20[%c16_256, %c0_257] : memref<144x256xf32, #tpu.memory_space<vmem>>, vector<16x256xf32>
    tpu.vector_store %arg20[%c16_256, %c0_257], %357 {strides = array<i32>} : memref<144x256xf32, #tpu.memory_space<vmem>>, vector<16x256xf32>,
    %c0_258 = arith.constant 0 : index
    %c2_259 = arith.constant 2 : index
    %359 = vector.load %arg17[%c0_258, %c2_259] : memref<16x290xf32, #tpu.memory_space<vmem>>, vector<16x256xf32>
    %360 = vector.broadcast %352 : vector<1x256xf32> to vector<16x256xf32>
    %361 = arith.mulf %359, %360 : vector<16x256xf32>
    %c32_260 = arith.constant 32 : index
    %c0_261 = arith.constant 0 : index
    %362 = vector.load %arg20[%c32_260, %c0_261] : memref<144x256xf32, #tpu.memory_space<vmem>>, vector<16x256xf32>
    tpu.vector_store %arg20[%c32_260, %c0_261], %361 {strides = array<i32>} : memref<144x256xf32, #tpu.memory_space<vmem>>, vector<16x256xf32>,
    %c0_262 = arith.constant 0 : index
    %c16_263 = arith.constant 16 : index
    %363 = vector.load %arg17[%c0_262, %c16_263] : memref<16x290xf32, #tpu.memory_space<vmem>>, vector<16x256xf32>
    %364 = vector.broadcast %347 : vector<1x256xf32> to vector<16x256xf32>
    %365 = arith.mulf %363, %364 : vector<16x256xf32>
    %c48_264 = arith.constant 48 : index
    %c0_265 = arith.constant 0 : index
    %366 = vector.load %arg20[%c48_264, %c0_265] : memref<144x256xf32, #tpu.memory_space<vmem>>, vector<16x256xf32>
    tpu.vector_store %arg20[%c48_264, %c0_265], %365 {strides = array<i32>} : memref<144x256xf32, #tpu.memory_space<vmem>>, vector<16x256xf32>,
    %c0_266 = arith.constant 0 : index
    %c17_267 = arith.constant 17 : index
    %367 = vector.load %arg17[%c0_266, %c17_267] : memref<16x290xf32, #tpu.memory_space<vmem>>, vector<16x256xf32>
    %c64_268 = arith.constant 64 : index
    %c0_269 = arith.constant 0 : index
    %368 = vector.load %arg20[%c64_268, %c0_269] : memref<144x256xf32, #tpu.memory_space<vmem>>, vector<16x256xf32>
    tpu.vector_store %arg20[%c64_268, %c0_269], %367 {strides = array<i32>} : memref<144x256xf32, #tpu.memory_space<vmem>>, vector<16x256xf32>,
    %c0_270 = arith.constant 0 : index
    %c18_271 = arith.constant 18 : index
    %369 = vector.load %arg17[%c0_270, %c18_271] : memref<16x290xf32, #tpu.memory_space<vmem>>, vector<16x256xf32>
    %370 = vector.broadcast %352 : vector<1x256xf32> to vector<16x256xf32>
    %371 = arith.mulf %369, %370 : vector<16x256xf32>
    %c80_272 = arith.constant 80 : index
    %c0_273 = arith.constant 0 : index
    %372 = vector.load %arg20[%c80_272, %c0_273] : memref<144x256xf32, #tpu.memory_space<vmem>>, vector<16x256xf32>
    tpu.vector_store %arg20[%c80_272, %c0_273], %371 {strides = array<i32>} : memref<144x256xf32, #tpu.memory_space<vmem>>, vector<16x256xf32>,
    %c0_274 = arith.constant 0 : index
    %c32_275 = arith.constant 32 : index
    %373 = vector.load %arg17[%c0_274, %c32_275] : memref<16x290xf32, #tpu.memory_space<vmem>>, vector<16x256xf32>
    %374 = vector.broadcast %347 : vector<1x256xf32> to vector<16x256xf32>
    %375 = arith.mulf %373, %374 : vector<16x256xf32>
    %c96_276 = arith.constant 96 : index
    %c0_277 = arith.constant 0 : index
    %376 = vector.load %arg20[%c96_276, %c0_277] : memref<144x256xf32, #tpu.memory_space<vmem>>, vector<16x256xf32>
    tpu.vector_store %arg20[%c96_276, %c0_277], %375 {strides = array<i32>} : memref<144x256xf32, #tpu.memory_space<vmem>>, vector<16x256xf32>,
    %c0_278 = arith.constant 0 : index
    %c33_279 = arith.constant 33 : index
    %377 = vector.load %arg17[%c0_278, %c33_279] : memref<16x290xf32, #tpu.memory_space<vmem>>, vector<16x256xf32>
    %c112_280 = arith.constant 112 : index
    %c0_281 = arith.constant 0 : index
    %378 = vector.load %arg20[%c112_280, %c0_281] : memref<144x256xf32, #tpu.memory_space<vmem>>, vector<16x256xf32>
    tpu.vector_store %arg20[%c112_280, %c0_281], %377 {strides = array<i32>} : memref<144x256xf32, #tpu.memory_space<vmem>>, vector<16x256xf32>,
    %c0_282 = arith.constant 0 : index
    %c34_283 = arith.constant 34 : index
    %379 = vector.load %arg17[%c0_282, %c34_283] : memref<16x290xf32, #tpu.memory_space<vmem>>, vector<16x256xf32>
    %380 = vector.broadcast %352 : vector<1x256xf32> to vector<16x256xf32>
    %381 = arith.mulf %379, %380 : vector<16x256xf32>
    %c128_284 = arith.constant 128 : index
    %c0_285 = arith.constant 0 : index
    %382 = vector.load %arg20[%c128_284, %c0_285] : memref<144x256xf32, #tpu.memory_space<vmem>>, vector<16x256xf32>
    tpu.vector_store %arg20[%c128_284, %c0_285], %381 {strides = array<i32>} : memref<144x256xf32, #tpu.memory_space<vmem>>, vector<16x256xf32>,
    %c0_286 = arith.constant 0 : index
    %c0_287 = arith.constant 0 : index
    %383 = vector.load %arg20[%c0_286, %c0_287] : memref<144x256xf32, #tpu.memory_space<vmem>>, vector<144x256xf32>
    %cst_288 = arith.constant dense<0.000000e+00> : vector<8x256xf32>
    %384 = tpu.matmul %7, %383, %cst_288 {dimension_numbers = #tpu.dot_dimension_numbers<[1], [0], [0], [1], [0, 0, 1, 1], [], []>} : vector<8x144xf32>, vector<144x256xf32>, vector<8x256xf32> -> vector<8x256xf32>
    %c0_289 = arith.constant 0 : index
    %c0_290 = arith.constant 0 : index
    %385 = vector.load %arg12[%c0_289, %c0_290] : memref<8x1xf32, #tpu.memory_space<vmem>>, vector<8x1xf32>
    %c0_291 = arith.constant 0 : index
    %c0_292 = arith.constant 0 : index
    %386 = vector.load %arg13[%c0_291, %c0_292] : memref<8x1xf32, #tpu.memory_space<vmem>>, vector<8x1xf32>
    %cst_293 = arith.constant dense<0.000000e+00> : vector<8xf32>
    %387 = vector.multi_reduction <add>, %338, %cst_293 [1] : vector<8x256xf32> to vector<8xf32>
    %388 = vector.shape_cast %387 : vector<8xf32> to vector<8x1xf32>
    %cst_294 = arith.constant dense<0.000000e+00> : vector<8xf32>
    %389 = vector.multi_reduction <add>, %384, %cst_294 [1] : vector<8x256xf32> to vector<8xf32>
    %390 = vector.shape_cast %389 : vector<8xf32> to vector<8x1xf32>
    %391 = arith.addf %388, %390 : vector<8x1xf32>
    %cst_295 = arith.constant 5.120000e+02 : f32
    %392 = vector.broadcast %cst_295 : f32 to vector<8x1xf32>
    %393 = arith.divf %391, %392 : vector<8x1xf32>
    %394 = vector.broadcast %393 : vector<8x1xf32> to vector<8x256xf32>
    %395 = arith.subf %338, %394 : vector<8x256xf32>
    %396 = arith.mulf %395, %395 : vector<8x256xf32>
    %cst_296 = arith.constant dense<0.000000e+00> : vector<8xf32>
    %397 = vector.multi_reduction <add>, %396, %cst_296 [1] : vector<8x256xf32> to vector<8xf32>
    %398 = vector.shape_cast %397 : vector<8xf32> to vector<8x1xf32>
    %399 = vector.broadcast %393 : vector<8x1xf32> to vector<8x256xf32>
    %400 = arith.subf %384, %399 : vector<8x256xf32>
    %401 = arith.mulf %400, %400 : vector<8x256xf32>
    %cst_297 = arith.constant dense<0.000000e+00> : vector<8xf32>
    %402 = vector.multi_reduction <add>, %401, %cst_297 [1] : vector<8x256xf32> to vector<8xf32>
    %403 = vector.shape_cast %402 : vector<8xf32> to vector<8x1xf32>
    %404 = arith.addf %398, %403 : vector<8x1xf32>
    %cst_298 = arith.constant 5.120000e+02 : f32
    %405 = vector.broadcast %cst_298 : f32 to vector<8x1xf32>
    %406 = arith.divf %404, %405 : vector<8x1xf32>
    %cst_299 = arith.constant 9.99999974E-6 : f32
    %407 = vector.broadcast %cst_299 : f32 to vector<8x1xf32>
    %408 = arith.addf %406, %407 : vector<8x1xf32>
    %409 = math.rsqrt %408 : vector<8x1xf32>
    %410 = arith.mulf %385, %409 : vector<8x1xf32>
    %411 = arith.mulf %393, %410 : vector<8x1xf32>
    %412 = arith.subf %386, %411 : vector<8x1xf32>
    %413 = vector.broadcast %410 : vector<8x1xf32> to vector<8x256xf32>
    %414 = arith.mulf %338, %413 : vector<8x256xf32>
    %415 = vector.broadcast %412 : vector<8x1xf32> to vector<8x256xf32>
    %416 = arith.addf %414, %415 : vector<8x256xf32>
    %cst_300 = arith.constant 0.000000e+00 : f32
    %417 = vector.broadcast %cst_300 : f32 to vector<8x256xf32>
    %418 = arith.cmpf oge, %416, %417 : vector<8x256xf32>
    %cst_301 = arith.constant 2.000000e-01 : f32
    %419 = vector.broadcast %cst_301 : f32 to vector<8x256xf32>
    %420 = arith.mulf %419, %416 : vector<8x256xf32>
    %421 = arith.select %418, %416, %420 : vector<8x256xi1>, vector<8x256xf32>
    %422 = vector.broadcast %410 : vector<8x1xf32> to vector<8x256xf32>
    %423 = arith.mulf %384, %422 : vector<8x256xf32>
    %424 = vector.broadcast %412 : vector<8x1xf32> to vector<8x256xf32>
    %425 = arith.addf %423, %424 : vector<8x256xf32>
    %cst_302 = arith.constant 0.000000e+00 : f32
    %426 = vector.broadcast %cst_302 : f32 to vector<8x256xf32>
    %427 = arith.cmpf oge, %425, %426 : vector<8x256xf32>
    %cst_303 = arith.constant 2.000000e-01 : f32
    %428 = vector.broadcast %cst_303 : f32 to vector<8x256xf32>
    %429 = arith.mulf %428, %425 : vector<8x256xf32>
    %430 = arith.select %427, %425, %429 : vector<8x256xi1>, vector<8x256xf32>
    %c0_304 = arith.constant 0 : index
    %c17_305 = arith.constant 17 : index
    %431 = vector.load %arg18[%c0_304, %c17_305] : memref<8x290xf32, #tpu.memory_space<vmem>>, vector<8x256xf32>
    tpu.vector_store %arg18[%c0_304, %c17_305], %421 {strides = array<i32>} : memref<8x290xf32, #tpu.memory_space<vmem>>, vector<8x256xf32>,
    %432 = tpu.iota {dimensions = array<i32: 1>} : vector<1x256xi32>
    %c15_i32_306 = arith.constant 15 : i32
    %433 = vector.broadcast %c15_i32_306 : i32 to vector<1x256xi32>
    %434 = arith.andi %432, %433 : vector<1x256xi32>
    %c1_i32_307 = arith.constant 1 : i32
    %435 = vector.broadcast %c1_i32_307 : i32 to vector<1x256xi32>
    %436 = arith.cmpi sge, %434, %435 : vector<1x256xi32>
    %cst_308 = arith.constant 1.000000e+00 : f32
    %cst_309 = arith.constant 0.000000e+00 : f32
    %437 = vector.broadcast %cst_308 : f32 to vector<1x256xf32>
    %438 = vector.broadcast %cst_309 : f32 to vector<1x256xf32>
    %439 = arith.select %436, %437, %438 : vector<1x256xi1>, vector<1x256xf32>
    %c14_i32_310 = arith.constant 14 : i32
    %440 = vector.broadcast %c14_i32_310 : i32 to vector<1x256xi32>
    %441 = arith.cmpi sle, %434, %440 : vector<1x256xi32>
    %cst_311 = arith.constant 1.000000e+00 : f32
    %cst_312 = arith.constant 0.000000e+00 : f32
    %442 = vector.broadcast %cst_311 : f32 to vector<1x256xf32>
    %443 = vector.broadcast %cst_312 : f32 to vector<1x256xf32>
    %444 = arith.select %441, %442, %443 : vector<1x256xi1>, vector<1x256xf32>
    %c0_313 = arith.constant 0 : index
    %c0_314 = arith.constant 0 : index
    %445 = vector.load %arg18[%c0_313, %c0_314] : memref<8x290xf32, #tpu.memory_space<vmem>>, vector<8x256xf32>
    %446 = vector.broadcast %439 : vector<1x256xf32> to vector<8x256xf32>
    %447 = arith.mulf %445, %446 : vector<8x256xf32>
    %c0_315 = arith.constant 0 : index
    %c0_316 = arith.constant 0 : index
    %448 = vector.load %arg21[%c0_315, %c0_316] : memref<72x256xf32, #tpu.memory_space<vmem>>, vector<8x256xf32>
    tpu.vector_store %arg21[%c0_315, %c0_316], %447 {strides = array<i32>} : memref<72x256xf32, #tpu.memory_space<vmem>>, vector<8x256xf32>,
    %c0_317 = arith.constant 0 : index
    %c1_318 = arith.constant 1 : index
    %449 = vector.load %arg18[%c0_317, %c1_318] : memref<8x290xf32, #tpu.memory_space<vmem>>, vector<8x256xf32>
    %c8_319 = arith.constant 8 : index
    %c0_320 = arith.constant 0 : index
    %450 = vector.load %arg21[%c8_319, %c0_320] : memref<72x256xf32, #tpu.memory_space<vmem>>, vector<8x256xf32>
    tpu.vector_store %arg21[%c8_319, %c0_320], %449 {strides = array<i32>} : memref<72x256xf32, #tpu.memory_space<vmem>>, vector<8x256xf32>,
    %c0_321 = arith.constant 0 : index
    %c2_322 = arith.constant 2 : index
    %451 = vector.load %arg18[%c0_321, %c2_322] : memref<8x290xf32, #tpu.memory_space<vmem>>, vector<8x256xf32>
    %452 = vector.broadcast %444 : vector<1x256xf32> to vector<8x256xf32>
    %453 = arith.mulf %451, %452 : vector<8x256xf32>
    %c16_323 = arith.constant 16 : index
    %c0_324 = arith.constant 0 : index
    %454 = vector.load %arg21[%c16_323, %c0_324] : memref<72x256xf32, #tpu.memory_space<vmem>>, vector<8x256xf32>
    tpu.vector_store %arg21[%c16_323, %c0_324], %453 {strides = array<i32>} : memref<72x256xf32, #tpu.memory_space<vmem>>, vector<8x256xf32>,
    %c0_325 = arith.constant 0 : index
    %c16_326 = arith.constant 16 : index
    %455 = vector.load %arg18[%c0_325, %c16_326] : memref<8x290xf32, #tpu.memory_space<vmem>>, vector<8x256xf32>
    %456 = vector.broadcast %439 : vector<1x256xf32> to vector<8x256xf32>
    %457 = arith.mulf %455, %456 : vector<8x256xf32>
    %c24 = arith.constant 24 : index
    %c0_327 = arith.constant 0 : index
    %458 = vector.load %arg21[%c24, %c0_327] : memref<72x256xf32, #tpu.memory_space<vmem>>, vector<8x256xf32>
    tpu.vector_store %arg21[%c24, %c0_327], %457 {strides = array<i32>} : memref<72x256xf32, #tpu.memory_space<vmem>>, vector<8x256xf32>,
    %c0_328 = arith.constant 0 : index
    %c17_329 = arith.constant 17 : index
    %459 = vector.load %arg18[%c0_328, %c17_329] : memref<8x290xf32, #tpu.memory_space<vmem>>, vector<8x256xf32>
    %c32_330 = arith.constant 32 : index
    %c0_331 = arith.constant 0 : index
    %460 = vector.load %arg21[%c32_330, %c0_331] : memref<72x256xf32, #tpu.memory_space<vmem>>, vector<8x256xf32>
    tpu.vector_store %arg21[%c32_330, %c0_331], %459 {strides = array<i32>} : memref<72x256xf32, #tpu.memory_space<vmem>>, vector<8x256xf32>,
    %c0_332 = arith.constant 0 : index
    %c18_333 = arith.constant 18 : index
    %461 = vector.load %arg18[%c0_332, %c18_333] : memref<8x290xf32, #tpu.memory_space<vmem>>, vector<8x256xf32>
    %462 = vector.broadcast %444 : vector<1x256xf32> to vector<8x256xf32>
    %463 = arith.mulf %461, %462 : vector<8x256xf32>
    %c40 = arith.constant 40 : index
    %c0_334 = arith.constant 0 : index
    %464 = vector.load %arg21[%c40, %c0_334] : memref<72x256xf32, #tpu.memory_space<vmem>>, vector<8x256xf32>
    tpu.vector_store %arg21[%c40, %c0_334], %463 {strides = array<i32>} : memref<72x256xf32, #tpu.memory_space<vmem>>, vector<8x256xf32>,
    %c0_335 = arith.constant 0 : index
    %c32_336 = arith.constant 32 : index
    %465 = vector.load %arg18[%c0_335, %c32_336] : memref<8x290xf32, #tpu.memory_space<vmem>>, vector<8x256xf32>
    %466 = vector.broadcast %439 : vector<1x256xf32> to vector<8x256xf32>
    %467 = arith.mulf %465, %466 : vector<8x256xf32>
    %c48_337 = arith.constant 48 : index
    %c0_338 = arith.constant 0 : index
    %468 = vector.load %arg21[%c48_337, %c0_338] : memref<72x256xf32, #tpu.memory_space<vmem>>, vector<8x256xf32>
    tpu.vector_store %arg21[%c48_337, %c0_338], %467 {strides = array<i32>} : memref<72x256xf32, #tpu.memory_space<vmem>>, vector<8x256xf32>,
    %c0_339 = arith.constant 0 : index
    %c33_340 = arith.constant 33 : index
    %469 = vector.load %arg18[%c0_339, %c33_340] : memref<8x290xf32, #tpu.memory_space<vmem>>, vector<8x256xf32>
    %c56 = arith.constant 56 : index
    %c0_341 = arith.constant 0 : index
    %470 = vector.load %arg21[%c56, %c0_341] : memref<72x256xf32, #tpu.memory_space<vmem>>, vector<8x256xf32>
    tpu.vector_store %arg21[%c56, %c0_341], %469 {strides = array<i32>} : memref<72x256xf32, #tpu.memory_space<vmem>>, vector<8x256xf32>,
    %c0_342 = arith.constant 0 : index
    %c34_343 = arith.constant 34 : index
    %471 = vector.load %arg18[%c0_342, %c34_343] : memref<8x290xf32, #tpu.memory_space<vmem>>, vector<8x256xf32>
    %472 = vector.broadcast %444 : vector<1x256xf32> to vector<8x256xf32>
    %473 = arith.mulf %471, %472 : vector<8x256xf32>
    %c64_344 = arith.constant 64 : index
    %c0_345 = arith.constant 0 : index
    %474 = vector.load %arg21[%c64_344, %c0_345] : memref<72x256xf32, #tpu.memory_space<vmem>>, vector<8x256xf32>
    tpu.vector_store %arg21[%c64_344, %c0_345], %473 {strides = array<i32>} : memref<72x256xf32, #tpu.memory_space<vmem>>, vector<8x256xf32>,
    %c0_346 = arith.constant 0 : index
    %c0_347 = arith.constant 0 : index
    %475 = vector.load %arg21[%c0_346, %c0_347] : memref<72x256xf32, #tpu.memory_space<vmem>>, vector<72x256xf32>
    %cst_348 = arith.constant dense<0.000000e+00> : vector<3x256xf32>
    %476 = tpu.matmul %8, %475, %cst_348 {dimension_numbers = #tpu.dot_dimension_numbers<[1], [0], [0], [1], [0, 0, 1, 1], [], []>} : vector<3x72xf32>, vector<72x256xf32>, vector<3x256xf32> -> vector<3x256xf32>
    %c0_349 = arith.constant 0 : index
    %c0_350 = arith.constant 0 : index
    %477 = vector.load %arg7[%c0_349, %c0_350] : memref<3x1xf32, #tpu.memory_space<vmem>>, vector<3x1xf32>
    %478 = vector.broadcast %477 : vector<3x1xf32> to vector<3x256xf32>
    %479 = arith.addf %476, %478 : vector<3x256xf32>
    %480 = arith.negf %479 : vector<3x256xf32>
    %481 = math.exp %480 : vector<3x256xf32>
    %cst_351 = arith.constant 1.000000e+00 : f32
    %482 = vector.broadcast %cst_351 : f32 to vector<3x256xf32>
    %483 = arith.addf %482, %481 : vector<3x256xf32>
    %484 = arith.divf %482, %483 : vector<3x256xf32>
    %c0_352 = arith.constant 0 : index
    %c0_353 = arith.constant 0 : index
    %c0_354 = arith.constant 0 : index
    %485 = vector.load %arg14[%c0_352, %c0_353, %c0_354] : memref<2x3x256xf32, #tpu.memory_space<vmem>>, vector<1x3x256xf32>
    %486 = vector.shape_cast %485 : vector<1x3x256xf32> to vector<3x256xf32>
    %487 = vector.shape_cast %484 : vector<3x256xf32> to vector<1x3x256xf32>
    tpu.vector_store %arg14[%c0_352, %c0_353, %c0_354], %487 {strides = array<i32>} : memref<2x3x256xf32, #tpu.memory_space<vmem>>, vector<1x3x256xf32>,
    %c0_355 = arith.constant 0 : index
    %c17_356 = arith.constant 17 : index
    %488 = vector.load %arg18[%c0_355, %c17_356] : memref<8x290xf32, #tpu.memory_space<vmem>>, vector<8x256xf32>
    tpu.vector_store %arg18[%c0_355, %c17_356], %430 {strides = array<i32>} : memref<8x290xf32, #tpu.memory_space<vmem>>, vector<8x256xf32>,
    %489 = tpu.iota {dimensions = array<i32: 1>} : vector<1x256xi32>
    %c15_i32_357 = arith.constant 15 : i32
    %490 = vector.broadcast %c15_i32_357 : i32 to vector<1x256xi32>
    %491 = arith.andi %489, %490 : vector<1x256xi32>
    %c1_i32_358 = arith.constant 1 : i32
    %492 = vector.broadcast %c1_i32_358 : i32 to vector<1x256xi32>
    %493 = arith.cmpi sge, %491, %492 : vector<1x256xi32>
    %cst_359 = arith.constant 1.000000e+00 : f32
    %cst_360 = arith.constant 0.000000e+00 : f32
    %494 = vector.broadcast %cst_359 : f32 to vector<1x256xf32>
    %495 = vector.broadcast %cst_360 : f32 to vector<1x256xf32>
    %496 = arith.select %493, %494, %495 : vector<1x256xi1>, vector<1x256xf32>
    %c14_i32_361 = arith.constant 14 : i32
    %497 = vector.broadcast %c14_i32_361 : i32 to vector<1x256xi32>
    %498 = arith.cmpi sle, %491, %497 : vector<1x256xi32>
    %cst_362 = arith.constant 1.000000e+00 : f32
    %cst_363 = arith.constant 0.000000e+00 : f32
    %499 = vector.broadcast %cst_362 : f32 to vector<1x256xf32>
    %500 = vector.broadcast %cst_363 : f32 to vector<1x256xf32>
    %501 = arith.select %498, %499, %500 : vector<1x256xi1>, vector<1x256xf32>
    %c0_364 = arith.constant 0 : index
    %c0_365 = arith.constant 0 : index
    %502 = vector.load %arg18[%c0_364, %c0_365] : memref<8x290xf32, #tpu.memory_space<vmem>>, vector<8x256xf32>
    %503 = vector.broadcast %496 : vector<1x256xf32> to vector<8x256xf32>
    %504 = arith.mulf %502, %503 : vector<8x256xf32>
    %c0_366 = arith.constant 0 : index
    %c0_367 = arith.constant 0 : index
    %505 = vector.load %arg21[%c0_366, %c0_367] : memref<72x256xf32, #tpu.memory_space<vmem>>, vector<8x256xf32>
    tpu.vector_store %arg21[%c0_366, %c0_367], %504 {strides = array<i32>} : memref<72x256xf32, #tpu.memory_space<vmem>>, vector<8x256xf32>,
    %c0_368 = arith.constant 0 : index
    %c1_369 = arith.constant 1 : index
    %506 = vector.load %arg18[%c0_368, %c1_369] : memref<8x290xf32, #tpu.memory_space<vmem>>, vector<8x256xf32>
    %c8_370 = arith.constant 8 : index
    %c0_371 = arith.constant 0 : index
    %507 = vector.load %arg21[%c8_370, %c0_371] : memref<72x256xf32, #tpu.memory_space<vmem>>, vector<8x256xf32>
    tpu.vector_store %arg21[%c8_370, %c0_371], %506 {strides = array<i32>} : memref<72x256xf32, #tpu.memory_space<vmem>>, vector<8x256xf32>,
    %c0_372 = arith.constant 0 : index
    %c2_373 = arith.constant 2 : index
    %508 = vector.load %arg18[%c0_372, %c2_373] : memref<8x290xf32, #tpu.memory_space<vmem>>, vector<8x256xf32>
    %509 = vector.broadcast %501 : vector<1x256xf32> to vector<8x256xf32>
    %510 = arith.mulf %508, %509 : vector<8x256xf32>
    %c16_374 = arith.constant 16 : index
    %c0_375 = arith.constant 0 : index
    %511 = vector.load %arg21[%c16_374, %c0_375] : memref<72x256xf32, #tpu.memory_space<vmem>>, vector<8x256xf32>
    tpu.vector_store %arg21[%c16_374, %c0_375], %510 {strides = array<i32>} : memref<72x256xf32, #tpu.memory_space<vmem>>, vector<8x256xf32>,
    %c0_376 = arith.constant 0 : index
    %c16_377 = arith.constant 16 : index
    %512 = vector.load %arg18[%c0_376, %c16_377] : memref<8x290xf32, #tpu.memory_space<vmem>>, vector<8x256xf32>
    %513 = vector.broadcast %496 : vector<1x256xf32> to vector<8x256xf32>
    %514 = arith.mulf %512, %513 : vector<8x256xf32>
    %c24_378 = arith.constant 24 : index
    %c0_379 = arith.constant 0 : index
    %515 = vector.load %arg21[%c24_378, %c0_379] : memref<72x256xf32, #tpu.memory_space<vmem>>, vector<8x256xf32>
    tpu.vector_store %arg21[%c24_378, %c0_379], %514 {strides = array<i32>} : memref<72x256xf32, #tpu.memory_space<vmem>>, vector<8x256xf32>,
    %c0_380 = arith.constant 0 : index
    %c17_381 = arith.constant 17 : index
    %516 = vector.load %arg18[%c0_380, %c17_381] : memref<8x290xf32, #tpu.memory_space<vmem>>, vector<8x256xf32>
    %c32_382 = arith.constant 32 : index
    %c0_383 = arith.constant 0 : index
    %517 = vector.load %arg21[%c32_382, %c0_383] : memref<72x256xf32, #tpu.memory_space<vmem>>, vector<8x256xf32>
    tpu.vector_store %arg21[%c32_382, %c0_383], %516 {strides = array<i32>} : memref<72x256xf32, #tpu.memory_space<vmem>>, vector<8x256xf32>,
    %c0_384 = arith.constant 0 : index
    %c18_385 = arith.constant 18 : index
    %518 = vector.load %arg18[%c0_384, %c18_385] : memref<8x290xf32, #tpu.memory_space<vmem>>, vector<8x256xf32>
    %519 = vector.broadcast %501 : vector<1x256xf32> to vector<8x256xf32>
    %520 = arith.mulf %518, %519 : vector<8x256xf32>
    %c40_386 = arith.constant 40 : index
    %c0_387 = arith.constant 0 : index
    %521 = vector.load %arg21[%c40_386, %c0_387] : memref<72x256xf32, #tpu.memory_space<vmem>>, vector<8x256xf32>
    tpu.vector_store %arg21[%c40_386, %c0_387], %520 {strides = array<i32>} : memref<72x256xf32, #tpu.memory_space<vmem>>, vector<8x256xf32>,
    %c0_388 = arith.constant 0 : index
    %c32_389 = arith.constant 32 : index
    %522 = vector.load %arg18[%c0_388, %c32_389] : memref<8x290xf32, #tpu.memory_space<vmem>>, vector<8x256xf32>
    %523 = vector.broadcast %496 : vector<1x256xf32> to vector<8x256xf32>
    %524 = arith.mulf %522, %523 : vector<8x256xf32>
    %c48_390 = arith.constant 48 : index
    %c0_391 = arith.constant 0 : index
    %525 = vector.load %arg21[%c48_390, %c0_391] : memref<72x256xf32, #tpu.memory_space<vmem>>, vector<8x256xf32>
    tpu.vector_store %arg21[%c48_390, %c0_391], %524 {strides = array<i32>} : memref<72x256xf32, #tpu.memory_space<vmem>>, vector<8x256xf32>,
    %c0_392 = arith.constant 0 : index
    %c33_393 = arith.constant 33 : index
    %526 = vector.load %arg18[%c0_392, %c33_393] : memref<8x290xf32, #tpu.memory_space<vmem>>, vector<8x256xf32>
    %c56_394 = arith.constant 56 : index
    %c0_395 = arith.constant 0 : index
    %527 = vector.load %arg21[%c56_394, %c0_395] : memref<72x256xf32, #tpu.memory_space<vmem>>, vector<8x256xf32>
    tpu.vector_store %arg21[%c56_394, %c0_395], %526 {strides = array<i32>} : memref<72x256xf32, #tpu.memory_space<vmem>>, vector<8x256xf32>,
    %c0_396 = arith.constant 0 : index
    %c34_397 = arith.constant 34 : index
    %528 = vector.load %arg18[%c0_396, %c34_397] : memref<8x290xf32, #tpu.memory_space<vmem>>, vector<8x256xf32>
    %529 = vector.broadcast %501 : vector<1x256xf32> to vector<8x256xf32>
    %530 = arith.mulf %528, %529 : vector<8x256xf32>
    %c64_398 = arith.constant 64 : index
    %c0_399 = arith.constant 0 : index
    %531 = vector.load %arg21[%c64_398, %c0_399] : memref<72x256xf32, #tpu.memory_space<vmem>>, vector<8x256xf32>
    tpu.vector_store %arg21[%c64_398, %c0_399], %530 {strides = array<i32>} : memref<72x256xf32, #tpu.memory_space<vmem>>, vector<8x256xf32>,
    %c0_400 = arith.constant 0 : index
    %c0_401 = arith.constant 0 : index
    %532 = vector.load %arg21[%c0_400, %c0_401] : memref<72x256xf32, #tpu.memory_space<vmem>>, vector<72x256xf32>
    %cst_402 = arith.constant dense<0.000000e+00> : vector<3x256xf32>
    %533 = tpu.matmul %8, %532, %cst_402 {dimension_numbers = #tpu.dot_dimension_numbers<[1], [0], [0], [1], [0, 0, 1, 1], [], []>} : vector<3x72xf32>, vector<72x256xf32>, vector<3x256xf32> -> vector<3x256xf32>
    %c0_403 = arith.constant 0 : index
    %c0_404 = arith.constant 0 : index
    %534 = vector.load %arg7[%c0_403, %c0_404] : memref<3x1xf32, #tpu.memory_space<vmem>>, vector<3x1xf32>
    %535 = vector.broadcast %534 : vector<3x1xf32> to vector<3x256xf32>
    %536 = arith.addf %533, %535 : vector<3x256xf32>
    %537 = arith.negf %536 : vector<3x256xf32>
    %538 = math.exp %537 : vector<3x256xf32>
    %cst_405 = arith.constant 1.000000e+00 : f32
    %539 = vector.broadcast %cst_405 : f32 to vector<3x256xf32>
    %540 = arith.addf %539, %538 : vector<3x256xf32>
    %541 = arith.divf %539, %540 : vector<3x256xf32>
    %c1_406 = arith.constant 1 : index
    %c0_407 = arith.constant 0 : index
    %c0_408 = arith.constant 0 : index
    %542 = vector.load %arg14[%c1_406, %c0_407, %c0_408] : memref<2x3x256xf32, #tpu.memory_space<vmem>>, vector<1x3x256xf32>
    %543 = vector.shape_cast %542 : vector<1x3x256xf32> to vector<3x256xf32>
    %544 = vector.shape_cast %541 : vector<3x256xf32> to vector<1x3x256xf32>
    tpu.vector_store %arg14[%c1_406, %c0_407, %c0_408], %544 {strides = array<i32>} : memref<2x3x256xf32, #tpu.memory_space<vmem>>, vector<1x3x256xf32>,
    return
  }
  func.func @transform_0(%arg0: i32) -> (i32, i32) {
    %c0_i32 = arith.constant 0 : i32
    %c0_i32_0 = arith.constant 0 : i32
    %c0_i32_1 = arith.constant 0 : i32
    return %c0_i32, %c0_i32_0 : i32, i32
  }
  func.func @transform_1(%arg0: i32) -> (i32, i32) {
    %c0_i32 = arith.constant 0 : i32
    %c0_i32_0 = arith.constant 0 : i32
    %c0_i32_1 = arith.constant 0 : i32
    return %c0_i32, %c0_i32_0 : i32, i32
  }
  func.func @transform_2(%arg0: i32) -> (i32, i32) {
    %c0_i32 = arith.constant 0 : i32
    %c0_i32_0 = arith.constant 0 : i32
    %c0_i32_1 = arith.constant 0 : i32
    return %c0_i32, %c0_i32_0 : i32, i32
  }
  func.func @transform_3(%arg0: i32) -> (i32, i32) {
    %c0_i32 = arith.constant 0 : i32
    %c0_i32_0 = arith.constant 0 : i32
    %c0_i32_1 = arith.constant 0 : i32
    return %c0_i32, %c0_i32_0 : i32, i32
  }
  func.func @transform_4(%arg0: i32) -> (i32, i32) {
    %c0_i32 = arith.constant 0 : i32
    %c0_i32_0 = arith.constant 0 : i32
    %c0_i32_1 = arith.constant 0 : i32
    return %c0_i32, %c0_i32_0 : i32, i32
  }
  func.func @transform_5(%arg0: i32) -> (i32, i32) {
    %c0_i32 = arith.constant 0 : i32
    %c0_i32_0 = arith.constant 0 : i32
    %c0_i32_1 = arith.constant 0 : i32
    return %c0_i32, %c0_i32_0 : i32, i32
  }
  func.func @transform_6(%arg0: i32) -> (i32, i32) {
    %c0_i32 = arith.constant 0 : i32
    %c0_i32_0 = arith.constant 0 : i32
    %c0_i32_1 = arith.constant 0 : i32
    return %c0_i32, %c0_i32_0 : i32, i32
  }
  func.func @transform_7(%arg0: i32) -> (i32, i32) {
    %c0_i32 = arith.constant 0 : i32
    %c0_i32_0 = arith.constant 0 : i32
    %c0_i32_1 = arith.constant 0 : i32
    return %c0_i32, %c0_i32_0 : i32, i32
  }
  func.func @transform_8(%arg0: i32) -> (i32, i32) {
    %c0_i32 = arith.constant 0 : i32
    %c0_i32_0 = arith.constant 0 : i32
    %c0_i32_1 = arith.constant 0 : i32
    return %c0_i32, %c0_i32_0 : i32, i32
  }
  func.func @transform_9(%arg0: i32) -> (i32, i32) {
    %c0_i32 = arith.constant 0 : i32
    %c0_i32_0 = arith.constant 0 : i32
    %c0_i32_1 = arith.constant 0 : i32
    return %c0_i32, %c0_i32_0 : i32, i32
  }
  func.func @transform_10(%arg0: i32) -> (i32, i32) {
    %c0_i32 = arith.constant 0 : i32
    %c0_i32_0 = arith.constant 0 : i32
    %c0_i32_1 = arith.constant 0 : i32
    return %c0_i32, %c0_i32_0 : i32, i32
  }
  func.func @transform_11(%arg0: i32) -> (i32, i32) {
    %c0_i32 = arith.constant 0 : i32
    %c0_i32_0 = arith.constant 0 : i32
    %c0_i32_1 = arith.constant 0 : i32
    return %c0_i32, %c0_i32_0 : i32, i32
  }
  func.func @transform_12(%arg0: i32) -> (i32, i32) {
    %c0_i32 = arith.constant 0 : i32
    %c0_i32_0 = arith.constant 0 : i32
    %c0_i32_1 = arith.constant 0 : i32
    return %c0_i32, %c0_i32_0 : i32, i32
  }
  func.func @transform_13(%arg0: i32) -> (i32, i32, i32) {
    %c0_i32 = arith.constant 0 : i32
    %c0_i32_0 = arith.constant 0 : i32
    %c0_i32_1 = arith.constant 0 : i32
    %c0_i32_2 = arith.constant 0 : i32
    return %c0_i32, %c0_i32_0, %c0_i32_1 : i32, i32, i32
  }
}

</mosaic_0001>

<llo_original>
// kernel: tpu_custom_call.1
$region0: #{tpu_custom_call.1}
  #allocation0 [shape = 'u32[]', space=smem, size = 0x4, offset = 0x4, fixed_abs, tag = 'smem constant byte address 0x4 - core index']
  #allocation1 [shape = 'u32[144,128]{1,0:T(1,128)}', space=vmem, size = 0x12000, scoped, tag = 'internal scratch']
  #allocation2 [shape = 'f32[16,16]{1,0:T(8,128)}', space=vmem, size = 0x2000, scoped, tag = 'scratch operand']
  #allocation3 [shape = 'f32[16,82]{1,0:T(8,128)}', space=vmem, size = 0x2000, scoped, tag = 'scratch operand']
  #allocation4 [shape = 'f32[16,290]{1,0:T(8,128)}', space=vmem, size = 0x6000, scoped, tag = 'scratch operand']
  #allocation5 [shape = 'f32[8,290]{1,0:T(8,128)}', space=vmem, size = 0x3000, scoped, tag = 'scratch operand']
  #allocation6 [shape = 'f32[144,64]{1,0:T(8,128)}', space=vmem, size = 0x12000, scoped, tag = 'scratch operand']
  #allocation7 [shape = 'f32[144,256]{1,0:T(8,128)}', space=vmem, size = 0x24000, scoped, tag = 'scratch operand']
  #allocation8 [shape = 'f32[72,256]{1,0:T(8,128)}', space=vmem, size = 0x12000, scoped, tag = 'scratch operand']
  %s0 = inlined_call_operand.vmem [shape: f32[2,16], index: 0, kind: input, shape index: {}]
  %s1 = inlined_call_operand.vmem [shape: f32[16,256], index: 1, kind: input, shape index: {}]
  %s2 = inlined_call_operand.vmem [shape: f32[1,256], index: 2, kind: input, shape index: {}]
  %s3 = inlined_call_operand.vmem [shape: f32[16,144], index: 3, kind: input, shape index: {}]
  %s4 = inlined_call_operand.vmem [shape: f32[8,144], index: 4, kind: input, shape index: {}]
  %s5 = inlined_call_operand.vmem [shape: f32[3,72], index: 5, kind: input, shape index: {}]
  %s6 = inlined_call_operand.vmem [shape: f32[3,1], index: 6, kind: input, shape index: {}]
  %s7 = inlined_call_operand.vmem [shape: f32[16,1], index: 7, kind: input, shape index: {}]
  %s8 = inlined_call_operand.vmem [shape: f32[16,1], index: 8, kind: input, shape index: {}]
  %s9 = inlined_call_operand.vmem [shape: f32[16,1], index: 9, kind: input, shape index: {}]
  %s10 = inlined_call_operand.vmem [shape: f32[16,1], index: 10, kind: input, shape index: {}]
  %s11 = inlined_call_operand.vmem [shape: f32[8,1], index: 11, kind: input, shape index: {}]
  %s12 = inlined_call_operand.vmem [shape: f32[8,1], index: 12, kind: input, shape index: {}]
  %s13 = inlined_call_operand.vmem [shape: f32[2,3,256], index: 13, kind: output, shape index: {}]
  %s14 = sld [smem:[#allocation0]]
  $region62: #{tpu_custom_call.1} parent=0
    _
  %s16 = ssub.s32 1, %s14
  %s17 = scalar_select 0, %s16, %s14
  // Predicated region
  $region2: #{tpu_custom_call.1} parent=0 // pred_check
    _
  $region3: #{tpu_custom_call.1} parent=0 // pred_check_branch
    %19 = sbr.rel (0) target = $region5
  $region4: #{tpu_custom_call.1} parent=0 // pred_region
    _
  $region5: #{tpu_custom_call.1} parent=0 // pred_fallthru
    _
  // Predicated region
  $region6: #{tpu_custom_call.1} parent=0 // pred_check
    _
  $region7: #{tpu_custom_call.1} parent=0 // pred_check_branch
    %21 = sbr.rel (0) target = $region9
  $region8: #{tpu_custom_call.1} parent=0 // pred_region
    _
  $region9: #{tpu_custom_call.1} parent=0 // pred_fallthru
    _
  // Predicated region
  $region10: #{tpu_custom_call.1} parent=0 // pred_check
    _
  $region11: #{tpu_custom_call.1} parent=0 // pred_check_branch
    %23 = sbr.rel (0) target = $region13
  $region12: #{tpu_custom_call.1} parent=0 // pred_region
    _
  $region13: #{tpu_custom_call.1} parent=0 // pred_fallthru
    _
  // Predicated region
  $region14: #{tpu_custom_call.1} parent=0 // pred_check
    _
  $region15: #{tpu_custom_call.1} parent=0 // pred_check_branch
    %25 = sbr.rel (0) target = $region17
  $region16: #{tpu_custom_call.1} parent=0 // pred_region
    _
  $region17: #{tpu_custom_call.1} parent=0 // pred_fallthru
    _
  // Predicated region
  $region18: #{tpu_custom_call.1} parent=0 // pred_check
    _
  $region19: #{tpu_custom_call.1} parent=0 // pred_check_branch
    %27 = sbr.rel (0) target = $region21
  $region20: #{tpu_custom_call.1} parent=0 // pred_region
    _
  $region21: #{tpu_custom_call.1} parent=0 // pred_fallthru
    _
  // Predicated region
  $region22: #{tpu_custom_call.1} parent=0 // pred_check
    _
  $region23: #{tpu_custom_call.1} parent=0 // pred_check_branch
    %29 = sbr.rel (0) target = $region25
  $region24: #{tpu_custom_call.1} parent=0 // pred_region
    _
  $region25: #{tpu_custom_call.1} parent=0 // pred_fallthru
    _
  // Predicated region
  $region26: #{tpu_custom_call.1} parent=0 // pred_check
    _
  $region27: #{tpu_custom_call.1} parent=0 // pred_check_branch
    %31 = sbr.rel (0) target = $region29
  $region28: #{tpu_custom_call.1} parent=0 // pred_region
    _
  $region29: #{tpu_custom_call.1} parent=0 // pred_fallthru
    _
  // Predicated region
  $region30: #{tpu_custom_call.1} parent=0 // pred_check
    _
  $region31: #{tpu_custom_call.1} parent=0 // pred_check_branch
    %33 = sbr.rel (0) target = $region33
  $region32: #{tpu_custom_call.1} parent=0 // pred_region
    _
  $region33: #{tpu_custom_call.1} parent=0 // pred_fallthru
    _
  // Predicated region
  $region34: #{tpu_custom_call.1} parent=0 // pred_check
    _
  $region35: #{tpu_custom_call.1} parent=0 // pred_check_branch
    %35 = sbr.rel (0) target = $region37
  $region36: #{tpu_custom_call.1} parent=0 // pred_region
    _
  $region37: #{tpu_custom_call.1} parent=0 // pred_fallthru
    _
  // Predicated region
  $region38: #{tpu_custom_call.1} parent=0 // pred_check
    _
  $region39: #{tpu_custom_call.1} parent=0 // pred_check_branch
    %37 = sbr.rel (0) target = $region41
  $region40: #{tpu_custom_call.1} parent=0 // pred_region
    _
  $region41: #{tpu_custom_call.1} parent=0 // pred_fallthru
    _
  // Predicated region
  $region42: #{tpu_custom_call.1} parent=0 // pred_check
    _
  $region43: #{tpu_custom_call.1} parent=0 // pred_check_branch
    %39 = sbr.rel (0) target = $region45
  $region44: #{tpu_custom_call.1} parent=0 // pred_region
    _
  $region45: #{tpu_custom_call.1} parent=0 // pred_fallthru
    _
  // Predicated region
  $region46: #{tpu_custom_call.1} parent=0 // pred_check
    _
  $region47: #{tpu_custom_call.1} parent=0 // pred_check_branch
    %41 = sbr.rel (0) target = $region49
  $region48: #{tpu_custom_call.1} parent=0 // pred_region
    _
  $region49: #{tpu_custom_call.1} parent=0 // pred_fallthru
    _
  // Predicated region
  $region50: #{tpu_custom_call.1} parent=0 // pred_check
    _
  $region51: #{tpu_custom_call.1} parent=0 // pred_check_branch
    %43 = sbr.rel (0) target = $region53
  $region52: #{tpu_custom_call.1} parent=0 // pred_region
    _
  $region53: #{tpu_custom_call.1} parent=0 // pred_fallthru
    _
  %vm44 = vcmask 670720
  %45 = vst.msk [vmem:[#allocation3] sm:$0xff] %vm44, 0.0
  %46 = vst.msk [vmem:[#allocation3 + $0x8] sm:$0xff] %vm44, 0.0
  %47 = vst [vmem:[#allocation4] sm:$0xff] 0.0
  %48 = vst [vmem:[#allocation4 + $0x8] sm:$0xff] 0.0
  %vm49 = vcmask 277504
  %50 = vst.msk [vmem:[#allocation4 + $0x10] sm:$0xff] %vm49, 0.0
  %51 = vst [vmem:[#allocation4 + $0x18] sm:$0xff] 0.0
  %52 = vst [vmem:[#allocation4 + $0x20] sm:$0xff] 0.0
  %53 = vst.msk [vmem:[#allocation4 + $0x28] sm:$0xff] %vm49, 0.0
  %54 = vst [vmem:[#allocation5] sm:$0xff] 0.0
  %55 = vst [vmem:[#allocation5 + $0x8] sm:$0xff] 0.0
  %56 = vst.msk [vmem:[#allocation5 + $0x10] sm:$0xff] %vm49, 0.0
  %v57 = vld [vmem:[%s3] sm:$0xff]
  %v58 = vld [vmem:[%s3 + $0x8] sm:$0xff]
  %v59 = vld [vmem:[%s3 + $0x10] sm:$0xff]
  %v60 = vld [vmem:[%s3 + $0x18] sm:$0xff]
  %v61 = vld [vmem:[%s4] sm:$0xff]
  %v62 = vld [vmem:[%s4 + $0x8] sm:$0xff]
  %v63 = vld [vmem:[%s5] sm:$0x7]
  %v64 = vld [vmem:[%s0] sm:$0x3]
  %v65 = vld [vmem:[%s1] sm:$0xff]
  %v66 = vld [vmem:[%s1 + $0x8] sm:$0xff]
  %v67 = vld [vmem:[%s1 + $0x10] sm:$0xff]
  %v68 = vld [vmem:[%s1 + $0x18] sm:$0xff]
  %v69 = vld [vmem:[%s2] sm:$0x3]
  %v71 = vlaneseq
  %v72 = vshrl.u32 %v71, 7
  %v73 = vsub.s32 0, %v72
  %v74 = vrot.slane %v69, %v73
  %v75 = vlaneseq
  %v76 = vshrl.u32 %v75, 7
  %v77 = vsub.s32 1, %v76
  %v78 = vrot.slane %v69, %v77
  %vm81 = vcmask 130048
  %v83 = vsel %vm81, %v64, 0
  %85 = vmatprep.subr.mxu0 %v66
  %86 = vmatpush1.msra.mxu0 %v65
  %87 = vmatprep.subr.mxu0 %v68
  %88 = vmatpush1.msra.mxu0 %v67
  %89 = vmatprep.subr.mxu0 0.0
  %90 = vmatpush1.msra.mxu0 0.0
  %91 = vmatprep.subr.mxu0 0.0
  %92 = vmatpush1.msra.mxu0 0.0
  %93 = vmatprep.subr.mxu0 0.0
  %94 = vmatpush1.msra.mxu0 0.0
  %95 = vmatprep.subr.mxu0 0.0
  %96 = vmatpush1.msra.mxu0 0.0
  %97 = vmatprep.subr.mxu0 0.0
  %98 = vmatpush1.msra.mxu0 0.0
  %99 = vmatprep.subr.mxu0 0.0
  %100 = vmatpush1.msra.mxu0 0.0
  %101 = vmatprep.subr.mxu0 0.0
  %102 = vmatpush1.msra.mxu0 0.0
  %103 = vmatprep.subr.mxu0 0.0
  %104 = vmatpush1.msra.mxu0 0.0
  %105 = vmatprep.subr.mxu0 0.0
  %106 = vmatpush1.msra.mxu0 0.0
  %107 = vmatprep.subr.mxu0 0.0
  %108 = vmatpush1.msra.mxu0 0.0
  %109 = vmatprep.subr.mxu0 0.0
  %110 = vmatpush1.msra.mxu0 0.0
  %111 = vmatprep.subr.mxu0 0.0
  %112 = vmatpush1.msra.mxu0 0.0
  %113 = vmatprep.subr.mxu0 0.0
  %114 = vmatpush1.msra.mxu0 0.0
  %115 = vmatprep.subr.mxu0 0.0
  %116 = vmatpush1.msra.mxu0 0.0
  %117 = vmatprep.subr.mxu0 0.0
  %118 = vmatpush1.msra.mxu0 0.0
  %119 = vmatprep.subr.mxu0 0.0
  %120 = vmatpush1.msra.mxu0 0.0
  %121 = vmatprep.subr.mxu0 0.0
  %122 = vmatpush1.msra.mxu0 0.0
  %123 = vmatprep.subr.mxu0 0.0
  %124 = vmatpush1.msra.mxu0 0.0
  %125 = vmatprep.subr.mxu0 0.0
  %126 = vmatpush1.msra.mxu0 0.0
  %127 = vmatprep.subr.mxu0 0.0
  %128 = vmatpush1.msra.mxu0 0.0
  %129 = vmatprep.subr.mxu0 0.0
  %130 = vmatpush1.msra.mxu0 0.0
  %131 = vmatprep.subr.mxu0 0.0
  %132 = vmatpush1.msra.mxu0 0.0
  %133 = vmatprep.subr.mxu0 0.0
  %134 = vmatpush1.msra.mxu0 0.0
  %135 = vmatprep.subr.mxu0 0.0
  %136 = vmatpush1.msra.mxu0 0.0
  %137 = vmatprep.subr.mxu0 0.0
  %138 = vmatpush1.msra.mxu0 0.0
  %139 = vmatprep.subr.mxu0 0.0
  %140 = vmatpush1.msra.mxu0 0.0
  %141 = vmatprep.subr.mxu0 0.0
  %142 = vmatpush1.msra.mxu0 0.0
  %143 = vmatprep.subr.mxu0 0.0
  %144 = vmatpush1.msra.mxu0 0.0
  %145 = vmatprep.subr.mxu0 0.0
  %146 = vmatpush1.msra.mxu0 0.0
  %147 = vmatprep.subr.mxu0 0.0
  %148 = vmatpush1.msra.mxu0 0.0
  %149 = vmatprep.mubr.f32.mxu0 0.0
  %150 = vmatmul.mubr.f32.gmra.mrb[0].mxu0 %v83
  %v151 = vpop.f32.mrb[0].mxu0
  %v152 = vadd.f32 %v74, %v151
  %v153 = vpop.f32.mrb[0].mxu0
  %v154 = vadd.f32 %v78, %v153
  %155 = vdwg.mxu0
  %vm156 = vcmask 122880
  %157 = vst.msk [vmem:[#allocation2] sm:$0x1] %vm156, %v152
  %159 = vrot.lane.b32.xlu0 %v152, 112
  %v160 = vpop.permute.xlu0 %159
  %162 = vst.msk [vmem:[#allocation2 + $0x1] sm:$0x1] %vm156, %v160
  %163 = vrot.lane.b32.xlu0 %v152, 96
  %v164 = vpop.permute.xlu0 %163
  %166 = vst.msk [vmem:[#allocation2 + $0x2] sm:$0x1] %vm156, %v164
  %167 = vrot.lane.b32.xlu0 %v152, 80
  %v168 = vpop.permute.xlu0 %167
  %170 = vst.msk [vmem:[#allocation2 + $0x3] sm:$0x1] %vm156, %v168
  %171 = vrot.lane.b32.xlu0 %v152, 64
  %v172 = vpop.permute.xlu0 %171
  %174 = vst.msk [vmem:[#allocation2 + $0x4] sm:$0x1] %vm156, %v172
  %175 = vrot.lane.b32.xlu0 %v152, 48
  %v176 = vpop.permute.xlu0 %175
  %178 = vst.msk [vmem:[#allocation2 + $0x5] sm:$0x1] %vm156, %v176
  %179 = vrot.lane.b32.xlu0 %v152, 32
  %v180 = vpop.permute.xlu0 %179
  %182 = vst.msk [vmem:[#allocation2 + $0x6] sm:$0x1] %vm156, %v180
  %183 = vrot.lane.b32.xlu0 %v152, 16
  %v184 = vpop.permute.xlu0 %183
  %186 = vst.msk [vmem:[#allocation2 + $0x7] sm:$0x1] %vm156, %v184
  %187 = vst.msk [vmem:[#allocation2 + $0x8] sm:$0x1] %vm156, %v154
  %189 = vrot.lane.b32.xlu0 %v154, 112
  %v190 = vpop.permute.xlu0 %189
  %192 = vst.msk [vmem:[#allocation2 + $0x9] sm:$0x1] %vm156, %v190
  %193 = vrot.lane.b32.xlu0 %v154, 96
  %v194 = vpop.permute.xlu0 %193
  %196 = vst.msk [vmem:[#allocation2 + $0xa] sm:$0x1] %vm156, %v194
  %197 = vrot.lane.b32.xlu0 %v154, 80
  %v198 = vpop.permute.xlu0 %197
  %200 = vst.msk [vmem:[#allocation2 + $0xb] sm:$0x1] %vm156, %v198
  %201 = vrot.lane.b32.xlu0 %v154, 64
  %v202 = vpop.permute.xlu0 %201
  %204 = vst.msk [vmem:[#allocation2 + $0xc] sm:$0x1] %vm156, %v202
  %205 = vrot.lane.b32.xlu0 %v154, 48
  %v206 = vpop.permute.xlu0 %205
  %208 = vst.msk [vmem:[#allocation2 + $0xd] sm:$0x1] %vm156, %v206
  %209 = vrot.lane.b32.xlu0 %v154, 32
  %v210 = vpop.permute.xlu0 %209
  %212 = vst.msk [vmem:[#allocation2 + $0xe] sm:$0x1] %vm156, %v210
  %213 = vrot.lane.b32.xlu0 %v154, 16
  %v214 = vpop.permute.xlu0 %213
  %216 = vst.msk [vmem:[#allocation2 + $0xf] sm:$0x1] %vm156, %v214
  %v217 = vld [vmem:[#allocation2] sm:$0xff]
  %v218 = vld [vmem:[#allocation2 + $0x8] sm:$0xff]
  %vm219 = vcmask 123905
  %220 = vst.msk [vmem:[#allocation2 - $0x1] sm:$0x2] %vm219, %v152
  %221 = vst.msk [vmem:[#allocation2] sm:$0x2] %vm219, %v160
  %222 = vst.msk [vmem:[#allocation2 + $0x1] sm:$0x2] %vm219, %v164
  %223 = vst.msk [vmem:[#allocation2 + $0x2] sm:$0x2] %vm219, %v168
  %224 = vst.msk [vmem:[#allocation2 + $0x3] sm:$0x2] %vm219, %v172
  %225 = vst.msk [vmem:[#allocation2 + $0x4] sm:$0x2] %vm219, %v176
  %226 = vst.msk [vmem:[#allocation2 + $0x5] sm:$0x2] %vm219, %v180
  %227 = vst.msk [vmem:[#allocation2 + $0x6] sm:$0x2] %vm219, %v184
  %228 = vst.msk [vmem:[#allocation2 + $0x7] sm:$0x2] %vm219, %v154
  %229 = vst.msk [vmem:[#allocation2 + $0x8] sm:$0x2] %vm219, %v190
  %230 = vst.msk [vmem:[#allocation2 + $0x9] sm:$0x2] %vm219, %v194
  %231 = vst.msk [vmem:[#allocation2 + $0xa] sm:$0x2] %vm219, %v198
  %232 = vst.msk [vmem:[#allocation2 + $0xb] sm:$0x2] %vm219, %v202
  %233 = vst.msk [vmem:[#allocation2 + $0xc] sm:$0x2] %vm219, %v206
  %234 = vst.msk [vmem:[#allocation2 + $0xd] sm:$0x2] %vm219, %v210
  %235 = vst.msk [vmem:[#allocation2 + $0xe] sm:$0x2] %vm219, %v214
  %v236 = vld [vmem:[#allocation2] sm:$0xff]
  %v237 = vld [vmem:[#allocation2 + $0x8] sm:$0xff]
  %v238 = vld [vmem:[%s7] sm:$0xff]
  %v239 = vld [vmem:[%s7 + $0x8] sm:$0xff]
  %v240 = vld [vmem:[%s8] sm:$0xff]
  %v241 = vld [vmem:[%s8 + $0x8] sm:$0xff]
  %v242 = vsel %vm81, %v217, 0.0
  %243 = vadd.xlane.f32.xlu0 %v242
  %v244 = vpop.xlane.xlu0 %243
  %v245 = vsel %vm81, %v218, 0.0
  %246 = vadd.xlane.f32.xlu0 %v245
  %v247 = vpop.xlane.xlu0 %246
  %v248 = vsel %vm81, %v236, 0.0
  %249 = vadd.xlane.f32.xlu0 %v248
  %v250 = vpop.xlane.xlu0 %249
  %v251 = vsel %vm81, %v237, 0.0
  %252 = vadd.xlane.f32.xlu0 %v251
  %v253 = vpop.xlane.xlu0 %252
  %v254 = vadd.f32 %v244, %v250
  %v255 = vadd.f32 %v247, %v253
  %v256 = vrcp.pop 32.0
  %v257 = vmul.f32 %v254, %v256
  %v258 = vmul.f32 %v255, %v256
  %v259 = vsub.f32 %v217, %v257
  %v260 = vsub.f32 %v218, %v258
  %v261 = vmul.f32 %v259, %v259
  %v262 = vmul.f32 %v260, %v260
  %v263 = vsel %vm81, %v261, 0.0
  %264 = vadd.xlane.f32.xlu0 %v263
  %v265 = vpop.xlane.xlu0 %264
  %v266 = vsel %vm81, %v262, 0.0
  %267 = vadd.xlane.f32.xlu0 %v266
  %v268 = vpop.xlane.xlu0 %267
  %v269 = vsub.f32 %v236, %v257
  %v270 = vsub.f32 %v237, %v258
  %v271 = vmul.f32 %v269, %v269
  %v272 = vmul.f32 %v270, %v270
  %v273 = vsel %vm81, %v271, 0.0
  %274 = vadd.xlane.f32.xlu0 %v273
  %v275 = vpop.xlane.xlu0 %274
  %v276 = vsel %vm81, %v272, 0.0
  %277 = vadd.xlane.f32.xlu0 %v276
  %v278 = vpop.xlane.xlu0 %277
  %v279 = vadd.f32 %v265, %v275
  %v280 = vadd.f32 %v268, %v278
  %v281 = vmul.f32 %v279, %v256
  %v282 = vmul.f32 %v280, %v256
  %v283 = vadd.f32 %v281, 1e-05
  %v284 = vadd.f32 %v282, 1e-05
  %v285 = vrsqrt.pop %v283
  %v286 = vrsqrt.pop %v284
  %v287 = vmul.f32 %v238, %v285
  %v288 = vmul.f32 %v239, %v286
  %v289 = vmul.f32 %v257, %v287
  %v290 = vmul.f32 %v258, %v288
  %v291 = vsub.f32 %v240, %v289
  %v292 = vsub.f32 %v241, %v290
  %294 = vset.pattern.permute.xlu0 0
  %295 = vperm.xlu0 %294, %v287
  %v296 = vpop.permute.xlu0 %295
  %299 = vset.pattern.permute.xlu0 0
  %300 = vperm.xlu0 %299, %v288
  %v301 = vpop.permute.xlu0 %300
  %v303 = vmul.f32 %v217, %v296
  %v304 = vmul.f32 %v218, %v301
  %306 = vset.pattern.permute.xlu0 0
  %307 = vperm.xlu0 %306, %v291
  %v308 = vpop.permute.xlu0 %307
  %311 = vset.pattern.permute.xlu0 0
  %312 = vperm.xlu0 %311, %v292
  %v313 = vpop.permute.xlu0 %312
  %v315 = vadd.f32 %v303, %v308
  %v316 = vadd.f32 %v304, %v313
  %v317 = vmul.f32 %v236, %v296
  %v318 = vmul.f32 %v237, %v301
  %v319 = vadd.f32 %v317, %v308
  %v320 = vadd.f32 %v318, %v313
  %v321 = vlaneseq
  %v322 = vshrl.u32 %v321, 7
  %v323 = vadd.s32 %v322, 8
  %v324 = vlaneseq
  %v325 = vand.u32 %v324, 127
  %v326 = vshra.s32 %v325, 3
  %v327 = vand.u32 %v325, 7
  %v328 = vshra.s32 %v326, 1
  %v329 = vshll.u32 %v328, 2
  %v330 = vshra.s32 %v327, 1
  %v331 = vor.u32 %v329, %v330
  %vm332 = vcmp.eq.s32.totalorder %v322, %v331
  %vm333 = vcmp.eq.s32.totalorder %v323, %v331
  %v334 = vsel %vm332, 1.0, 0.0
  %v335 = vsel %vm333, 1.0, 0.0
  %v337 = vsel %vm81, %v315, 0
  %v340 = vsel %vm81, %v316, 0
  %342 = vmatprep.subr.mxu0 0.0
  %343 = vmatpush1.msra.mxu0 %v334
  %344 = vmatprep.subr.mxu0 0.0
  %345 = vmatpush1.msra.mxu0 %v335
  %346 = vmatprep.subr.mxu0 0.0
  %347 = vmatpush1.msra.mxu0 0.0
  %348 = vmatprep.subr.mxu0 0.0
  %349 = vmatpush1.msra.mxu0 0.0
  %350 = vmatprep.subr.mxu0 0.0
  %351 = vmatpush1.msra.mxu0 0.0
  %352 = vmatprep.subr.mxu0 0.0
  %353 = vmatpush1.msra.mxu0 0.0
  %354 = vmatprep.subr.mxu0 0.0
  %355 = vmatpush1.msra.mxu0 0.0
  %356 = vmatprep.subr.mxu0 0.0
  %357 = vmatpush1.msra.mxu0 0.0
  %358 = vmatprep.subr.mxu0 0.0
  %359 = vmatpush1.msra.mxu0 0.0
  %360 = vmatprep.subr.mxu0 0.0
  %361 = vmatpush1.msra.mxu0 0.0
  %362 = vmatprep.subr.mxu0 0.0
  %363 = vmatpush1.msra.mxu0 0.0
  %364 = vmatprep.subr.mxu0 0.0
  %365 = vmatpush1.msra.mxu0 0.0
  %366 = vmatprep.subr.mxu0 0.0
  %367 = vmatpush1.msra.mxu0 0.0
  %368 = vmatprep.subr.mxu0 0.0
  %369 = vmatpush1.msra.mxu0 0.0
  %370 = vmatprep.subr.mxu0 0.0
  %371 = vmatpush1.msra.mxu0 0.0
  %372 = vmatprep.subr.mxu0 0.0
  %373 = vmatpush1.msra.mxu0 0.0
  %374 = vmatprep.subr.mxu0 0.0
  %375 = vmatpush1.msra.mxu0 0.0
  %376 = vmatprep.subr.mxu0 0.0
  %377 = vmatpush1.msra.mxu0 0.0
  %378 = vmatprep.subr.mxu0 0.0
  %379 = vmatpush1.msra.mxu0 0.0
  %380 = vmatprep.subr.mxu0 0.0
  %381 = vmatpush1.msra.mxu0 0.0
  %382 = vmatprep.subr.mxu0 0.0
  %383 = vmatpush1.msra.mxu0 0.0
  %384 = vmatprep.subr.mxu0 0.0
  %385 = vmatpush1.msra.mxu0 0.0
  %386 = vmatprep.subr.mxu0 0.0
  %387 = vmatpush1.msra.mxu0 0.0
  %388 = vmatprep.subr.mxu0 0.0
  %389 = vmatpush1.msra.mxu0 0.0
  %390 = vmatprep.subr.mxu0 0.0
  %391 = vmatpush1.msra.mxu0 0.0
  %392 = vmatprep.subr.mxu0 0.0
  %393 = vmatpush1.msra.mxu0 0.0
  %394 = vmatprep.subr.mxu0 0.0
  %395 = vmatpush1.msra.mxu0 0.0
  %396 = vmatprep.subr.mxu0 0.0
  %397 = vmatpush1.msra.mxu0 0.0
  %398 = vmatprep.subr.mxu0 0.0
  %399 = vmatpush1.msra.mxu0 0.0
  %400 = vmatprep.subr.mxu0 0.0
  %401 = vmatpush1.msra.mxu0 0.0
  %402 = vmatprep.subr.mxu0 0.0
  %403 = vmatpush1.msra.mxu0 0.0
  %404 = vmatprep.subr.mxu0 0.0
  %405 = vmatpush1.msra.mxu0 0.0
  %406 = vmatprep.mubr.f32.mxu0 0.0
  %407 = vmatmul.mubr.f32.gmra.mrb[0].mxu0 %v337
  %v408 = vpop.f32.mrb[0].mxu0
  %v409 = vadd.f32 0.0, %v408
  %v410 = vpop.f32.mrb[0].mxu0
  %411 = vmatprep.mubr.f32.mxu0 0.0
  %412 = vmatmul.mubr.f32.gmra.mrb[0].mxu0 %v340
  %v413 = vpop.f32.mrb[0].mxu0
  %v414 = vadd.f32 0.0, %v413
  %v415 = vpop.f32.mrb[0].mxu0
  %416 = vdwg.mxu0
  %v418 = vsel %vm81, %v319, 0
  %v421 = vsel %vm81, %v320, 0
  %423 = vmatprep.subr.mxu0 0.0
  %424 = vmatpush1.msra.mxu0 %v334
  %425 = vmatprep.subr.mxu0 0.0
  %426 = vmatpush1.msra.mxu0 %v335
  %427 = vmatprep.subr.mxu0 0.0
  %428 = vmatpush1.msra.mxu0 0.0
  %429 = vmatprep.subr.mxu0 0.0
  %430 = vmatpush1.msra.mxu0 0.0
  %431 = vmatprep.subr.mxu0 0.0
  %432 = vmatpush1.msra.mxu0 0.0
  %433 = vmatprep.subr.mxu0 0.0
  %434 = vmatpush1.msra.mxu0 0.0
  %435 = vmatprep.subr.mxu0 0.0
  %436 = vmatpush1.msra.mxu0 0.0
  %437 = vmatprep.subr.mxu0 0.0
  %438 = vmatpush1.msra.mxu0 0.0
  %439 = vmatprep.subr.mxu0 0.0
  %440 = vmatpush1.msra.mxu0 0.0
  %441 = vmatprep.subr.mxu0 0.0
  %442 = vmatpush1.msra.mxu0 0.0
  %443 = vmatprep.subr.mxu0 0.0
  %444 = vmatpush1.msra.mxu0 0.0
  %445 = vmatprep.subr.mxu0 0.0
  %446 = vmatpush1.msra.mxu0 0.0
  %447 = vmatprep.subr.mxu0 0.0
  %448 = vmatpush1.msra.mxu0 0.0
  %449 = vmatprep.subr.mxu0 0.0
  %450 = vmatpush1.msra.mxu0 0.0
  %451 = vmatprep.subr.mxu0 0.0
  %452 = vmatpush1.msra.mxu0 0.0
  %453 = vmatprep.subr.mxu0 0.0
  %454 = vmatpush1.msra.mxu0 0.0
  %455 = vmatprep.subr.mxu0 0.0
  %456 = vmatpush1.msra.mxu0 0.0
  %457 = vmatprep.subr.mxu0 0.0
  %458 = vmatpush1.msra.mxu0 0.0
  %459 = vmatprep.subr.mxu0 0.0
  %460 = vmatpush1.msra.mxu0 0.0
  %461 = vmatprep.subr.mxu0 0.0
  %462 = vmatpush1.msra.mxu0 0.0
  %463 = vmatprep.subr.mxu0 0.0
  %464 = vmatpush1.msra.mxu0 0.0
  %465 = vmatprep.subr.mxu0 0.0
  %466 = vmatpush1.msra.mxu0 0.0
  %467 = vmatprep.subr.mxu0 0.0
  %468 = vmatpush1.msra.mxu0 0.0
  %469 = vmatprep.subr.mxu0 0.0
  %470 = vmatpush1.msra.mxu0 0.0
  %471 = vmatprep.subr.mxu0 0.0
  %472 = vmatpush1.msra.mxu0 0.0
  %473 = vmatprep.subr.mxu0 0.0
  %474 = vmatpush1.msra.mxu0 0.0
  %475 = vmatprep.subr.mxu0 0.0
  %476 = vmatpush1.msra.mxu0 0.0
  %477 = vmatprep.subr.mxu0 0.0
  %478 = vmatpush1.msra.mxu0 0.0
  %479 = vmatprep.subr.mxu0 0.0
  %480 = vmatpush1.msra.mxu0 0.0
  %481 = vmatprep.subr.mxu0 0.0
  %482 = vmatpush1.msra.mxu0 0.0
  %483 = vmatprep.subr.mxu0 0.0
  %484 = vmatpush1.msra.mxu0 0.0
  %485 = vmatprep.subr.mxu0 0.0
  %486 = vmatpush1.msra.mxu0 0.0
  %487 = vmatprep.mubr.f32.mxu0 0.0
  %488 = vmatmul.mubr.f32.gmra.mrb[0].mxu0 %v418
  %v489 = vpop.f32.mrb[0].mxu0
  %v490 = vadd.f32 0.0, %v489
  %v491 = vpop.f32.mrb[0].mxu0
  %492 = vmatprep.mubr.f32.mxu0 0.0
  %493 = vmatmul.mubr.f32.gmra.mrb[0].mxu0 %v421
  %v494 = vpop.f32.mrb[0].mxu0
  %v495 = vadd.f32 0.0, %v494
  %v496 = vpop.f32.mrb[0].mxu0
  %497 = vdwg.mxu0
  %500 = vrot.lane.b32.xlu0 %v409, 9
  %v501 = vpop.permute.xlu0 %500
  %502 = vrot.lane.b32.xlu0 %v414, 9
  %v503 = vpop.permute.xlu0 %502
  %vm506 = vcmask 597064
  %507 = vst.msk [vmem:[#allocation3] sm:$0xff] %vm506, %v501
  %508 = vst.msk [vmem:[#allocation3 + $0x8] sm:$0xff] %vm506, %v503
  %vm509 = vcmp.ge.s32.totalorder %v327, 1
  %v510 = vsel %vm509, 1.0, 0.0
  %vm511 = vcmp.le.s32.totalorder %v327, 6
  %v512 = vsel %vm511, 1.0, 0.0
  %v513 = vld [vmem:[#allocation3] sm:$0xff]
  %v514 = vld [vmem:[#allocation3 + $0x8] sm:$0xff]
  %v515 = vmul.f32 %v513, %v510
  %v516 = vmul.f32 %v514, %v510
  %vm517 = vcmask 523264
  %518 = vst.msk [vmem:[#allocation6] sm:$0xff] %vm517, %v515
  %519 = vst.msk [vmem:[#allocation6 + $0x8] sm:$0xff] %vm517, %v516
  %v520 = vld [vmem:[#allocation3] sm:$0xff]
  %v521 = vld [vmem:[#allocation3 + $0x8] sm:$0xff]
  %524 = vrot.lane.b32.xlu0 %v520, 127
  %v525 = vpop.permute.xlu0 %524
  %526 = vrot.lane.b32.xlu0 %v521, 127
  %v527 = vpop.permute.xlu0 %526
  %530 = vst.msk [vmem:[#allocation6 + $0x10] sm:$0xff] %vm517, %v525
  %531 = vst.msk [vmem:[#allocation6 + $0x18] sm:$0xff] %vm517, %v527
  %v532 = vld [vmem:[#allocation3] sm:$0xff]
  %v533 = vld [vmem:[#allocation3 + $0x8] sm:$0xff]
  %535 = vrot.lane.b32.xlu0 %v512, 2
  %v536 = vpop.permute.xlu0 %535
  %v538 = vmul.f32 %v532, %v536
  %v539 = vmul.f32 %v533, %v536
  %542 = vrot.lane.b32.xlu0 %v538, 126
  %v543 = vpop.permute.xlu0 %542
  %544 = vrot.lane.b32.xlu0 %v539, 126
  %v545 = vpop.permute.xlu0 %544
  %548 = vst.msk [vmem:[#allocation6 + $0x20] sm:$0xff] %vm517, %v543
  %549 = vst.msk [vmem:[#allocation6 + $0x28] sm:$0xff] %vm517, %v545
  %v550 = vld [vmem:[#allocation3] sm:$0xff]
  %v551 = vld [vmem:[#allocation3 + $0x8] sm:$0xff]
  %553 = vrot.lane.b32.xlu0 %v510, 8
  %v554 = vpop.permute.xlu0 %553
  %v556 = vmul.f32 %v550, %v554
  %v557 = vmul.f32 %v551, %v554
  %560 = vrot.lane.b32.xlu0 %v556, 120
  %v561 = vpop.permute.xlu0 %560
  %562 = vrot.lane.b32.xlu0 %v557, 120
  %v563 = vpop.permute.xlu0 %562
  %566 = vst.msk [vmem:[#allocation6 + $0x30] sm:$0xff] %vm517, %v561
  %567 = vst.msk [vmem:[#allocation6 + $0x38] sm:$0xff] %vm517, %v563
  %v568 = vld [vmem:[#allocation3] sm:$0xff]
  %v569 = vld [vmem:[#allocation3 + $0x8] sm:$0xff]
  %572 = vrot.lane.b32.xlu0 %v568, 119
  %v573 = vpop.permute.xlu0 %572
  %574 = vrot.lane.b32.xlu0 %v569, 119
  %v575 = vpop.permute.xlu0 %574
  %578 = vst.msk [vmem:[#allocation6 + $0x40] sm:$0xff] %vm517, %v573
  %579 = vst.msk [vmem:[#allocation6 + $0x48] sm:$0xff] %vm517, %v575
  %v580 = vld [vmem:[#allocation3] sm:$0xff]
  %v581 = vld [vmem:[#allocation3 + $0x8] sm:$0xff]
  %582 = vrot.lane.b32.xlu0 %v512, 10
  %v583 = vpop.permute.xlu0 %582
  %v585 = vmul.f32 %v580, %v583
  %v586 = vmul.f32 %v581, %v583
  %589 = vrot.lane.b32.xlu0 %v585, 118
  %v590 = vpop.permute.xlu0 %589
  %591 = vrot.lane.b32.xlu0 %v586, 118
  %v592 = vpop.permute.xlu0 %591
  %595 = vst.msk [vmem:[#allocation6 + $0x50] sm:$0xff] %vm517, %v590
  %596 = vst.msk [vmem:[#allocation6 + $0x58] sm:$0xff] %vm517, %v592
  %v597 = vld [vmem:[#allocation3] sm:$0xff]
  %v598 = vld [vmem:[#allocation3 + $0x8] sm:$0xff]
  %599 = vrot.lane.b32.xlu0 %v510, 16
  %v600 = vpop.permute.xlu0 %599
  %v602 = vmul.f32 %v597, %v600
  %v603 = vmul.f32 %v598, %v600
  %606 = vrot.lane.b32.xlu0 %v602, 112
  %v607 = vpop.permute.xlu0 %606
  %608 = vrot.lane.b32.xlu0 %v603, 112
  %v609 = vpop.permute.xlu0 %608
  %612 = vst.msk [vmem:[#allocation6 + $0x60] sm:$0xff] %vm517, %v607
  %613 = vst.msk [vmem:[#allocation6 + $0x68] sm:$0xff] %vm517, %v609
  %v614 = vld [vmem:[#allocation3] sm:$0xff]
  %v615 = vld [vmem:[#allocation3 + $0x8] sm:$0xff]
  %618 = vrot.lane.b32.xlu0 %v614, 111
  %v619 = vpop.permute.xlu0 %618
  %620 = vrot.lane.b32.xlu0 %v615, 111
  %v621 = vpop.permute.xlu0 %620
  %624 = vst.msk [vmem:[#allocation6 + $0x70] sm:$0xff] %vm517, %v619
  %625 = vst.msk [vmem:[#allocation6 + $0x78] sm:$0xff] %vm517, %v621
  %v626 = vld [vmem:[#allocation3] sm:$0xff]
  %v627 = vld [vmem:[#allocation3 + $0x8] sm:$0xff]
  %628 = vrot.lane.b32.xlu0 %v512, 18
  %v629 = vpop.permute.xlu0 %628
  %v631 = vmul.f32 %v626, %v629
  %v632 = vmul.f32 %v627, %v629
  %635 = vrot.lane.b32.xlu0 %v631, 110
  %v636 = vpop.permute.xlu0 %635
  %637 = vrot.lane.b32.xlu0 %v632, 110
  %v638 = vpop.permute.xlu0 %637
  %641 = vst.msk [vmem:[#allocation6 + $0x80] sm:$0xff] %vm517, %v636
  %642 = vst.msk [vmem:[#allocation6 + $0x88] sm:$0xff] %vm517, %v638
  %v643 = vld [vmem:[#allocation6] sm:$0xff]
  %v644 = vld [vmem:[#allocation6 + $0x8] sm:$0xff]
  %v645 = vld [vmem:[#allocation6 + $0x10] sm:$0xff]
  %v646 = vld [vmem:[#allocation6 + $0x18] sm:$0xff]
  %v647 = vld [vmem:[#allocation6 + $0x20] sm:$0xff]
  %v648 = vld [vmem:[#allocation6 + $0x28] sm:$0xff]
  %v649 = vld [vmem:[#allocation6 + $0x30] sm:$0xff]
  %v650 = vld [vmem:[#allocation6 + $0x38] sm:$0xff]
  %v651 = vld [vmem:[#allocation6 + $0x40] sm:$0xff]
  %v652 = vld [vmem:[#allocation6 + $0x48] sm:$0xff]
  %v653 = vld [vmem:[#allocation6 + $0x50] sm:$0xff]
  %v654 = vld [vmem:[#allocation6 + $0x58] sm:$0xff]
  %v655 = vld [vmem:[#allocation6 + $0x60] sm:$0xff]
  %v656 = vld [vmem:[#allocation6 + $0x68] sm:$0xff]
  %v657 = vld [vmem:[#allocation6 + $0x70] sm:$0xff]
  %v658 = vld [vmem:[#allocation6 + $0x78] sm:$0xff]
  %v659 = vld [vmem:[#allocation6 + $0x80] sm:$0xff]
  %v660 = vld [vmem:[#allocation6 + $0x88] sm:$0xff]
  %v662 = vsel %vm81, %v58, 0
  %v665 = vsel %vm81, %v60, 0
  %667 = vmatprep.subr.mxu0 0.0
  %668 = vmatpush1.msra.mxu0 %v643
  %669 = vmatprep.subr.mxu0 0.0
  %670 = vmatpush1.msra.mxu0 %v644
  %671 = vmatprep.subr.mxu0 0.0
  %672 = vmatpush1.msra.mxu0 %v645
  %673 = vmatprep.subr.mxu0 0.0
  %674 = vmatpush1.msra.mxu0 %v646
  %675 = vmatprep.subr.mxu0 0.0
  %676 = vmatpush1.msra.mxu0 %v647
  %677 = vmatprep.subr.mxu0 0.0
  %678 = vmatpush1.msra.mxu0 %v648
  %679 = vmatprep.subr.mxu0 0.0
  %680 = vmatpush1.msra.mxu0 %v649
  %681 = vmatprep.subr.mxu0 0.0
  %682 = vmatpush1.msra.mxu0 %v650
  %683 = vmatprep.subr.mxu0 0.0
  %684 = vmatpush1.msra.mxu0 %v651
  %685 = vmatprep.subr.mxu0 0.0
  %686 = vmatpush1.msra.mxu0 %v652
  %687 = vmatprep.subr.mxu0 0.0
  %688 = vmatpush1.msra.mxu0 %v653
  %689 = vmatprep.subr.mxu0 0.0
  %690 = vmatpush1.msra.mxu0 %v654
  %691 = vmatprep.subr.mxu0 0.0
  %692 = vmatpush1.msra.mxu0 %v655
  %693 = vmatprep.subr.mxu0 0.0
  %694 = vmatpush1.msra.mxu0 %v656
  %695 = vmatprep.subr.mxu0 0.0
  %696 = vmatpush1.msra.mxu0 %v657
  %697 = vmatprep.subr.mxu0 0.0
  %698 = vmatpush1.msra.mxu0 %v658
  %699 = vmatprep.subr.mxu0 0.0
  %700 = vmatpush1.msra.mxu0 %v659
  %701 = vmatprep.subr.mxu0 0.0
  %702 = vmatpush1.msra.mxu0 %v660
  %703 = vmatprep.subr.mxu0 0.0
  %704 = vmatpush1.msra.mxu0 0.0
  %705 = vmatprep.subr.mxu0 0.0
  %706 = vmatpush1.msra.mxu0 0.0
  %707 = vmatprep.subr.mxu0 0.0
  %708 = vmatpush1.msra.mxu0 0.0
  %709 = vmatprep.subr.mxu0 0.0
  %710 = vmatpush1.msra.mxu0 0.0
  %711 = vmatprep.subr.mxu0 0.0
  %712 = vmatpush1.msra.mxu0 0.0
  %713 = vmatprep.subr.mxu0 0.0
  %714 = vmatpush1.msra.mxu0 0.0
  %715 = vmatprep.subr.mxu0 0.0
  %716 = vmatpush1.msra.mxu0 0.0
  %717 = vmatprep.subr.mxu0 0.0
  %718 = vmatpush1.msra.mxu0 0.0
  %719 = vmatprep.subr.mxu0 0.0
  %720 = vmatpush1.msra.mxu0 0.0
  %721 = vmatprep.subr.mxu0 0.0
  %722 = vmatpush1.msra.mxu0 0.0
  %723 = vmatprep.subr.mxu0 0.0
  %724 = vmatpush1.msra.mxu0 0.0
  %725 = vmatprep.subr.mxu0 0.0
  %726 = vmatpush1.msra.mxu0 0.0
  %727 = vmatprep.subr.mxu0 0.0
  %728 = vmatpush1.msra.mxu0 0.0
  %729 = vmatprep.subr.mxu0 0.0
  %730 = vmatpush1.msra.mxu0 0.0
  %731 = vmatprep.mubr.f32.mxu0 %v662
  %732 = vmatmul.mubr.f32.gmra.mrb[0].mxu0 %v57
  %v733 = vpop.f32.mrb[0].mxu0
  %v734 = vadd.f32 0.0, %v733
  %v735 = vpop.f32.mrb[0].mxu0
  %736 = vmatprep.mubr.f32.mxu0 %v665
  %737 = vmatmul.mubr.f32.gmra.mrb[0].mxu0 %v59
  %v738 = vpop.f32.mrb[0].mxu0
  %v739 = vadd.f32 0.0, %v738
  %v740 = vpop.f32.mrb[0].mxu0
  %741 = vdwg.mxu0
  %744 = vrot.lane.b32.xlu0 %v490, 9
  %v745 = vpop.permute.xlu0 %744
  %746 = vrot.lane.b32.xlu0 %v495, 9
  %v747 = vpop.permute.xlu0 %746
  %750 = vst.msk [vmem:[#allocation3] sm:$0xff] %vm506, %v745
  %751 = vst.msk [vmem:[#allocation3 + $0x8] sm:$0xff] %vm506, %v747
  %v752 = vld [vmem:[#allocation3] sm:$0xff]
  %v753 = vld [vmem:[#allocation3 + $0x8] sm:$0xff]
  %v754 = vmul.f32 %v752, %v510
  %v755 = vmul.f32 %v753, %v510
  %756 = vst.msk [vmem:[#allocation6] sm:$0xff] %vm517, %v754
  %757 = vst.msk [vmem:[#allocation6 + $0x8] sm:$0xff] %vm517, %v755
  %v758 = vld [vmem:[#allocation3] sm:$0xff]
  %v759 = vld [vmem:[#allocation3 + $0x8] sm:$0xff]
  %762 = vrot.lane.b32.xlu0 %v758, 127
  %v763 = vpop.permute.xlu0 %762
  %764 = vrot.lane.b32.xlu0 %v759, 127
  %v765 = vpop.permute.xlu0 %764
  %768 = vst.msk [vmem:[#allocation6 + $0x10] sm:$0xff] %vm517, %v763
  %769 = vst.msk [vmem:[#allocation6 + $0x18] sm:$0xff] %vm517, %v765
  %v770 = vld [vmem:[#allocation3] sm:$0xff]
  %v771 = vld [vmem:[#allocation3 + $0x8] sm:$0xff]
  %v772 = vmul.f32 %v770, %v536
  %v773 = vmul.f32 %v771, %v536
  %776 = vrot.lane.b32.xlu0 %v772, 126
  %v777 = vpop.permute.xlu0 %776
  %778 = vrot.lane.b32.xlu0 %v773, 126
  %v779 = vpop.permute.xlu0 %778
  %782 = vst.msk [vmem:[#allocation6 + $0x20] sm:$0xff] %vm517, %v777
  %783 = vst.msk [vmem:[#allocation6 + $0x28] sm:$0xff] %vm517, %v779
  %v784 = vld [vmem:[#allocation3] sm:$0xff]
  %v785 = vld [vmem:[#allocation3 + $0x8] sm:$0xff]
  %v786 = vmul.f32 %v784, %v554
  %v787 = vmul.f32 %v785, %v554
  %790 = vrot.lane.b32.xlu0 %v786, 120
  %v791 = vpop.permute.xlu0 %790
  %792 = vrot.lane.b32.xlu0 %v787, 120
  %v793 = vpop.permute.xlu0 %792
  %796 = vst.msk [vmem:[#allocation6 + $0x30] sm:$0xff] %vm517, %v791
  %797 = vst.msk [vmem:[#allocation6 + $0x38] sm:$0xff] %vm517, %v793
  %v798 = vld [vmem:[#allocation3] sm:$0xff]
  %v799 = vld [vmem:[#allocation3 + $0x8] sm:$0xff]
  %802 = vrot.lane.b32.xlu0 %v798, 119
  %v803 = vpop.permute.xlu0 %802
  %804 = vrot.lane.b32.xlu0 %v799, 119
  %v805 = vpop.permute.xlu0 %804
  %808 = vst.msk [vmem:[#allocation6 + $0x40] sm:$0xff] %vm517, %v803
  %809 = vst.msk [vmem:[#allocation6 + $0x48] sm:$0xff] %vm517, %v805
  %v810 = vld [vmem:[#allocation3] sm:$0xff]
  %v811 = vld [vmem:[#allocation3 + $0x8] sm:$0xff]
  %v812 = vmul.f32 %v810, %v583
  %v813 = vmul.f32 %v811, %v583
  %816 = vrot.lane.b32.xlu0 %v812, 118
  %v817 = vpop.permute.xlu0 %816
  %818 = vrot.lane.b32.xlu0 %v813, 118
  %v819 = vpop.permute.xlu0 %818
  %822 = vst.msk [vmem:[#allocation6 + $0x50] sm:$0xff] %vm517, %v817
  %823 = vst.msk [vmem:[#allocation6 + $0x58] sm:$0xff] %vm517, %v819
  %v824 = vld [vmem:[#allocation3] sm:$0xff]
  %v825 = vld [vmem:[#allocation3 + $0x8] sm:$0xff]
  %v826 = vmul.f32 %v824, %v600
  %v827 = vmul.f32 %v825, %v600
  %830 = vrot.lane.b32.xlu0 %v826, 112
  %v831 = vpop.permute.xlu0 %830
  %832 = vrot.lane.b32.xlu0 %v827, 112
  %v833 = vpop.permute.xlu0 %832
  %836 = vst.msk [vmem:[#allocation6 + $0x60] sm:$0xff] %vm517, %v831
  %837 = vst.msk [vmem:[#allocation6 + $0x68] sm:$0xff] %vm517, %v833
  %v838 = vld [vmem:[#allocation3] sm:$0xff]
  %v839 = vld [vmem:[#allocation3 + $0x8] sm:$0xff]
  %842 = vrot.lane.b32.xlu0 %v838, 111
  %v843 = vpop.permute.xlu0 %842
  %844 = vrot.lane.b32.xlu0 %v839, 111
  %v845 = vpop.permute.xlu0 %844
  %848 = vst.msk [vmem:[#allocation6 + $0x70] sm:$0xff] %vm517, %v843
  %849 = vst.msk [vmem:[#allocation6 + $0x78] sm:$0xff] %vm517, %v845
  %v850 = vld [vmem:[#allocation3] sm:$0xff]
  %v851 = vld [vmem:[#allocation3 + $0x8] sm:$0xff]
  %v852 = vmul.f32 %v850, %v629
  %v853 = vmul.f32 %v851, %v629
  %856 = vrot.lane.b32.xlu0 %v852, 110
  %v857 = vpop.permute.xlu0 %856
  %858 = vrot.lane.b32.xlu0 %v853, 110
  %v859 = vpop.permute.xlu0 %858
  %862 = vst.msk [vmem:[#allocation6 + $0x80] sm:$0xff] %vm517, %v857
  %863 = vst.msk [vmem:[#allocation6 + $0x88] sm:$0xff] %vm517, %v859
  %v864 = vld [vmem:[#allocation6] sm:$0xff]
  %v865 = vld [vmem:[#allocation6 + $0x8] sm:$0xff]
  %v866 = vld [vmem:[#allocation6 + $0x10] sm:$0xff]
  %v867 = vld [vmem:[#allocation6 + $0x18] sm:$0xff]
  %v868 = vld [vmem:[#allocation6 + $0x20] sm:$0xff]
  %v869 = vld [vmem:[#allocation6 + $0x28] sm:$0xff]
  %v870 = vld [vmem:[#allocation6 + $0x30] sm:$0xff]
  %v871 = vld [vmem:[#allocation6 + $0x38] sm:$0xff]
  %v872 = vld [vmem:[#allocation6 + $0x40] sm:$0xff]
  %v873 = vld [vmem:[#allocation6 + $0x48] sm:$0xff]
  %v874 = vld [vmem:[#allocation6 + $0x50] sm:$0xff]
  %v875 = vld [vmem:[#allocation6 + $0x58] sm:$0xff]
  %v876 = vld [vmem:[#allocation6 + $0x60] sm:$0xff]
  %v877 = vld [vmem:[#allocation6 + $0x68] sm:$0xff]
  %v878 = vld [vmem:[#allocation6 + $0x70] sm:$0xff]
  %v879 = vld [vmem:[#allocation6 + $0x78] sm:$0xff]
  %v880 = vld [vmem:[#allocation6 + $0x80] sm:$0xff]
  %v881 = vld [vmem:[#allocation6 + $0x88] sm:$0xff]
  %882 = vmatprep.subr.mxu0 0.0
  %883 = vmatpush1.msra.mxu0 %v864
  %884 = vmatprep.subr.mxu0 0.0
  %885 = vmatpush1.msra.mxu0 %v865
  %886 = vmatprep.subr.mxu0 0.0
  %887 = vmatpush1.msra.mxu0 %v866
  %888 = vmatprep.subr.mxu0 0.0
  %889 = vmatpush1.msra.mxu0 %v867
  %890 = vmatprep.subr.mxu0 0.0
  %891 = vmatpush1.msra.mxu0 %v868
  %892 = vmatprep.subr.mxu0 0.0
  %893 = vmatpush1.msra.mxu0 %v869
  %894 = vmatprep.subr.mxu0 0.0
  %895 = vmatpush1.msra.mxu0 %v870
  %896 = vmatprep.subr.mxu0 0.0
  %897 = vmatpush1.msra.mxu0 %v871
  %898 = vmatprep.subr.mxu0 0.0
  %899 = vmatpush1.msra.mxu0 %v872
  %900 = vmatprep.subr.mxu0 0.0
  %901 = vmatpush1.msra.mxu0 %v873
  %902 = vmatprep.subr.mxu0 0.0
  %903 = vmatpush1.msra.mxu0 %v874
  %904 = vmatprep.subr.mxu0 0.0
  %905 = vmatpush1.msra.mxu0 %v875
  %906 = vmatprep.subr.mxu0 0.0
  %907 = vmatpush1.msra.mxu0 %v876
  %908 = vmatprep.subr.mxu0 0.0
  %909 = vmatpush1.msra.mxu0 %v877
  %910 = vmatprep.subr.mxu0 0.0
  %911 = vmatpush1.msra.mxu0 %v878
  %912 = vmatprep.subr.mxu0 0.0
  %913 = vmatpush1.msra.mxu0 %v879
  %914 = vmatprep.subr.mxu0 0.0
  %915 = vmatpush1.msra.mxu0 %v880
  %916 = vmatprep.subr.mxu0 0.0
  %917 = vmatpush1.msra.mxu0 %v881
  %918 = vmatprep.subr.mxu0 0.0
  %919 = vmatpush1.msra.mxu0 0.0
  %920 = vmatprep.subr.mxu0 0.0
  %921 = vmatpush1.msra.mxu0 0.0
  %922 = vmatprep.subr.mxu0 0.0
  %923 = vmatpush1.msra.mxu0 0.0
  %924 = vmatprep.subr.mxu0 0.0
  %925 = vmatpush1.msra.mxu0 0.0
  %926 = vmatprep.subr.mxu0 0.0
  %927 = vmatpush1.msra.mxu0 0.0
  %928 = vmatprep.subr.mxu0 0.0
  %929 = vmatpush1.msra.mxu0 0.0
  %930 = vmatprep.subr.mxu0 0.0
  %931 = vmatpush1.msra.mxu0 0.0
  %932 = vmatprep.subr.mxu0 0.0
  %933 = vmatpush1.msra.mxu0 0.0
  %934 = vmatprep.subr.mxu0 0.0
  %935 = vmatpush1.msra.mxu0 0.0
  %936 = vmatprep.subr.mxu0 0.0
  %937 = vmatpush1.msra.mxu0 0.0
  %938 = vmatprep.subr.mxu0 0.0
  %939 = vmatpush1.msra.mxu0 0.0
  %940 = vmatprep.subr.mxu0 0.0
  %941 = vmatpush1.msra.mxu0 0.0
  %942 = vmatprep.subr.mxu0 0.0
  %943 = vmatpush1.msra.mxu0 0.0
  %944 = vmatprep.subr.mxu0 0.0
  %945 = vmatpush1.msra.mxu0 0.0
  %946 = vmatprep.mubr.f32.mxu0 %v662
  %947 = vmatmul.mubr.f32.gmra.mrb[0].mxu0 %v57
  %v948 = vpop.f32.mrb[0].mxu0
  %v949 = vadd.f32 0.0, %v948
  %v950 = vpop.f32.mrb[0].mxu0
  %951 = vmatprep.mubr.f32.mxu0 %v665
  %952 = vmatmul.mubr.f32.gmra.mrb[0].mxu0 %v59
  %v953 = vpop.f32.mrb[0].mxu0
  %v954 = vadd.f32 0.0, %v953
  %v955 = vpop.f32.mrb[0].mxu0
  %956 = vdwg.mxu0
  %v957 = vld [vmem:[%s9] sm:$0xff]
  %v958 = vld [vmem:[%s9 + $0x8] sm:$0xff]
  %v959 = vld [vmem:[%s10] sm:$0xff]
  %v960 = vld [vmem:[%s10 + $0x8] sm:$0xff]
  %v961 = vsel %vm517, %v734, 0.0
  %962 = vadd.xlane.f32.xlu0 %v961
  %v963 = vpop.xlane.xlu0 %962
  %v964 = vsel %vm517, %v739, 0.0
  %965 = vadd.xlane.f32.xlu0 %v964
  %v966 = vpop.xlane.xlu0 %965
  %v967 = vsel %vm517, %v949, 0.0
  %968 = vadd.xlane.f32.xlu0 %v967
  %v969 = vpop.xlane.xlu0 %968
  %v970 = vsel %vm517, %v954, 0.0
  %971 = vadd.xlane.f32.xlu0 %v970
  %v972 = vpop.xlane.xlu0 %971
  %v973 = vadd.f32 %v963, %v969
  %v974 = vadd.f32 %v966, %v972
  %v975 = vrcp.pop 128.0
  %v976 = vmul.f32 %v973, %v975
  %v977 = vmul.f32 %v974, %v975
  %v978 = vsub.f32 %v734, %v976
  %v979 = vsub.f32 %v739, %v977
  %v980 = vmul.f32 %v978, %v978
  %v981 = vmul.f32 %v979, %v979
  %v982 = vsel %vm517, %v980, 0.0
  %983 = vadd.xlane.f32.xlu0 %v982
  %v984 = vpop.xlane.xlu0 %983
  %v985 = vsel %vm517, %v981, 0.0
  %986 = vadd.xlane.f32.xlu0 %v985
  %v987 = vpop.xlane.xlu0 %986
  %v988 = vsub.f32 %v949, %v976
  %v989 = vsub.f32 %v954, %v977
  %v990 = vmul.f32 %v988, %v988
  %v991 = vmul.f32 %v989, %v989
  %v992 = vsel %vm517, %v990, 0.0
  %993 = vadd.xlane.f32.xlu0 %v992
  %v994 = vpop.xlane.xlu0 %993
  %v995 = vsel %vm517, %v991, 0.0
  %996 = vadd.xlane.f32.xlu0 %v995
  %v997 = vpop.xlane.xlu0 %996
  %v998 = vadd.f32 %v984, %v994
  %v999 = vadd.f32 %v987, %v997
  %v1000 = vmul.f32 %v998, %v975
  %v1001 = vmul.f32 %v999, %v975
  %v1002 = vadd.f32 %v1000, 1e-05
  %v1003 = vadd.f32 %v1001, 1e-05
  %v1004 = vrsqrt.pop %v1002
  %v1005 = vrsqrt.pop %v1003
  %v1006 = vmul.f32 %v957, %v1004
  %v1007 = vmul.f32 %v958, %v1005
  %v1008 = vmul.f32 %v976, %v1006
  %v1009 = vmul.f32 %v977, %v1007
  %v1010 = vsub.f32 %v959, %v1008
  %v1011 = vsub.f32 %v960, %v1009
  %1013 = vset.pattern.permute.xlu0 0
  %1014 = vperm.xlu0 %1013, %v1006
  %v1015 = vpop.permute.xlu0 %1014
  %1018 = vset.pattern.permute.xlu0 0
  %1019 = vperm.xlu0 %1018, %v1007
  %v1020 = vpop.permute.xlu0 %1019
  %v1022 = vmul.f32 %v734, %v1015
  %v1023 = vmul.f32 %v739, %v1020
  %1025 = vset.pattern.permute.xlu0 0
  %1026 = vperm.xlu0 %1025, %v1010
  %v1027 = vpop.permute.xlu0 %1026
  %1030 = vset.pattern.permute.xlu0 0
  %1031 = vperm.xlu0 %1030, %v1011
  %v1032 = vpop.permute.xlu0 %1031
  %v1034 = vadd.f32 %v1022, %v1027
  %v1035 = vadd.f32 %v1023, %v1032
  %vm1036 = vcmp.ge.f32.partialorder %v1034, 0.0
  %vm1037 = vcmp.ge.f32.partialorder %v1035, 0.0
  %v1038 = vmul.f32 %v1034, 0.2
  %v1039 = vmul.f32 %v1035, 0.2
  %v1040 = vsel %vm1036, %v1034, %v1038
  %v1041 = vsel %vm1037, %v1035, %v1039
  %v1042 = vmul.f32 %v949, %v1015
  %v1043 = vmul.f32 %v954, %v1020
  %v1044 = vadd.f32 %v1042, %v1027
  %v1045 = vadd.f32 %v1043, %v1032
  %vm1046 = vcmp.ge.f32.partialorder %v1044, 0.0
  %vm1047 = vcmp.ge.f32.partialorder %v1045, 0.0
  %v1048 = vmul.f32 %v1044, 0.2
  %v1049 = vmul.f32 %v1045, 0.2
  %v1050 = vsel %vm1046, %v1044, %v1048
  %v1051 = vsel %vm1047, %v1045, %v1049
  %v1052 = vadd.s32 %v322, 16
  %v1053 = vadd.s32 %v322, 24
  %v1054 = vadd.s32 %v322, 32
  %v1055 = vadd.s32 %v322, 40
  %v1056 = vadd.s32 %v322, 48
  %v1057 = vadd.s32 %v322, 56
  %v1058 = vadd.s32 %v325, 128
  %v1059 = vshra.s32 %v325, 4
  %v1060 = vshra.s32 %v1058, 4
  %v1061 = vand.u32 %v325, 15
  %v1062 = vand.u32 %v1058, 15
  %v1063 = vshra.s32 %v1059, 1
  %v1064 = vshra.s32 %v1060, 1
  %v1065 = vshll.u32 %v1063, 3
  %v1066 = vshll.u32 %v1064, 3
  %v1067 = vshra.s32 %v1061, 1
  %v1068 = vshra.s32 %v1062, 1
  %v1069 = vor.u32 %v1065, %v1067
  %v1070 = vor.u32 %v1066, %v1068
  %vm1071 = vcmp.eq.s32.totalorder %v322, %v1069
  %vm1072 = vcmp.eq.s32.totalorder %v322, %v1070
  %vm1073 = vcmp.eq.s32.totalorder %v323, %v1069
  %vm1074 = vcmp.eq.s32.totalorder %v323, %v1070
  %vm1075 = vcmp.eq.s32.totalorder %v1052, %v1069
  %vm1076 = vcmp.eq.s32.totalorder %v1052, %v1070
  %vm1077 = vcmp.eq.s32.totalorder %v1053, %v1069
  %vm1078 = vcmp.eq.s32.totalorder %v1053, %v1070
  %vm1079 = vcmp.eq.s32.totalorder %v1054, %v1069
  %vm1080 = vcmp.eq.s32.totalorder %v1054, %v1070
  %vm1081 = vcmp.eq.s32.totalorder %v1055, %v1069
  %vm1082 = vcmp.eq.s32.totalorder %v1055, %v1070
  %vm1083 = vcmp.eq.s32.totalorder %v1056, %v1069
  %vm1084 = vcmp.eq.s32.totalorder %v1056, %v1070
  %vm1085 = vcmp.eq.s32.totalorder %v1057, %v1069
  %vm1086 = vcmp.eq.s32.totalorder %v1057, %v1070
  %v1087 = vsel %vm1071, 1.0, 0.0
  %v1088 = vsel %vm1072, 1.0, 0.0
  %v1089 = vsel %vm1073, 1.0, 0.0
  %v1090 = vsel %vm1074, 1.0, 0.0
  %v1091 = vsel %vm1075, 1.0, 0.0
  %v1092 = vsel %vm1076, 1.0, 0.0
  %v1093 = vsel %vm1077, 1.0, 0.0
  %v1094 = vsel %vm1078, 1.0, 0.0
  %v1095 = vsel %vm1079, 1.0, 0.0
  %v1096 = vsel %vm1080, 1.0, 0.0
  %v1097 = vsel %vm1081, 1.0, 0.0
  %v1098 = vsel %vm1082, 1.0, 0.0
  %v1099 = vsel %vm1083, 1.0, 0.0
  %v1100 = vsel %vm1084, 1.0, 0.0
  %v1101 = vsel %vm1085, 1.0, 0.0
  %v1102 = vsel %vm1086, 1.0, 0.0
  %v1104 = vsel %vm517, %v1040, 0
  %v1107 = vsel %vm517, %v1041, 0
  %1109 = vmatprep.subr.mxu0 %v1088
  %1110 = vmatpush1.msra.mxu0 %v1087
  %1111 = vmatprep.subr.mxu0 %v1090
  %1112 = vmatpush1.msra.mxu0 %v1089
  %1113 = vmatprep.subr.mxu0 %v1092
  %1114 = vmatpush1.msra.mxu0 %v1091
  %1115 = vmatprep.subr.mxu0 %v1094
  %1116 = vmatpush1.msra.mxu0 %v1093
  %1117 = vmatprep.subr.mxu0 %v1096
  %1118 = vmatpush1.msra.mxu0 %v1095
  %1119 = vmatprep.subr.mxu0 %v1098
  %1120 = vmatpush1.msra.mxu0 %v1097
  %1121 = vmatprep.subr.mxu0 %v1100
  %1122 = vmatpush1.msra.mxu0 %v1099
  %1123 = vmatprep.subr.mxu0 %v1102
  %1124 = vmatpush1.msra.mxu0 %v1101
  %1125 = vmatprep.subr.mxu0 0.0
  %1126 = vmatpush1.msra.mxu0 0.0
  %1127 = vmatprep.subr.mxu0 0.0
  %1128 = vmatpush1.msra.mxu0 0.0
  %1129 = vmatprep.subr.mxu0 0.0
  %1130 = vmatpush1.msra.mxu0 0.0
  %1131 = vmatprep.subr.mxu0 0.0
  %1132 = vmatpush1.msra.mxu0 0.0
  %1133 = vmatprep.subr.mxu0 0.0
  %1134 = vmatpush1.msra.mxu0 0.0
  %1135 = vmatprep.subr.mxu0 0.0
  %1136 = vmatpush1.msra.mxu0 0.0
  %1137 = vmatprep.subr.mxu0 0.0
  %1138 = vmatpush1.msra.mxu0 0.0
  %1139 = vmatprep.subr.mxu0 0.0
  %1140 = vmatpush1.msra.mxu0 0.0
  %1141 = vmatprep.subr.mxu0 0.0
  %1142 = vmatpush1.msra.mxu0 0.0
  %1143 = vmatprep.subr.mxu0 0.0
  %1144 = vmatpush1.msra.mxu0 0.0
  %1145 = vmatprep.subr.mxu0 0.0
  %1146 = vmatpush1.msra.mxu0 0.0
  %1147 = vmatprep.subr.mxu0 0.0
  %1148 = vmatpush1.msra.mxu0 0.0
  %1149 = vmatprep.subr.mxu0 0.0
  %1150 = vmatpush1.msra.mxu0 0.0
  %1151 = vmatprep.subr.mxu0 0.0
  %1152 = vmatpush1.msra.mxu0 0.0
  %1153 = vmatprep.subr.mxu0 0.0
  %1154 = vmatpush1.msra.mxu0 0.0
  %1155 = vmatprep.subr.mxu0 0.0
  %1156 = vmatpush1.msra.mxu0 0.0
  %1157 = vmatprep.subr.mxu0 0.0
  %1158 = vmatpush1.msra.mxu0 0.0
  %1159 = vmatprep.subr.mxu0 0.0
  %1160 = vmatpush1.msra.mxu0 0.0
  %1161 = vmatprep.subr.mxu0 0.0
  %1162 = vmatpush1.msra.mxu0 0.0
  %1163 = vmatprep.subr.mxu0 0.0
  %1164 = vmatpush1.msra.mxu0 0.0
  %1165 = vmatprep.subr.mxu0 0.0
  %1166 = vmatpush1.msra.mxu0 0.0
  %1167 = vmatprep.subr.mxu0 0.0
  %1168 = vmatpush1.msra.mxu0 0.0
  %1169 = vmatprep.subr.mxu0 0.0
  %1170 = vmatpush1.msra.mxu0 0.0
  %1171 = vmatprep.subr.mxu0 0.0
  %1172 = vmatpush1.msra.mxu0 0.0
  %1173 = vmatprep.mubr.f32.mxu0 0.0
  %1174 = vmatmul.mubr.f32.gmra.mrb[0].mxu0 %v1104
  %v1175 = vpop.f32.mrb[0].mxu0
  %v1176 = vadd.f32 0.0, %v1175
  %v1177 = vpop.f32.mrb[0].mxu0
  %v1178 = vadd.f32 0.0, %v1177
  %1179 = vmatprep.mubr.f32.mxu0 0.0
  %1180 = vmatmul.mubr.f32.gmra.mrb[0].mxu0 %v1107
  %v1181 = vpop.f32.mrb[0].mxu0
  %v1182 = vadd.f32 0.0, %v1181
  %v1183 = vpop.f32.mrb[0].mxu0
  %v1184 = vadd.f32 0.0, %v1183
  %1185 = vdwg.mxu0
  %v1187 = vsel %vm517, %v1050, 0
  %v1190 = vsel %vm517, %v1051, 0
  %1192 = vmatprep.subr.mxu0 %v1088
  %1193 = vmatpush1.msra.mxu0 %v1087
  %1194 = vmatprep.subr.mxu0 %v1090
  %1195 = vmatpush1.msra.mxu0 %v1089
  %1196 = vmatprep.subr.mxu0 %v1092
  %1197 = vmatpush1.msra.mxu0 %v1091
  %1198 = vmatprep.subr.mxu0 %v1094
  %1199 = vmatpush1.msra.mxu0 %v1093
  %1200 = vmatprep.subr.mxu0 %v1096
  %1201 = vmatpush1.msra.mxu0 %v1095
  %1202 = vmatprep.subr.mxu0 %v1098
  %1203 = vmatpush1.msra.mxu0 %v1097
  %1204 = vmatprep.subr.mxu0 %v1100
  %1205 = vmatpush1.msra.mxu0 %v1099
  %1206 = vmatprep.subr.mxu0 %v1102
  %1207 = vmatpush1.msra.mxu0 %v1101
  %1208 = vmatprep.subr.mxu0 0.0
  %1209 = vmatpush1.msra.mxu0 0.0
  %1210 = vmatprep.subr.mxu0 0.0
  %1211 = vmatpush1.msra.mxu0 0.0
  %1212 = vmatprep.subr.mxu0 0.0
  %1213 = vmatpush1.msra.mxu0 0.0
  %1214 = vmatprep.subr.mxu0 0.0
  %1215 = vmatpush1.msra.mxu0 0.0
  %1216 = vmatprep.subr.mxu0 0.0
  %1217 = vmatpush1.msra.mxu0 0.0
  %1218 = vmatprep.subr.mxu0 0.0
  %1219 = vmatpush1.msra.mxu0 0.0
  %1220 = vmatprep.subr.mxu0 0.0
  %1221 = vmatpush1.msra.mxu0 0.0
  %1222 = vmatprep.subr.mxu0 0.0
  %1223 = vmatpush1.msra.mxu0 0.0
  %1224 = vmatprep.subr.mxu0 0.0
  %1225 = vmatpush1.msra.mxu0 0.0
  %1226 = vmatprep.subr.mxu0 0.0
  %1227 = vmatpush1.msra.mxu0 0.0
  %1228 = vmatprep.subr.mxu0 0.0
  %1229 = vmatpush1.msra.mxu0 0.0
  %1230 = vmatprep.subr.mxu0 0.0
  %1231 = vmatpush1.msra.mxu0 0.0
  %1232 = vmatprep.subr.mxu0 0.0
  %1233 = vmatpush1.msra.mxu0 0.0
  %1234 = vmatprep.subr.mxu0 0.0
  %1235 = vmatpush1.msra.mxu0 0.0
  %1236 = vmatprep.subr.mxu0 0.0
  %1237 = vmatpush1.msra.mxu0 0.0
  %1238 = vmatprep.subr.mxu0 0.0
  %1239 = vmatpush1.msra.mxu0 0.0
  %1240 = vmatprep.subr.mxu0 0.0
  %1241 = vmatpush1.msra.mxu0 0.0
  %1242 = vmatprep.subr.mxu0 0.0
  %1243 = vmatpush1.msra.mxu0 0.0
  %1244 = vmatprep.subr.mxu0 0.0
  %1245 = vmatpush1.msra.mxu0 0.0
  %1246 = vmatprep.subr.mxu0 0.0
  %1247 = vmatpush1.msra.mxu0 0.0
  %1248 = vmatprep.subr.mxu0 0.0
  %1249 = vmatpush1.msra.mxu0 0.0
  %1250 = vmatprep.subr.mxu0 0.0
  %1251 = vmatpush1.msra.mxu0 0.0
  %1252 = vmatprep.subr.mxu0 0.0
  %1253 = vmatpush1.msra.mxu0 0.0
  %1254 = vmatprep.subr.mxu0 0.0
  %1255 = vmatpush1.msra.mxu0 0.0
  %1256 = vmatprep.mubr.f32.mxu0 0.0
  %1257 = vmatmul.mubr.f32.gmra.mrb[0].mxu0 %v1187
  %v1258 = vpop.f32.mrb[0].mxu0
  %v1259 = vadd.f32 0.0, %v1258
  %v1260 = vpop.f32.mrb[0].mxu0
  %v1261 = vadd.f32 0.0, %v1260
  %1262 = vmatprep.mubr.f32.mxu0 0.0
  %1263 = vmatmul.mubr.f32.gmra.mrb[0].mxu0 %v1190
  %v1264 = vpop.f32.mrb[0].mxu0
  %v1265 = vadd.f32 0.0, %v1264
  %v1266 = vpop.f32.mrb[0].mxu0
  %v1267 = vadd.f32 0.0, %v1266
  %1268 = vdwg.mxu0
  %1273 = vrot.lane.b32.xlu0 %v1176, 17
  %v1274 = vpop.permute.xlu0 %1273
  %1275 = vrot.lane.b32.xlu0 %v1178, 17
  %v1276 = vpop.permute.xlu0 %1275
  %1277 = vrot.lane.b32.xlu0 %v1182, 17
  %v1278 = vpop.permute.xlu0 %1277
  %1279 = vrot.lane.b32.xlu0 %v1184, 17
  %v1280 = vpop.permute.xlu0 %1279
  %vm1281 = vcmask 138240
  %v1282 = vsel %vm1281, %v1274, %v1276
  %v1283 = vsel %vm1281, %v1278, %v1280
  %vm1290 = vcmask 1047688
  %1291 = vst.msk [vmem:[#allocation4] sm:$0xff] %vm1290, %v1274
  %1292 = vst [vmem:[#allocation4 + $0x8] sm:$0xff] %v1282
  %1293 = vst.msk [vmem:[#allocation4 + $0x10] sm:$0xff] %vm1281, %v1276
  %1294 = vst.msk [vmem:[#allocation4 + $0x18] sm:$0xff] %vm1290, %v1278
  %1295 = vst [vmem:[#allocation4 + $0x20] sm:$0xff] %v1283
  %1296 = vst.msk [vmem:[#allocation4 + $0x28] sm:$0xff] %vm1281, %v1280
  %vm1297 = vcmp.ge.s32.totalorder %v1061, 1
  %vm1298 = vcmp.ge.s32.totalorder %v1062, 1
  %v1299 = vsel %vm1297, 1.0, 0.0
  %v1300 = vsel %vm1298, 1.0, 0.0
  %vm1301 = vcmp.le.s32.totalorder %v1061, 14
  %vm1302 = vcmp.le.s32.totalorder %v1062, 14
  %v1303 = vsel %vm1301, 1.0, 0.0
  %v1304 = vsel %vm1302, 1.0, 0.0
  %v1305 = vld [vmem:[#allocation4] sm:$0xff]
  %v1306 = vld [vmem:[#allocation4 + $0x8] sm:$0xff]
  %v1307 = vld [vmem:[#allocation4 + $0x18] sm:$0xff]
  %v1308 = vld [vmem:[#allocation4 + $0x20] sm:$0xff]
  %v1309 = vmul.f32 %v1305, %v1299
  %v1310 = vmul.f32 %v1306, %v1300
  %v1311 = vmul.f32 %v1307, %v1299
  %v1312 = vmul.f32 %v1308, %v1300
  %1313 = vst [vmem:[#allocation7] sm:$0xff] %v1309
  %1314 = vst [vmem:[#allocation7 + $0x8] sm:$0xff] %v1310
  %1315 = vst [vmem:[#allocation7 + $0x10] sm:$0xff] %v1311
  %1316 = vst [vmem:[#allocation7 + $0x18] sm:$0xff] %v1312
  %v1317 = vld [vmem:[#allocation4] sm:$0xff]
  %v1318 = vld [vmem:[#allocation4 + $0x8] sm:$0xff]
  %v1319 = vld [vmem:[#allocation4 + $0x10] sm:$0xff]
  %v1320 = vld [vmem:[#allocation4 + $0x18] sm:$0xff]
  %v1321 = vld [vmem:[#allocation4 + $0x20] sm:$0xff]
  %v1322 = vld [vmem:[#allocation4 + $0x28] sm:$0xff]
  %1329 = vrot.lane.b32.xlu0 %v1317, 127
  %v1330 = vpop.permute.xlu0 %1329
  %1331 = vrot.lane.b32.xlu0 %v1318, 127
  %v1332 = vpop.permute.xlu0 %1331
  %1333 = vrot.lane.b32.xlu0 %v1319, 127
  %v1334 = vpop.permute.xlu0 %1333
  %1335 = vrot.lane.b32.xlu0 %v1320, 127
  %v1336 = vpop.permute.xlu0 %1335
  %1337 = vrot.lane.b32.xlu0 %v1321, 127
  %v1338 = vpop.permute.xlu0 %1337
  %1339 = vrot.lane.b32.xlu0 %v1322, 127
  %v1340 = vpop.permute.xlu0 %1339
  %vm1341 = vcmask 1039360
  %v1342 = vsel %vm1341, %v1330, %v1332
  %v1343 = vsel %vm1341, %v1332, %v1334
  %v1344 = vsel %vm1341, %v1336, %v1338
  %v1345 = vsel %vm1341, %v1338, %v1340
  %1350 = vst [vmem:[#allocation7 + $0x20] sm:$0xff] %v1342
  %1351 = vst [vmem:[#allocation7 + $0x28] sm:$0xff] %v1343
  %1352 = vst [vmem:[#allocation7 + $0x30] sm:$0xff] %v1344
  %1353 = vst [vmem:[#allocation7 + $0x38] sm:$0xff] %v1345
  %v1354 = vld [vmem:[#allocation4] sm:$0xff]
  %v1355 = vld [vmem:[#allocation4 + $0x8] sm:$0xff]
  %v1356 = vld [vmem:[#allocation4 + $0x10] sm:$0xff]
  %v1357 = vld [vmem:[#allocation4 + $0x18] sm:$0xff]
  %v1358 = vld [vmem:[#allocation4 + $0x20] sm:$0xff]
  %v1359 = vld [vmem:[#allocation4 + $0x28] sm:$0xff]
  %1362 = vrot.lane.b32.xlu0 %v1303, 2
  %v1363 = vpop.permute.xlu0 %1362
  %1364 = vrot.lane.b32.xlu0 %v1304, 2
  %v1365 = vpop.permute.xlu0 %1364
  %vm1366 = vcmask 15360
  %v1367 = vsel %vm1366, %v1363, %v1365
  %v1371 = vmul.f32 %v1354, %v1363
  %v1372 = vmul.f32 %v1355, %v1367
  %v1373 = vmul.f32 %v1356, %v1365
  %v1374 = vmul.f32 %v1357, %v1363
  %v1375 = vmul.f32 %v1358, %v1367
  %v1376 = vmul.f32 %v1359, %v1365
  %1383 = vrot.lane.b32.xlu0 %v1371, 126
  %v1384 = vpop.permute.xlu0 %1383
  %1385 = vrot.lane.b32.xlu0 %v1372, 126
  %v1386 = vpop.permute.xlu0 %1385
  %1387 = vrot.lane.b32.xlu0 %v1373, 126
  %v1388 = vpop.permute.xlu0 %1387
  %1389 = vrot.lane.b32.xlu0 %v1374, 126
  %v1390 = vpop.permute.xlu0 %1389
  %1391 = vrot.lane.b32.xlu0 %v1375, 126
  %v1392 = vpop.permute.xlu0 %1391
  %1393 = vrot.lane.b32.xlu0 %v1376, 126
  %v1394 = vpop.permute.xlu0 %1393
  %vm1395 = vcmask 1031168
  %v1396 = vsel %vm1395, %v1384, %v1386
  %v1397 = vsel %vm1395, %v1386, %v1388
  %v1398 = vsel %vm1395, %v1390, %v1392
  %v1399 = vsel %vm1395, %v1392, %v1394
  %1404 = vst [vmem:[#allocation7 + $0x40] sm:$0xff] %v1396
  %1405 = vst [vmem:[#allocation7 + $0x48] sm:$0xff] %v1397
  %1406 = vst [vmem:[#allocation7 + $0x50] sm:$0xff] %v1398
  %1407 = vst [vmem:[#allocation7 + $0x58] sm:$0xff] %v1399
  %v1408 = vld [vmem:[#allocation4] sm:$0xff]
  %v1409 = vld [vmem:[#allocation4 + $0x8] sm:$0xff]
  %v1410 = vld [vmem:[#allocation4 + $0x10] sm:$0xff]
  %v1411 = vld [vmem:[#allocation4 + $0x18] sm:$0xff]
  %v1412 = vld [vmem:[#allocation4 + $0x20] sm:$0xff]
  %v1413 = vld [vmem:[#allocation4 + $0x28] sm:$0xff]
  %1416 = vrot.lane.b32.xlu0 %v1299, 16
  %v1417 = vpop.permute.xlu0 %1416
  %1418 = vrot.lane.b32.xlu0 %v1300, 16
  %v1419 = vpop.permute.xlu0 %1418
  %v1420 = vsel %vm81, %v1417, %v1419
  %v1424 = vmul.f32 %v1408, %v1417
  %v1425 = vmul.f32 %v1409, %v1420
  %v1426 = vmul.f32 %v1410, %v1419
  %v1427 = vmul.f32 %v1411, %v1417
  %v1428 = vmul.f32 %v1412, %v1420
  %v1429 = vmul.f32 %v1413, %v1419
  %1436 = vrot.lane.b32.xlu0 %v1424, 112
  %v1437 = vpop.permute.xlu0 %1436
  %1438 = vrot.lane.b32.xlu0 %v1425, 112
  %v1439 = vpop.permute.xlu0 %1438
  %1440 = vrot.lane.b32.xlu0 %v1426, 112
  %v1441 = vpop.permute.xlu0 %1440
  %1442 = vrot.lane.b32.xlu0 %v1427, 112
  %v1443 = vpop.permute.xlu0 %1442
  %1444 = vrot.lane.b32.xlu0 %v1428, 112
  %v1445 = vpop.permute.xlu0 %1444
  %1446 = vrot.lane.b32.xlu0 %v1429, 112
  %v1447 = vpop.permute.xlu0 %1446
  %vm1448 = vcmask 916480
  %v1449 = vsel %vm1448, %v1437, %v1439
  %v1450 = vsel %vm1448, %v1439, %v1441
  %v1451 = vsel %vm1448, %v1443, %v1445
  %v1452 = vsel %vm1448, %v1445, %v1447
  %1457 = vst [vmem:[#allocation7 + $0x60] sm:$0xff] %v1449
  %1458 = vst [vmem:[#allocation7 + $0x68] sm:$0xff] %v1450
  %1459 = vst [vmem:[#allocation7 + $0x70] sm:$0xff] %v1451
  %1460 = vst [vmem:[#allocation7 + $0x78] sm:$0xff] %v1452
  %v1461 = vld [vmem:[#allocation4] sm:$0xff]
  %v1462 = vld [vmem:[#allocation4 + $0x8] sm:$0xff]
  %v1463 = vld [vmem:[#allocation4 + $0x10] sm:$0xff]
  %v1464 = vld [vmem:[#allocation4 + $0x18] sm:$0xff]
  %v1465 = vld [vmem:[#allocation4 + $0x20] sm:$0xff]
  %v1466 = vld [vmem:[#allocation4 + $0x28] sm:$0xff]
  %1473 = vrot.lane.b32.xlu0 %v1461, 111
  %v1474 = vpop.permute.xlu0 %1473
  %1475 = vrot.lane.b32.xlu0 %v1462, 111
  %v1476 = vpop.permute.xlu0 %1475
  %1477 = vrot.lane.b32.xlu0 %v1463, 111
  %v1478 = vpop.permute.xlu0 %1477
  %1479 = vrot.lane.b32.xlu0 %v1464, 111
  %v1480 = vpop.permute.xlu0 %1479
  %1481 = vrot.lane.b32.xlu0 %v1465, 111
  %v1482 = vpop.permute.xlu0 %1481
  %1483 = vrot.lane.b32.xlu0 %v1466, 111
  %v1484 = vpop.permute.xlu0 %1483
  %vm1485 = vcmask 908288
  %v1486 = vsel %vm1485, %v1474, %v1476
  %v1487 = vsel %vm1485, %v1476, %v1478
  %v1488 = vsel %vm1485, %v1480, %v1482
  %v1489 = vsel %vm1485, %v1482, %v1484
  %1494 = vst [vmem:[#allocation7 + $0x80] sm:$0xff] %v1486
  %1495 = vst [vmem:[#allocation7 + $0x88] sm:$0xff] %v1487
  %1496 = vst [vmem:[#allocation7 + $0x90] sm:$0xff] %v1488
  %1497 = vst [vmem:[#allocation7 + $0x98] sm:$0xff] %v1489
  %v1498 = vld [vmem:[#allocation4] sm:$0xff]
  %v1499 = vld [vmem:[#allocation4 + $0x8] sm:$0xff]
  %v1500 = vld [vmem:[#allocation4 + $0x10] sm:$0xff]
  %v1501 = vld [vmem:[#allocation4 + $0x18] sm:$0xff]
  %v1502 = vld [vmem:[#allocation4 + $0x20] sm:$0xff]
  %v1503 = vld [vmem:[#allocation4 + $0x28] sm:$0xff]
  %1504 = vrot.lane.b32.xlu0 %v1303, 18
  %v1505 = vpop.permute.xlu0 %1504
  %1506 = vrot.lane.b32.xlu0 %v1304, 18
  %v1507 = vpop.permute.xlu0 %1506
  %vm1508 = vcmask 146432
  %v1509 = vsel %vm1508, %v1505, %v1507
  %v1513 = vmul.f32 %v1498, %v1505
  %v1514 = vmul.f32 %v1499, %v1509
  %v1515 = vmul.f32 %v1500, %v1507
  %v1516 = vmul.f32 %v1501, %v1505
  %v1517 = vmul.f32 %v1502, %v1509
  %v1518 = vmul.f32 %v1503, %v1507
  %1525 = vrot.lane.b32.xlu0 %v1513, 110
  %v1526 = vpop.permute.xlu0 %1525
  %1527 = vrot.lane.b32.xlu0 %v1514, 110
  %v1528 = vpop.permute.xlu0 %1527
  %1529 = vrot.lane.b32.xlu0 %v1515, 110
  %v1530 = vpop.permute.xlu0 %1529
  %1531 = vrot.lane.b32.xlu0 %v1516, 110
  %v1532 = vpop.permute.xlu0 %1531
  %1533 = vrot.lane.b32.xlu0 %v1517, 110
  %v1534 = vpop.permute.xlu0 %1533
  %1535 = vrot.lane.b32.xlu0 %v1518, 110
  %v1536 = vpop.permute.xlu0 %1535
  %vm1537 = vcmask 900096
  %v1538 = vsel %vm1537, %v1526, %v1528
  %v1539 = vsel %vm1537, %v1528, %v1530
  %v1540 = vsel %vm1537, %v1532, %v1534
  %v1541 = vsel %vm1537, %v1534, %v1536
  %1546 = vst [vmem:[#allocation7 + $0xa0] sm:$0xff] %v1538
  %1547 = vst [vmem:[#allocation7 + $0xa8] sm:$0xff] %v1539
  %1548 = vst [vmem:[#allocation7 + $0xb0] sm:$0xff] %v1540
  %1549 = vst [vmem:[#allocation7 + $0xb8] sm:$0xff] %v1541
  %v1550 = vld [vmem:[#allocation4] sm:$0xff]
  %v1551 = vld [vmem:[#allocation4 + $0x8] sm:$0xff]
  %v1552 = vld [vmem:[#allocation4 + $0x10] sm:$0xff]
  %v1553 = vld [vmem:[#allocation4 + $0x18] sm:$0xff]
  %v1554 = vld [vmem:[#allocation4 + $0x20] sm:$0xff]
  %v1555 = vld [vmem:[#allocation4 + $0x28] sm:$0xff]
  %1556 = vrot.lane.b32.xlu0 %v1299, 32
  %v1557 = vpop.permute.xlu0 %1556
  %1558 = vrot.lane.b32.xlu0 %v1300, 32
  %v1559 = vpop.permute.xlu0 %1558
  %vm1560 = vcmask 261120
  %v1561 = vsel %vm1560, %v1557, %v1559
  %v1565 = vmul.f32 %v1550, %v1557
  %v1566 = vmul.f32 %v1551, %v1561
  %v1567 = vmul.f32 %v1552, %v1559
  %v1568 = vmul.f32 %v1553, %v1557
  %v1569 = vmul.f32 %v1554, %v1561
  %v1570 = vmul.f32 %v1555, %v1559
  %1577 = vrot.lane.b32.xlu0 %v1565, 96
  %v1578 = vpop.permute.xlu0 %1577
  %1579 = vrot.lane.b32.xlu0 %v1566, 96
  %v1580 = vpop.permute.xlu0 %1579
  %1581 = vrot.lane.b32.xlu0 %v1567, 96
  %v1582 = vpop.permute.xlu0 %1581
  %1583 = vrot.lane.b32.xlu0 %v1568, 96
  %v1584 = vpop.permute.xlu0 %1583
  %1585 = vrot.lane.b32.xlu0 %v1569, 96
  %v1586 = vpop.permute.xlu0 %1585
  %1587 = vrot.lane.b32.xlu0 %v1570, 96
  %v1588 = vpop.permute.xlu0 %1587
  %vm1589 = vcmask 785408
  %v1590 = vsel %vm1589, %v1578, %v1580
  %v1591 = vsel %vm1589, %v1580, %v1582
  %v1592 = vsel %vm1589, %v1584, %v1586
  %v1593 = vsel %vm1589, %v1586, %v1588
  %1598 = vst [vmem:[#allocation7 + $0xc0] sm:$0xff] %v1590
  %1599 = vst [vmem:[#allocation7 + $0xc8] sm:$0xff] %v1591
  %1600 = vst [vmem:[#allocation7 + $0xd0] sm:$0xff] %v1592
  %1601 = vst [vmem:[#allocation7 + $0xd8] sm:$0xff] %v1593
  %v1602 = vld [vmem:[#allocation4] sm:$0xff]
  %v1603 = vld [vmem:[#allocation4 + $0x8] sm:$0xff]
  %v1604 = vld [vmem:[#allocation4 + $0x10] sm:$0xff]
  %v1605 = vld [vmem:[#allocation4 + $0x18] sm:$0xff]
  %v1606 = vld [vmem:[#allocation4 + $0x20] sm:$0xff]
  %v1607 = vld [vmem:[#allocation4 + $0x28] sm:$0xff]
  %1614 = vrot.lane.b32.xlu0 %v1602, 95
  %v1615 = vpop.permute.xlu0 %1614
  %1616 = vrot.lane.b32.xlu0 %v1603, 95
  %v1617 = vpop.permute.xlu0 %1616
  %1618 = vrot.lane.b32.xlu0 %v1604, 95
  %v1619 = vpop.permute.xlu0 %1618
  %1620 = vrot.lane.b32.xlu0 %v1605, 95
  %v1621 = vpop.permute.xlu0 %1620
  %1622 = vrot.lane.b32.xlu0 %v1606, 95
  %v1623 = vpop.permute.xlu0 %1622
  %1624 = vrot.lane.b32.xlu0 %v1607, 95
  %v1625 = vpop.permute.xlu0 %1624
  %vm1626 = vcmask 777216
  %v1627 = vsel %vm1626, %v1615, %v1617
  %v1628 = vsel %vm1626, %v1617, %v1619
  %v1629 = vsel %vm1626, %v1621, %v1623
  %v1630 = vsel %vm1626, %v1623, %v1625
  %1635 = vst [vmem:[#allocation7 + $0xe0] sm:$0xff] %v1627
  %1636 = vst [vmem:[#allocation7 + $0xe8] sm:$0xff] %v1628
  %1637 = vst [vmem:[#allocation7 + $0xf0] sm:$0xff] %v1629
  %1638 = vst [vmem:[#allocation7 + $0xf8] sm:$0xff] %v1630
  %v1639 = vld [vmem:[#allocation4] sm:$0xff]
  %v1640 = vld [vmem:[#allocation4 + $0x8] sm:$0xff]
  %v1641 = vld [vmem:[#allocation4 + $0x10] sm:$0xff]
  %v1642 = vld [vmem:[#allocation4 + $0x18] sm:$0xff]
  %v1643 = vld [vmem:[#allocation4 + $0x20] sm:$0xff]
  %v1644 = vld [vmem:[#allocation4 + $0x28] sm:$0xff]
  %1645 = vrot.lane.b32.xlu0 %v1303, 34
  %v1646 = vpop.permute.xlu0 %1645
  %1647 = vrot.lane.b32.xlu0 %v1304, 34
  %v1648 = vpop.permute.xlu0 %1647
  %v1649 = vsel %vm49, %v1646, %v1648
  %v1653 = vmul.f32 %v1639, %v1646
  %v1654 = vmul.f32 %v1640, %v1649
  %v1655 = vmul.f32 %v1641, %v1648
  %v1656 = vmul.f32 %v1642, %v1646
  %v1657 = vmul.f32 %v1643, %v1649
  %v1658 = vmul.f32 %v1644, %v1648
  %1665 = vrot.lane.b32.xlu0 %v1653, 94
  %v1666 = vpop.permute.xlu0 %1665
  %1667 = vrot.lane.b32.xlu0 %v1654, 94
  %v1668 = vpop.permute.xlu0 %1667
  %1669 = vrot.lane.b32.xlu0 %v1655, 94
  %v1670 = vpop.permute.xlu0 %1669
  %1671 = vrot.lane.b32.xlu0 %v1656, 94
  %v1672 = vpop.permute.xlu0 %1671
  %1673 = vrot.lane.b32.xlu0 %v1657, 94
  %v1674 = vpop.permute.xlu0 %1673
  %1675 = vrot.lane.b32.xlu0 %v1658, 94
  %v1676 = vpop.permute.xlu0 %1675
  %vm1677 = vcmask 769024
  %v1678 = vsel %vm1677, %v1666, %v1668
  %v1679 = vsel %vm1677, %v1668, %v1670
  %v1680 = vsel %vm1677, %v1672, %v1674
  %v1681 = vsel %vm1677, %v1674, %v1676
  %1686 = vst [vmem:[#allocation7 + $0x100] sm:$0xff] %v1678
  %1687 = vst [vmem:[#allocation7 + $0x108] sm:$0xff] %v1679
  %1688 = vst [vmem:[#allocation7 + $0x110] sm:$0xff] %v1680
  %1689 = vst [vmem:[#allocation7 + $0x118] sm:$0xff] %v1681
  %v1690 = vld [vmem:[#allocation7] sm:$0xff]
  %v1691 = vld [vmem:[#allocation7 + $0x8] sm:$0xff]
  %v1692 = vld [vmem:[#allocation7 + $0x10] sm:$0xff]
  %v1693 = vld [vmem:[#allocation7 + $0x18] sm:$0xff]
  %v1694 = vld [vmem:[#allocation7 + $0x20] sm:$0xff]
  %v1695 = vld [vmem:[#allocation7 + $0x28] sm:$0xff]
  %v1696 = vld [vmem:[#allocation7 + $0x30] sm:$0xff]
  %v1697 = vld [vmem:[#allocation7 + $0x38] sm:$0xff]
  %v1698 = vld [vmem:[#allocation7 + $0x40] sm:$0xff]
  %v1699 = vld [vmem:[#allocation7 + $0x48] sm:$0xff]
  %v1700 = vld [vmem:[#allocation7 + $0x50] sm:$0xff]
  %v1701 = vld [vmem:[#allocation7 + $0x58] sm:$0xff]
  %v1702 = vld [vmem:[#allocation7 + $0x60] sm:$0xff]
  %v1703 = vld [vmem:[#allocation7 + $0x68] sm:$0xff]
  %v1704 = vld [vmem:[#allocation7 + $0x70] sm:$0xff]
  %v1705 = vld [vmem:[#allocation7 + $0x78] sm:$0xff]
  %v1706 = vld [vmem:[#allocation7 + $0x80] sm:$0xff]
  %v1707 = vld [vmem:[#allocation7 + $0x88] sm:$0xff]
  %v1708 = vld [vmem:[#allocation7 + $0x90] sm:$0xff]
  %v1709 = vld [vmem:[#allocation7 + $0x98] sm:$0xff]
  %v1710 = vld [vmem:[#allocation7 + $0xa0] sm:$0xff]
  %v1711 = vld [vmem:[#allocation7 + $0xa8] sm:$0xff]
  %v1712 = vld [vmem:[#allocation7 + $0xb0] sm:$0xff]
  %v1713 = vld [vmem:[#allocation7 + $0xb8] sm:$0xff]
  %v1714 = vld [vmem:[#allocation7 + $0xc0] sm:$0xff]
  %v1715 = vld [vmem:[#allocation7 + $0xc8] sm:$0xff]
  %v1716 = vld [vmem:[#allocation7 + $0xd0] sm:$0xff]
  %v1717 = vld [vmem:[#allocation7 + $0xd8] sm:$0xff]
  %v1718 = vld [vmem:[#allocation7 + $0xe0] sm:$0xff]
  %v1719 = vld [vmem:[#allocation7 + $0xe8] sm:$0xff]
  %v1720 = vld [vmem:[#allocation7 + $0xf0] sm:$0xff]
  %v1721 = vld [vmem:[#allocation7 + $0xf8] sm:$0xff]
  %v1722 = vld [vmem:[#allocation7 + $0x100] sm:$0xff]
  %v1723 = vld [vmem:[#allocation7 + $0x108] sm:$0xff]
  %v1724 = vld [vmem:[#allocation7 + $0x110] sm:$0xff]
  %v1725 = vld [vmem:[#allocation7 + $0x118] sm:$0xff]
  %v1727 = vsel %vm81, %v62, 0
  %1729 = vmatprep.subr.mxu0 %v1691
  %1730 = vmatpush1.msra.mxu0 %v1690
  %1731 = vmatprep.subr.mxu0 %v1693
  %1732 = vmatpush1.msra.mxu0 %v1692
  %1733 = vmatprep.subr.mxu0 %v1695
  %1734 = vmatpush1.msra.mxu0 %v1694
  %1735 = vmatprep.subr.mxu0 %v1697
  %1736 = vmatpush1.msra.mxu0 %v1696
  %1737 = vmatprep.subr.mxu0 %v1699
  %1738 = vmatpush1.msra.mxu0 %v1698
  %1739 = vmatprep.subr.mxu0 %v1701
  %1740 = vmatpush1.msra.mxu0 %v1700
  %1741 = vmatprep.subr.mxu0 %v1703
  %1742 = vmatpush1.msra.mxu0 %v1702
  %1743 = vmatprep.subr.mxu0 %v1705
  %1744 = vmatpush1.msra.mxu0 %v1704
  %1745 = vmatprep.subr.mxu0 %v1707
  %1746 = vmatpush1.msra.mxu0 %v1706
  %1747 = vmatprep.subr.mxu0 %v1709
  %1748 = vmatpush1.msra.mxu0 %v1708
  %1749 = vmatprep.subr.mxu0 %v1711
  %1750 = vmatpush1.msra.mxu0 %v1710
  %1751 = vmatprep.subr.mxu0 %v1713
  %1752 = vmatpush1.msra.mxu0 %v1712
  %1753 = vmatprep.subr.mxu0 %v1715
  %1754 = vmatpush1.msra.mxu0 %v1714
  %1755 = vmatprep.subr.mxu0 %v1717
  %1756 = vmatpush1.msra.mxu0 %v1716
  %1757 = vmatprep.subr.mxu0 %v1719
  %1758 = vmatpush1.msra.mxu0 %v1718
  %1759 = vmatprep.subr.mxu0 %v1721
  %1760 = vmatpush1.msra.mxu0 %v1720
  %1761 = vmatprep.subr.mxu0 %v1723
  %1762 = vmatpush1.msra.mxu0 %v1722
  %1763 = vmatprep.subr.mxu0 %v1725
  %1764 = vmatpush1.msra.mxu0 %v1724
  %1765 = vmatprep.subr.mxu0 0.0
  %1766 = vmatpush1.msra.mxu0 0.0
  %1767 = vmatprep.subr.mxu0 0.0
  %1768 = vmatpush1.msra.mxu0 0.0
  %1769 = vmatprep.subr.mxu0 0.0
  %1770 = vmatpush1.msra.mxu0 0.0
  %1771 = vmatprep.subr.mxu0 0.0
  %1772 = vmatpush1.msra.mxu0 0.0
  %1773 = vmatprep.subr.mxu0 0.0
  %1774 = vmatpush1.msra.mxu0 0.0
  %1775 = vmatprep.subr.mxu0 0.0
  %1776 = vmatpush1.msra.mxu0 0.0
  %1777 = vmatprep.subr.mxu0 0.0
  %1778 = vmatpush1.msra.mxu0 0.0
  %1779 = vmatprep.subr.mxu0 0.0
  %1780 = vmatpush1.msra.mxu0 0.0
  %1781 = vmatprep.subr.mxu0 0.0
  %1782 = vmatpush1.msra.mxu0 0.0
  %1783 = vmatprep.subr.mxu0 0.0
  %1784 = vmatpush1.msra.mxu0 0.0
  %1785 = vmatprep.subr.mxu0 0.0
  %1786 = vmatpush1.msra.mxu0 0.0
  %1787 = vmatprep.subr.mxu0 0.0
  %1788 = vmatpush1.msra.mxu0 0.0
  %1789 = vmatprep.subr.mxu0 0.0
  %1790 = vmatpush1.msra.mxu0 0.0
  %1791 = vmatprep.subr.mxu0 0.0
  %1792 = vmatpush1.msra.mxu0 0.0
  %1793 = vmatprep.mubr.f32.mxu0 %v1727
  %1794 = vmatmul.mubr.f32.gmra.mrb[0].mxu0 %v61
  %v1795 = vpop.f32.mrb[0].mxu0
  %v1796 = vadd.f32 0.0, %v1795
  %v1797 = vpop.f32.mrb[0].mxu0
  %v1798 = vadd.f32 0.0, %v1797
  %1799 = vdwg.mxu0
  %1804 = vrot.lane.b32.xlu0 %v1259, 17
  %v1805 = vpop.permute.xlu0 %1804
  %1806 = vrot.lane.b32.xlu0 %v1261, 17
  %v1807 = vpop.permute.xlu0 %1806
  %1808 = vrot.lane.b32.xlu0 %v1265, 17
  %v1809 = vpop.permute.xlu0 %1808
  %1810 = vrot.lane.b32.xlu0 %v1267, 17
  %v1811 = vpop.permute.xlu0 %1810
  %v1812 = vsel %vm1281, %v1805, %v1807
  %v1813 = vsel %vm1281, %v1809, %v1811
  %1820 = vst.msk [vmem:[#allocation4] sm:$0xff] %vm1290, %v1805
  %1821 = vst [vmem:[#allocation4 + $0x8] sm:$0xff] %v1812
  %1822 = vst.msk [vmem:[#allocation4 + $0x10] sm:$0xff] %vm1281, %v1807
  %1823 = vst.msk [vmem:[#allocation4 + $0x18] sm:$0xff] %vm1290, %v1809
  %1824 = vst [vmem:[#allocation4 + $0x20] sm:$0xff] %v1813
  %1825 = vst.msk [vmem:[#allocation4 + $0x28] sm:$0xff] %vm1281, %v1811
  %v1826 = vld [vmem:[#allocation4] sm:$0xff]
  %v1827 = vld [vmem:[#allocation4 + $0x8] sm:$0xff]
  %v1828 = vld [vmem:[#allocation4 + $0x18] sm:$0xff]
  %v1829 = vld [vmem:[#allocation4 + $0x20] sm:$0xff]
  %v1830 = vmul.f32 %v1826, %v1299
  %v1831 = vmul.f32 %v1827, %v1300
  %v1832 = vmul.f32 %v1828, %v1299
  %v1833 = vmul.f32 %v1829, %v1300
  %1834 = vst [vmem:[#allocation7] sm:$0xff] %v1830
  %1835 = vst [vmem:[#allocation7 + $0x8] sm:$0xff] %v1831
  %1836 = vst [vmem:[#allocation7 + $0x10] sm:$0xff] %v1832
  %1837 = vst [vmem:[#allocation7 + $0x18] sm:$0xff] %v1833
  %v1838 = vld [vmem:[#allocation4] sm:$0xff]
  %v1839 = vld [vmem:[#allocation4 + $0x8] sm:$0xff]
  %v1840 = vld [vmem:[#allocation4 + $0x10] sm:$0xff]
  %v1841 = vld [vmem:[#allocation4 + $0x18] sm:$0xff]
  %v1842 = vld [vmem:[#allocation4 + $0x20] sm:$0xff]
  %v1843 = vld [vmem:[#allocation4 + $0x28] sm:$0xff]
  %1850 = vrot.lane.b32.xlu0 %v1838, 127
  %v1851 = vpop.permute.xlu0 %1850
  %1852 = vrot.lane.b32.xlu0 %v1839, 127
  %v1853 = vpop.permute.xlu0 %1852
  %1854 = vrot.lane.b32.xlu0 %v1840, 127
  %v1855 = vpop.permute.xlu0 %1854
  %1856 = vrot.lane.b32.xlu0 %v1841, 127
  %v1857 = vpop.permute.xlu0 %1856
  %1858 = vrot.lane.b32.xlu0 %v1842, 127
  %v1859 = vpop.permute.xlu0 %1858
  %1860 = vrot.lane.b32.xlu0 %v1843, 127
  %v1861 = vpop.permute.xlu0 %1860
  %v1862 = vsel %vm1341, %v1851, %v1853
  %v1863 = vsel %vm1341, %v1853, %v1855
  %v1864 = vsel %vm1341, %v1857, %v1859
  %v1865 = vsel %vm1341, %v1859, %v1861
  %1870 = vst [vmem:[#allocation7 + $0x20] sm:$0xff] %v1862
  %1871 = vst [vmem:[#allocation7 + $0x28] sm:$0xff] %v1863
  %1872 = vst [vmem:[#allocation7 + $0x30] sm:$0xff] %v1864
  %1873 = vst [vmem:[#allocation7 + $0x38] sm:$0xff] %v1865
  %v1874 = vld [vmem:[#allocation4] sm:$0xff]
  %v1875 = vld [vmem:[#allocation4 + $0x8] sm:$0xff]
  %v1876 = vld [vmem:[#allocation4 + $0x10] sm:$0xff]
  %v1877 = vld [vmem:[#allocation4 + $0x18] sm:$0xff]
  %v1878 = vld [vmem:[#allocation4 + $0x20] sm:$0xff]
  %v1879 = vld [vmem:[#allocation4 + $0x28] sm:$0xff]
  %v1880 = vmul.f32 %v1874, %v1363
  %v1881 = vmul.f32 %v1875, %v1367
  %v1882 = vmul.f32 %v1876, %v1365
  %v1883 = vmul.f32 %v1877, %v1363
  %v1884 = vmul.f32 %v1878, %v1367
  %v1885 = vmul.f32 %v1879, %v1365
  %1892 = vrot.lane.b32.xlu0 %v1880, 126
  %v1893 = vpop.permute.xlu0 %1892
  %1894 = vrot.lane.b32.xlu0 %v1881, 126
  %v1895 = vpop.permute.xlu0 %1894
  %1896 = vrot.lane.b32.xlu0 %v1882, 126
  %v1897 = vpop.permute.xlu0 %1896
  %1898 = vrot.lane.b32.xlu0 %v1883, 126
  %v1899 = vpop.permute.xlu0 %1898
  %1900 = vrot.lane.b32.xlu0 %v1884, 126
  %v1901 = vpop.permute.xlu0 %1900
  %1902 = vrot.lane.b32.xlu0 %v1885, 126
  %v1903 = vpop.permute.xlu0 %1902
  %v1904 = vsel %vm1395, %v1893, %v1895
  %v1905 = vsel %vm1395, %v1895, %v1897
  %v1906 = vsel %vm1395, %v1899, %v1901
  %v1907 = vsel %vm1395, %v1901, %v1903
  %1912 = vst [vmem:[#allocation7 + $0x40] sm:$0xff] %v1904
  %1913 = vst [vmem:[#allocation7 + $0x48] sm:$0xff] %v1905
  %1914 = vst [vmem:[#allocation7 + $0x50] sm:$0xff] %v1906
  %1915 = vst [vmem:[#allocation7 + $0x58] sm:$0xff] %v1907
  %v1916 = vld [vmem:[#allocation4] sm:$0xff]
  %v1917 = vld [vmem:[#allocation4 + $0x8] sm:$0xff]
  %v1918 = vld [vmem:[#allocation4 + $0x10] sm:$0xff]
  %v1919 = vld [vmem:[#allocation4 + $0x18] sm:$0xff]
  %v1920 = vld [vmem:[#allocation4 + $0x20] sm:$0xff]
  %v1921 = vld [vmem:[#allocation4 + $0x28] sm:$0xff]
  %v1922 = vmul.f32 %v1916, %v1417
  %v1923 = vmul.f32 %v1917, %v1420
  %v1924 = vmul.f32 %v1918, %v1419
  %v1925 = vmul.f32 %v1919, %v1417
  %v1926 = vmul.f32 %v1920, %v1420
  %v1927 = vmul.f32 %v1921, %v1419
  %1934 = vrot.lane.b32.xlu0 %v1922, 112
  %v1935 = vpop.permute.xlu0 %1934
  %1936 = vrot.lane.b32.xlu0 %v1923, 112
  %v1937 = vpop.permute.xlu0 %1936
  %1938 = vrot.lane.b32.xlu0 %v1924, 112
  %v1939 = vpop.permute.xlu0 %1938
  %1940 = vrot.lane.b32.xlu0 %v1925, 112
  %v1941 = vpop.permute.xlu0 %1940
  %1942 = vrot.lane.b32.xlu0 %v1926, 112
  %v1943 = vpop.permute.xlu0 %1942
  %1944 = vrot.lane.b32.xlu0 %v1927, 112
  %v1945 = vpop.permute.xlu0 %1944
  %v1946 = vsel %vm1448, %v1935, %v1937
  %v1947 = vsel %vm1448, %v1937, %v1939
  %v1948 = vsel %vm1448, %v1941, %v1943
  %v1949 = vsel %vm1448, %v1943, %v1945
  %1954 = vst [vmem:[#allocation7 + $0x60] sm:$0xff] %v1946
  %1955 = vst [vmem:[#allocation7 + $0x68] sm:$0xff] %v1947
  %1956 = vst [vmem:[#allocation7 + $0x70] sm:$0xff] %v1948
  %1957 = vst [vmem:[#allocation7 + $0x78] sm:$0xff] %v1949
  %v1958 = vld [vmem:[#allocation4] sm:$0xff]
  %v1959 = vld [vmem:[#allocation4 + $0x8] sm:$0xff]
  %v1960 = vld [vmem:[#allocation4 + $0x10] sm:$0xff]
  %v1961 = vld [vmem:[#allocation4 + $0x18] sm:$0xff]
  %v1962 = vld [vmem:[#allocation4 + $0x20] sm:$0xff]
  %v1963 = vld [vmem:[#allocation4 + $0x28] sm:$0xff]
  %1970 = vrot.lane.b32.xlu0 %v1958, 111
  %v1971 = vpop.permute.xlu0 %1970
  %1972 = vrot.lane.b32.xlu0 %v1959, 111
  %v1973 = vpop.permute.xlu0 %1972
  %1974 = vrot.lane.b32.xlu0 %v1960, 111
  %v1975 = vpop.permute.xlu0 %1974
  %1976 = vrot.lane.b32.xlu0 %v1961, 111
  %v1977 = vpop.permute.xlu0 %1976
  %1978 = vrot.lane.b32.xlu0 %v1962, 111
  %v1979 = vpop.permute.xlu0 %1978
  %1980 = vrot.lane.b32.xlu0 %v1963, 111
  %v1981 = vpop.permute.xlu0 %1980
  %v1982 = vsel %vm1485, %v1971, %v1973
  %v1983 = vsel %vm1485, %v1973, %v1975
  %v1984 = vsel %vm1485, %v1977, %v1979
  %v1985 = vsel %vm1485, %v1979, %v1981
  %1990 = vst [vmem:[#allocation7 + $0x80] sm:$0xff] %v1982
  %1991 = vst [vmem:[#allocation7 + $0x88] sm:$0xff] %v1983
  %1992 = vst [vmem:[#allocation7 + $0x90] sm:$0xff] %v1984
  %1993 = vst [vmem:[#allocation7 + $0x98] sm:$0xff] %v1985
  %v1994 = vld [vmem:[#allocation4] sm:$0xff]
  %v1995 = vld [vmem:[#allocation4 + $0x8] sm:$0xff]
  %v1996 = vld [vmem:[#allocation4 + $0x10] sm:$0xff]
  %v1997 = vld [vmem:[#allocation4 + $0x18] sm:$0xff]
  %v1998 = vld [vmem:[#allocation4 + $0x20] sm:$0xff]
  %v1999 = vld [vmem:[#allocation4 + $0x28] sm:$0xff]
  %v2000 = vmul.f32 %v1994, %v1505
  %v2001 = vmul.f32 %v1995, %v1509
  %v2002 = vmul.f32 %v1996, %v1507
  %v2003 = vmul.f32 %v1997, %v1505
  %v2004 = vmul.f32 %v1998, %v1509
  %v2005 = vmul.f32 %v1999, %v1507
  %2012 = vrot.lane.b32.xlu0 %v2000, 110
  %v2013 = vpop.permute.xlu0 %2012
  %2014 = vrot.lane.b32.xlu0 %v2001, 110
  %v2015 = vpop.permute.xlu0 %2014
  %2016 = vrot.lane.b32.xlu0 %v2002, 110
  %v2017 = vpop.permute.xlu0 %2016
  %2018 = vrot.lane.b32.xlu0 %v2003, 110
  %v2019 = vpop.permute.xlu0 %2018
  %2020 = vrot.lane.b32.xlu0 %v2004, 110
  %v2021 = vpop.permute.xlu0 %2020
  %2022 = vrot.lane.b32.xlu0 %v2005, 110
  %v2023 = vpop.permute.xlu0 %2022
  %v2024 = vsel %vm1537, %v2013, %v2015
  %v2025 = vsel %vm1537, %v2015, %v2017
  %v2026 = vsel %vm1537, %v2019, %v2021
  %v2027 = vsel %vm1537, %v2021, %v2023
  %2032 = vst [vmem:[#allocation7 + $0xa0] sm:$0xff] %v2024
  %2033 = vst [vmem:[#allocation7 + $0xa8] sm:$0xff] %v2025
  %2034 = vst [vmem:[#allocation7 + $0xb0] sm:$0xff] %v2026
  %2035 = vst [vmem:[#allocation7 + $0xb8] sm:$0xff] %v2027
  %v2036 = vld [vmem:[#allocation4] sm:$0xff]
  %v2037 = vld [vmem:[#allocation4 + $0x8] sm:$0xff]
  %v2038 = vld [vmem:[#allocation4 + $0x10] sm:$0xff]
  %v2039 = vld [vmem:[#allocation4 + $0x18] sm:$0xff]
  %v2040 = vld [vmem:[#allocation4 + $0x20] sm:$0xff]
  %v2041 = vld [vmem:[#allocation4 + $0x28] sm:$0xff]
  %v2042 = vmul.f32 %v2036, %v1557
  %v2043 = vmul.f32 %v2037, %v1561
  %v2044 = vmul.f32 %v2038, %v1559
  %v2045 = vmul.f32 %v2039, %v1557
  %v2046 = vmul.f32 %v2040, %v1561
  %v2047 = vmul.f32 %v2041, %v1559
  %2054 = vrot.lane.b32.xlu0 %v2042, 96
  %v2055 = vpop.permute.xlu0 %2054
  %2056 = vrot.lane.b32.xlu0 %v2043, 96
  %v2057 = vpop.permute.xlu0 %2056
  %2058 = vrot.lane.b32.xlu0 %v2044, 96
  %v2059 = vpop.permute.xlu0 %2058
  %2060 = vrot.lane.b32.xlu0 %v2045, 96
  %v2061 = vpop.permute.xlu0 %2060
  %2062 = vrot.lane.b32.xlu0 %v2046, 96
  %v2063 = vpop.permute.xlu0 %2062
  %2064 = vrot.lane.b32.xlu0 %v2047, 96
  %v2065 = vpop.permute.xlu0 %2064
  %v2066 = vsel %vm1589, %v2055, %v2057
  %v2067 = vsel %vm1589, %v2057, %v2059
  %v2068 = vsel %vm1589, %v2061, %v2063
  %v2069 = vsel %vm1589, %v2063, %v2065
  %2074 = vst [vmem:[#allocation7 + $0xc0] sm:$0xff] %v2066
  %2075 = vst [vmem:[#allocation7 + $0xc8] sm:$0xff] %v2067
  %2076 = vst [vmem:[#allocation7 + $0xd0] sm:$0xff] %v2068
  %2077 = vst [vmem:[#allocation7 + $0xd8] sm:$0xff] %v2069
  %v2078 = vld [vmem:[#allocation4] sm:$0xff]
  %v2079 = vld [vmem:[#allocation4 + $0x8] sm:$0xff]
  %v2080 = vld [vmem:[#allocation4 + $0x10] sm:$0xff]
  %v2081 = vld [vmem:[#allocation4 + $0x18] sm:$0xff]
  %v2082 = vld [vmem:[#allocation4 + $0x20] sm:$0xff]
  %v2083 = vld [vmem:[#allocation4 + $0x28] sm:$0xff]
  %2090 = vrot.lane.b32.xlu0 %v2078, 95
  %v2091 = vpop.permute.xlu0 %2090
  %2092 = vrot.lane.b32.xlu0 %v2079, 95
  %v2093 = vpop.permute.xlu0 %2092
  %2094 = vrot.lane.b32.xlu0 %v2080, 95
  %v2095 = vpop.permute.xlu0 %2094
  %2096 = vrot.lane.b32.xlu0 %v2081, 95
  %v2097 = vpop.permute.xlu0 %2096
  %2098 = vrot.lane.b32.xlu0 %v2082, 95
  %v2099 = vpop.permute.xlu0 %2098
  %2100 = vrot.lane.b32.xlu0 %v2083, 95
  %v2101 = vpop.permute.xlu0 %2100
  %v2102 = vsel %vm1626, %v2091, %v2093
  %v2103 = vsel %vm1626, %v2093, %v2095
  %v2104 = vsel %vm1626, %v2097, %v2099
  %v2105 = vsel %vm1626, %v2099, %v2101
  %2110 = vst [vmem:[#allocation7 + $0xe0] sm:$0xff] %v2102
  %2111 = vst [vmem:[#allocation7 + $0xe8] sm:$0xff] %v2103
  %2112 = vst [vmem:[#allocation7 + $0xf0] sm:$0xff] %v2104
  %2113 = vst [vmem:[#allocation7 + $0xf8] sm:$0xff] %v2105
  %v2114 = vld [vmem:[#allocation4] sm:$0xff]
  %v2115 = vld [vmem:[#allocation4 + $0x8] sm:$0xff]
  %v2116 = vld [vmem:[#allocation4 + $0x10] sm:$0xff]
  %v2117 = vld [vmem:[#allocation4 + $0x18] sm:$0xff]
  %v2118 = vld [vmem:[#allocation4 + $0x20] sm:$0xff]
  %v2119 = vld [vmem:[#allocation4 + $0x28] sm:$0xff]
  %v2120 = vmul.f32 %v2114, %v1646
  %v2121 = vmul.f32 %v2115, %v1649
  %v2122 = vmul.f32 %v2116, %v1648
  %v2123 = vmul.f32 %v2117, %v1646
  %v2124 = vmul.f32 %v2118, %v1649
  %v2125 = vmul.f32 %v2119, %v1648
  %2132 = vrot.lane.b32.xlu0 %v2120, 94
  %v2133 = vpop.permute.xlu0 %2132
  %2134 = vrot.lane.b32.xlu0 %v2121, 94
  %v2135 = vpop.permute.xlu0 %2134
  %2136 = vrot.lane.b32.xlu0 %v2122, 94
  %v2137 = vpop.permute.xlu0 %2136
  %2138 = vrot.lane.b32.xlu0 %v2123, 94
  %v2139 = vpop.permute.xlu0 %2138
  %2140 = vrot.lane.b32.xlu0 %v2124, 94
  %v2141 = vpop.permute.xlu0 %2140
  %2142 = vrot.lane.b32.xlu0 %v2125, 94
  %v2143 = vpop.permute.xlu0 %2142
  %v2144 = vsel %vm1677, %v2133, %v2135
  %v2145 = vsel %vm1677, %v2135, %v2137
  %v2146 = vsel %vm1677, %v2139, %v2141
  %v2147 = vsel %vm1677, %v2141, %v2143
  %2152 = vst [vmem:[#allocation7 + $0x100] sm:$0xff] %v2144
  %2153 = vst [vmem:[#allocation7 + $0x108] sm:$0xff] %v2145
  %2154 = vst [vmem:[#allocation7 + $0x110] sm:$0xff] %v2146
  %2155 = vst [vmem:[#allocation7 + $0x118] sm:$0xff] %v2147
  %v2156 = vld [vmem:[#allocation7] sm:$0xff]
  %v2157 = vld [vmem:[#allocation7 + $0x8] sm:$0xff]
  %v2158 = vld [vmem:[#allocation7 + $0x10] sm:$0xff]
  %v2159 = vld [vmem:[#allocation7 + $0x18] sm:$0xff]
  %v2160 = vld [vmem:[#allocation7 + $0x20] sm:$0xff]
  %v2161 = vld [vmem:[#allocation7 + $0x28] sm:$0xff]
  %v2162 = vld [vmem:[#allocation7 + $0x30] sm:$0xff]
  %v2163 = vld [vmem:[#allocation7 + $0x38] sm:$0xff]
  %v2164 = vld [vmem:[#allocation7 + $0x40] sm:$0xff]
  %v2165 = vld [vmem:[#allocation7 + $0x48] sm:$0xff]
  %v2166 = vld [vmem:[#allocation7 + $0x50] sm:$0xff]
  %v2167 = vld [vmem:[#allocation7 + $0x58] sm:$0xff]
  %v2168 = vld [vmem:[#allocation7 + $0x60] sm:$0xff]
  %v2169 = vld [vmem:[#allocation7 + $0x68] sm:$0xff]
  %v2170 = vld [vmem:[#allocation7 + $0x70] sm:$0xff]
  %v2171 = vld [vmem:[#allocation7 + $0x78] sm:$0xff]
  %v2172 = vld [vmem:[#allocation7 + $0x80] sm:$0xff]
  %v2173 = vld [vmem:[#allocation7 + $0x88] sm:$0xff]
  %v2174 = vld [vmem:[#allocation7 + $0x90] sm:$0xff]
  %v2175 = vld [vmem:[#allocation7 + $0x98] sm:$0xff]
  %v2176 = vld [vmem:[#allocation7 + $0xa0] sm:$0xff]
  %v2177 = vld [vmem:[#allocation7 + $0xa8] sm:$0xff]
  %v2178 = vld [vmem:[#allocation7 + $0xb0] sm:$0xff]
  %v2179 = vld [vmem:[#allocation7 + $0xb8] sm:$0xff]
  %v2180 = vld [vmem:[#allocation7 + $0xc0] sm:$0xff]
  %v2181 = vld [vmem:[#allocation7 + $0xc8] sm:$0xff]
  %v2182 = vld [vmem:[#allocation7 + $0xd0] sm:$0xff]
  %v2183 = vld [vmem:[#allocation7 + $0xd8] sm:$0xff]
  %v2184 = vld [vmem:[#allocation7 + $0xe0] sm:$0xff]
  %v2185 = vld [vmem:[#allocation7 + $0xe8] sm:$0xff]
  %v2186 = vld [vmem:[#allocation7 + $0xf0] sm:$0xff]
  %v2187 = vld [vmem:[#allocation7 + $0xf8] sm:$0xff]
  %v2188 = vld [vmem:[#allocation7 + $0x100] sm:$0xff]
  %v2189 = vld [vmem:[#allocation7 + $0x108] sm:$0xff]
  %v2190 = vld [vmem:[#allocation7 + $0x110] sm:$0xff]
  %v2191 = vld [vmem:[#allocation7 + $0x118] sm:$0xff]
  %2192 = vmatprep.subr.mxu0 %v2157
  %2193 = vmatpush1.msra.mxu0 %v2156
  %2194 = vmatprep.subr.mxu0 %v2159
  %2195 = vmatpush1.msra.mxu0 %v2158
  %2196 = vmatprep.subr.mxu0 %v2161
  %2197 = vmatpush1.msra.mxu0 %v2160
  %2198 = vmatprep.subr.mxu0 %v2163
  %2199 = vmatpush1.msra.mxu0 %v2162
  %2200 = vmatprep.subr.mxu0 %v2165
  %2201 = vmatpush1.msra.mxu0 %v2164
  %2202 = vmatprep.subr.mxu0 %v2167
  %2203 = vmatpush1.msra.mxu0 %v2166
  %2204 = vmatprep.subr.mxu0 %v2169
  %2205 = vmatpush1.msra.mxu0 %v2168
  %2206 = vmatprep.subr.mxu0 %v2171
  %2207 = vmatpush1.msra.mxu0 %v2170
  %2208 = vmatprep.subr.mxu0 %v2173
  %2209 = vmatpush1.msra.mxu0 %v2172
  %2210 = vmatprep.subr.mxu0 %v2175
  %2211 = vmatpush1.msra.mxu0 %v2174
  %2212 = vmatprep.subr.mxu0 %v2177
  %2213 = vmatpush1.msra.mxu0 %v2176
  %2214 = vmatprep.subr.mxu0 %v2179
  %2215 = vmatpush1.msra.mxu0 %v2178
  %2216 = vmatprep.subr.mxu0 %v2181
  %2217 = vmatpush1.msra.mxu0 %v2180
  %2218 = vmatprep.subr.mxu0 %v2183
  %2219 = vmatpush1.msra.mxu0 %v2182
  %2220 = vmatprep.subr.mxu0 %v2185
  %2221 = vmatpush1.msra.mxu0 %v2184
  %2222 = vmatprep.subr.mxu0 %v2187
  %2223 = vmatpush1.msra.mxu0 %v2186
  %2224 = vmatprep.subr.mxu0 %v2189
  %2225 = vmatpush1.msra.mxu0 %v2188
  %2226 = vmatprep.subr.mxu0 %v2191
  %2227 = vmatpush1.msra.mxu0 %v2190
  %2228 = vmatprep.subr.mxu0 0.0
  %2229 = vmatpush1.msra.mxu0 0.0
  %2230 = vmatprep.subr.mxu0 0.0
  %2231 = vmatpush1.msra.mxu0 0.0
  %2232 = vmatprep.subr.mxu0 0.0
  %2233 = vmatpush1.msra.mxu0 0.0
  %2234 = vmatprep.subr.mxu0 0.0
  %2235 = vmatpush1.msra.mxu0 0.0
  %2236 = vmatprep.subr.mxu0 0.0
  %2237 = vmatpush1.msra.mxu0 0.0
  %2238 = vmatprep.subr.mxu0 0.0
  %2239 = vmatpush1.msra.mxu0 0.0
  %2240 = vmatprep.subr.mxu0 0.0
  %2241 = vmatpush1.msra.mxu0 0.0
  %2242 = vmatprep.subr.mxu0 0.0
  %2243 = vmatpush1.msra.mxu0 0.0
  %2244 = vmatprep.subr.mxu0 0.0
  %2245 = vmatpush1.msra.mxu0 0.0
  %2246 = vmatprep.subr.mxu0 0.0
  %2247 = vmatpush1.msra.mxu0 0.0
  %2248 = vmatprep.subr.mxu0 0.0
  %2249 = vmatpush1.msra.mxu0 0.0
  %2250 = vmatprep.subr.mxu0 0.0
  %2251 = vmatpush1.msra.mxu0 0.0
  %2252 = vmatprep.subr.mxu0 0.0
  %2253 = vmatpush1.msra.mxu0 0.0
  %2254 = vmatprep.subr.mxu0 0.0
  %2255 = vmatpush1.msra.mxu0 0.0
  %2256 = vmatprep.mubr.f32.mxu0 %v1727
  %2257 = vmatmul.mubr.f32.gmra.mrb[0].mxu0 %v61
  %v2258 = vpop.f32.mrb[0].mxu0
  %v2259 = vadd.f32 0.0, %v2258
  %v2260 = vpop.f32.mrb[0].mxu0
  %v2261 = vadd.f32 0.0, %v2260
  %2262 = vdwg.mxu0
  %v2263 = vld [vmem:[%s11] sm:$0xff]
  %v2264 = vld [vmem:[%s12] sm:$0xff]
  %v2265 = vadd.f32 %v1796, %v1798
  %2266 = vadd.xlane.f32.xlu0 %v2265
  %v2267 = vpop.xlane.xlu0 %2266
  %v2268 = vadd.f32 %v2259, %v2261
  %2269 = vadd.xlane.f32.xlu0 %v2268
  %v2270 = vpop.xlane.xlu0 %2269
  %v2271 = vadd.f32 %v2267, %v2270
  %v2272 = vrcp.pop 512.0
  %v2273 = vmul.f32 %v2271, %v2272
  %v2274 = vsub.f32 %v1796, %v2273
  %v2275 = vsub.f32 %v1798, %v2273
  %v2276 = vmul.f32 %v2274, %v2274
  %v2277 = vmul.f32 %v2275, %v2275
  %v2278 = vadd.f32 %v2276, %v2277
  %2279 = vadd.xlane.f32.xlu0 %v2278
  %v2280 = vpop.xlane.xlu0 %2279
  %v2281 = vsub.f32 %v2259, %v2273
  %v2282 = vsub.f32 %v2261, %v2273
  %v2283 = vmul.f32 %v2281, %v2281
  %v2284 = vmul.f32 %v2282, %v2282
  %v2285 = vadd.f32 %v2283, %v2284
  %2286 = vadd.xlane.f32.xlu0 %v2285
  %v2287 = vpop.xlane.xlu0 %2286
  %v2288 = vadd.f32 %v2280, %v2287
  %v2289 = vmul.f32 %v2288, %v2272
  %v2290 = vadd.f32 %v2289, 1e-05
  %v2291 = vrsqrt.pop %v2290
  %v2292 = vmul.f32 %v2263, %v2291
  %v2293 = vmul.f32 %v2273, %v2292
  %v2294 = vsub.f32 %v2264, %v2293
  %2296 = vset.pattern.permute.xlu0 0
  %2297 = vperm.xlu0 %2296, %v2292
  %v2298 = vpop.permute.xlu0 %2297
  %v2300 = vmul.f32 %v1796, %v2298
  %v2301 = vmul.f32 %v1798, %v2298
  %2303 = vset.pattern.permute.xlu0 0
  %2304 = vperm.xlu0 %2303, %v2294
  %v2305 = vpop.permute.xlu0 %2304
  %v2307 = vadd.f32 %v2300, %v2305
  %v2308 = vadd.f32 %v2301, %v2305
  %vm2309 = vcmp.ge.f32.partialorder %v2307, 0.0
  %vm2310 = vcmp.ge.f32.partialorder %v2308, 0.0
  %v2311 = vmul.f32 %v2307, 0.2
  %v2312 = vmul.f32 %v2308, 0.2
  %v2313 = vsel %vm2309, %v2307, %v2311
  %v2314 = vsel %vm2310, %v2308, %v2312
  %v2315 = vmul.f32 %v2259, %v2298
  %v2316 = vmul.f32 %v2261, %v2298
  %v2317 = vadd.f32 %v2315, %v2305
  %v2318 = vadd.f32 %v2316, %v2305
  %vm2319 = vcmp.ge.f32.partialorder %v2317, 0.0
  %vm2320 = vcmp.ge.f32.partialorder %v2318, 0.0
  %v2321 = vmul.f32 %v2317, 0.2
  %v2322 = vmul.f32 %v2318, 0.2
  %v2323 = vsel %vm2319, %v2317, %v2321
  %v2324 = vsel %vm2320, %v2318, %v2322
  %2327 = vrot.lane.b32.xlu0 %v2313, 17
  %v2328 = vpop.permute.xlu0 %2327
  %2329 = vrot.lane.b32.xlu0 %v2314, 17
  %v2330 = vpop.permute.xlu0 %2329
  %v2331 = vsel %vm1281, %v2328, %v2330
  %2335 = vst.msk [vmem:[#allocation5] sm:$0xff] %vm1290, %v2328
  %2336 = vst [vmem:[#allocation5 + $0x8] sm:$0xff] %v2331
  %2337 = vst.msk [vmem:[#allocation5 + $0x10] sm:$0xff] %vm1281, %v2330
  %v2338 = vld [vmem:[#allocation5] sm:$0xff]
  %v2339 = vld [vmem:[#allocation5 + $0x8] sm:$0xff]
  %v2340 = vmul.f32 %v2338, %v1299
  %v2341 = vmul.f32 %v2339, %v1300
  %2342 = vst [vmem:[#allocation8] sm:$0xff] %v2340
  %2343 = vst [vmem:[#allocation8 + $0x8] sm:$0xff] %v2341
  %v2344 = vld [vmem:[#allocation5] sm:$0xff]
  %v2345 = vld [vmem:[#allocation5 + $0x8] sm:$0xff]
  %v2346 = vld [vmem:[#allocation5 + $0x10] sm:$0xff]
  %2350 = vrot.lane.b32.xlu0 %v2344, 127
  %v2351 = vpop.permute.xlu0 %2350
  %2352 = vrot.lane.b32.xlu0 %v2345, 127
  %v2353 = vpop.permute.xlu0 %2352
  %2354 = vrot.lane.b32.xlu0 %v2346, 127
  %v2355 = vpop.permute.xlu0 %2354
  %v2356 = vsel %vm1341, %v2351, %v2353
  %v2357 = vsel %vm1341, %v2353, %v2355
  %2360 = vst [vmem:[#allocation8 + $0x10] sm:$0xff] %v2356
  %2361 = vst [vmem:[#allocation8 + $0x18] sm:$0xff] %v2357
  %v2362 = vld [vmem:[#allocation5] sm:$0xff]
  %v2363 = vld [vmem:[#allocation5 + $0x8] sm:$0xff]
  %v2364 = vld [vmem:[#allocation5 + $0x10] sm:$0xff]
  %v2365 = vmul.f32 %v2362, %v1363
  %v2366 = vmul.f32 %v2363, %v1367
  %v2367 = vmul.f32 %v2364, %v1365
  %2371 = vrot.lane.b32.xlu0 %v2365, 126
  %v2372 = vpop.permute.xlu0 %2371
  %2373 = vrot.lane.b32.xlu0 %v2366, 126
  %v2374 = vpop.permute.xlu0 %2373
  %2375 = vrot.lane.b32.xlu0 %v2367, 126
  %v2376 = vpop.permute.xlu0 %2375
  %v2377 = vsel %vm1395, %v2372, %v2374
  %v2378 = vsel %vm1395, %v2374, %v2376
  %2381 = vst [vmem:[#allocation8 + $0x20] sm:$0xff] %v2377
  %2382 = vst [vmem:[#allocation8 + $0x28] sm:$0xff] %v2378
  %v2383 = vld [vmem:[#allocation5] sm:$0xff]
  %v2384 = vld [vmem:[#allocation5 + $0x8] sm:$0xff]
  %v2385 = vld [vmem:[#allocation5 + $0x10] sm:$0xff]
  %v2386 = vmul.f32 %v2383, %v1417
  %v2387 = vmul.f32 %v2384, %v1420
  %v2388 = vmul.f32 %v2385, %v1419
  %2392 = vrot.lane.b32.xlu0 %v2386, 112
  %v2393 = vpop.permute.xlu0 %2392
  %2394 = vrot.lane.b32.xlu0 %v2387, 112
  %v2395 = vpop.permute.xlu0 %2394
  %2396 = vrot.lane.b32.xlu0 %v2388, 112
  %v2397 = vpop.permute.xlu0 %2396
  %v2398 = vsel %vm1448, %v2393, %v2395
  %v2399 = vsel %vm1448, %v2395, %v2397
  %2402 = vst [vmem:[#allocation8 + $0x30] sm:$0xff] %v2398
  %2403 = vst [vmem:[#allocation8 + $0x38] sm:$0xff] %v2399
  %v2404 = vld [vmem:[#allocation5] sm:$0xff]
  %v2405 = vld [vmem:[#allocation5 + $0x8] sm:$0xff]
  %v2406 = vld [vmem:[#allocation5 + $0x10] sm:$0xff]
  %2410 = vrot.lane.b32.xlu0 %v2404, 111
  %v2411 = vpop.permute.xlu0 %2410
  %2412 = vrot.lane.b32.xlu0 %v2405, 111
  %v2413 = vpop.permute.xlu0 %2412
  %2414 = vrot.lane.b32.xlu0 %v2406, 111
  %v2415 = vpop.permute.xlu0 %2414
  %v2416 = vsel %vm1485, %v2411, %v2413
  %v2417 = vsel %vm1485, %v2413, %v2415
  %2420 = vst [vmem:[#allocation8 + $0x40] sm:$0xff] %v2416
  %2421 = vst [vmem:[#allocation8 + $0x48] sm:$0xff] %v2417
  %v2422 = vld [vmem:[#allocation5] sm:$0xff]
  %v2423 = vld [vmem:[#allocation5 + $0x8] sm:$0xff]
  %v2424 = vld [vmem:[#allocation5 + $0x10] sm:$0xff]
  %v2425 = vmul.f32 %v2422, %v1505
  %v2426 = vmul.f32 %v2423, %v1509
  %v2427 = vmul.f32 %v2424, %v1507
  %2431 = vrot.lane.b32.xlu0 %v2425, 110
  %v2432 = vpop.permute.xlu0 %2431
  %2433 = vrot.lane.b32.xlu0 %v2426, 110
  %v2434 = vpop.permute.xlu0 %2433
  %2435 = vrot.lane.b32.xlu0 %v2427, 110
  %v2436 = vpop.permute.xlu0 %2435
  %v2437 = vsel %vm1537, %v2432, %v2434
  %v2438 = vsel %vm1537, %v2434, %v2436
  %2441 = vst [vmem:[#allocation8 + $0x50] sm:$0xff] %v2437
  %2442 = vst [vmem:[#allocation8 + $0x58] sm:$0xff] %v2438
  %v2443 = vld [vmem:[#allocation5] sm:$0xff]
  %v2444 = vld [vmem:[#allocation5 + $0x8] sm:$0xff]
  %v2445 = vld [vmem:[#allocation5 + $0x10] sm:$0xff]
  %v2446 = vmul.f32 %v2443, %v1557
  %v2447 = vmul.f32 %v2444, %v1561
  %v2448 = vmul.f32 %v2445, %v1559
  %2452 = vrot.lane.b32.xlu0 %v2446, 96
  %v2453 = vpop.permute.xlu0 %2452
  %2454 = vrot.lane.b32.xlu0 %v2447, 96
  %v2455 = vpop.permute.xlu0 %2454
  %2456 = vrot.lane.b32.xlu0 %v2448, 96
  %v2457 = vpop.permute.xlu0 %2456
  %v2458 = vsel %vm1589, %v2453, %v2455
  %v2459 = vsel %vm1589, %v2455, %v2457
  %2462 = vst [vmem:[#allocation8 + $0x60] sm:$0xff] %v2458
  %2463 = vst [vmem:[#allocation8 + $0x68] sm:$0xff] %v2459
  %v2464 = vld [vmem:[#allocation5] sm:$0xff]
  %v2465 = vld [vmem:[#allocation5 + $0x8] sm:$0xff]
  %v2466 = vld [vmem:[#allocation5 + $0x10] sm:$0xff]
  %2470 = vrot.lane.b32.xlu0 %v2464, 95
  %v2471 = vpop.permute.xlu0 %2470
  %2472 = vrot.lane.b32.xlu0 %v2465, 95
  %v2473 = vpop.permute.xlu0 %2472
  %2474 = vrot.lane.b32.xlu0 %v2466, 95
  %v2475 = vpop.permute.xlu0 %2474
  %v2476 = vsel %vm1626, %v2471, %v2473
  %v2477 = vsel %vm1626, %v2473, %v2475
  %2480 = vst [vmem:[#allocation8 + $0x70] sm:$0xff] %v2476
  %2481 = vst [vmem:[#allocation8 + $0x78] sm:$0xff] %v2477
  %v2482 = vld [vmem:[#allocation5] sm:$0xff]
  %v2483 = vld [vmem:[#allocation5 + $0x8] sm:$0xff]
  %v2484 = vld [vmem:[#allocation5 + $0x10] sm:$0xff]
  %v2485 = vmul.f32 %v2482, %v1646
  %v2486 = vmul.f32 %v2483, %v1649
  %v2487 = vmul.f32 %v2484, %v1648
  %2491 = vrot.lane.b32.xlu0 %v2485, 94
  %v2492 = vpop.permute.xlu0 %2491
  %2493 = vrot.lane.b32.xlu0 %v2486, 94
  %v2494 = vpop.permute.xlu0 %2493
  %2495 = vrot.lane.b32.xlu0 %v2487, 94
  %v2496 = vpop.permute.xlu0 %2495
  %v2497 = vsel %vm1677, %v2492, %v2494
  %v2498 = vsel %vm1677, %v2494, %v2496
  %2501 = vst [vmem:[#allocation8 + $0x80] sm:$0xff] %v2497
  %2502 = vst [vmem:[#allocation8 + $0x88] sm:$0xff] %v2498
  %v2503 = vld [vmem:[#allocation8] sm:$0xff]
  %v2504 = vld [vmem:[#allocation8 + $0x8] sm:$0xff]
  %v2505 = vld [vmem:[#allocation8 + $0x10] sm:$0xff]
  %v2506 = vld [vmem:[#allocation8 + $0x18] sm:$0xff]
  %v2507 = vld [vmem:[#allocation8 + $0x20] sm:$0xff]
  %v2508 = vld [vmem:[#allocation8 + $0x28] sm:$0xff]
  %v2509 = vld [vmem:[#allocation8 + $0x30] sm:$0xff]
  %v2510 = vld [vmem:[#allocation8 + $0x38] sm:$0xff]
  %v2511 = vld [vmem:[#allocation8 + $0x40] sm:$0xff]
  %v2512 = vld [vmem:[#allocation8 + $0x48] sm:$0xff]
  %v2513 = vld [vmem:[#allocation8 + $0x50] sm:$0xff]
  %v2514 = vld [vmem:[#allocation8 + $0x58] sm:$0xff]
  %v2515 = vld [vmem:[#allocation8 + $0x60] sm:$0xff]
  %v2516 = vld [vmem:[#allocation8 + $0x68] sm:$0xff]
  %v2517 = vld [vmem:[#allocation8 + $0x70] sm:$0xff]
  %v2518 = vld [vmem:[#allocation8 + $0x78] sm:$0xff]
  %v2519 = vld [vmem:[#allocation8 + $0x80] sm:$0xff]
  %v2520 = vld [vmem:[#allocation8 + $0x88] sm:$0xff]
  %v2521 = vld [vmem:[%s6] sm:$0x7]
  %2523 = vset.pattern.permute.xlu0 0
  %2524 = vperm.xlu0 %2523, %v2521
  %v2525 = vpop.permute.xlu0 %2524
  %vm2527 = vcmask 588800
  %v2529 = vsel %vm2527, %v63, 0
  %2531 = vmatprep.subr.mxu0 %v2504
  %2532 = vmatpush1.msra.mxu0 %v2503
  %2533 = vmatprep.subr.mxu0 %v2506
  %2534 = vmatpush1.msra.mxu0 %v2505
  %2535 = vmatprep.subr.mxu0 %v2508
  %2536 = vmatpush1.msra.mxu0 %v2507
  %2537 = vmatprep.subr.mxu0 %v2510
  %2538 = vmatpush1.msra.mxu0 %v2509
  %2539 = vmatprep.subr.mxu0 %v2512
  %2540 = vmatpush1.msra.mxu0 %v2511
  %2541 = vmatprep.subr.mxu0 %v2514
  %2542 = vmatpush1.msra.mxu0 %v2513
  %2543 = vmatprep.subr.mxu0 %v2516
  %2544 = vmatpush1.msra.mxu0 %v2515
  %2545 = vmatprep.subr.mxu0 %v2518
  %2546 = vmatpush1.msra.mxu0 %v2517
  %2547 = vmatprep.subr.mxu0 %v2520
  %2548 = vmatpush1.msra.mxu0 %v2519
  %2549 = vmatprep.subr.mxu0 0.0
  %2550 = vmatpush1.msra.mxu0 0.0
  %2551 = vmatprep.subr.mxu0 0.0
  %2552 = vmatpush1.msra.mxu0 0.0
  %2553 = vmatprep.subr.mxu0 0.0
  %2554 = vmatpush1.msra.mxu0 0.0
  %2555 = vmatprep.subr.mxu0 0.0
  %2556 = vmatpush1.msra.mxu0 0.0
  %2557 = vmatprep.subr.mxu0 0.0
  %2558 = vmatpush1.msra.mxu0 0.0
  %2559 = vmatprep.subr.mxu0 0.0
  %2560 = vmatpush1.msra.mxu0 0.0
  %2561 = vmatprep.subr.mxu0 0.0
  %2562 = vmatpush1.msra.mxu0 0.0
  %2563 = vmatprep.subr.mxu0 0.0
  %2564 = vmatpush1.msra.mxu0 0.0
  %2565 = vmatprep.subr.mxu0 0.0
  %2566 = vmatpush1.msra.mxu0 0.0
  %2567 = vmatprep.subr.mxu0 0.0
  %2568 = vmatpush1.msra.mxu0 0.0
  %2569 = vmatprep.subr.mxu0 0.0
  %2570 = vmatpush1.msra.mxu0 0.0
  %2571 = vmatprep.subr.mxu0 0.0
  %2572 = vmatpush1.msra.mxu0 0.0
  %2573 = vmatprep.subr.mxu0 0.0
  %2574 = vmatpush1.msra.mxu0 0.0
  %2575 = vmatprep.subr.mxu0 0.0
  %2576 = vmatpush1.msra.mxu0 0.0
  %2577 = vmatprep.subr.mxu0 0.0
  %2578 = vmatpush1.msra.mxu0 0.0
  %2579 = vmatprep.subr.mxu0 0.0
  %2580 = vmatpush1.msra.mxu0 0.0
  %2581 = vmatprep.subr.mxu0 0.0
  %2582 = vmatpush1.msra.mxu0 0.0
  %2583 = vmatprep.subr.mxu0 0.0
  %2584 = vmatpush1.msra.mxu0 0.0
  %2585 = vmatprep.subr.mxu0 0.0
  %2586 = vmatpush1.msra.mxu0 0.0
  %2587 = vmatprep.subr.mxu0 0.0
  %2588 = vmatpush1.msra.mxu0 0.0
  %2589 = vmatprep.subr.mxu0 0.0
  %2590 = vmatpush1.msra.mxu0 0.0
  %2591 = vmatprep.subr.mxu0 0.0
  %2592 = vmatpush1.msra.mxu0 0.0
  %2593 = vmatprep.subr.mxu0 0.0
  %2594 = vmatpush1.msra.mxu0 0.0
  %2595 = vmatprep.mubr.f32.mxu0 0.0
  %2596 = vmatmul.mubr.f32.gmra.mrb[0].mxu0 %v2529
  %v2597 = vpop.f32.mrb[0].mxu0
  %v2598 = vadd.f32 %v2525, %v2597
  %v2599 = vpop.f32.mrb[0].mxu0
  %v2600 = vadd.f32 %v2525, %v2599
  %2601 = vdwg.mxu0
  %v2602 = vxor.u32 %v2598, 2147483648
  %v2603 = vxor.u32 %v2600, 2147483648
  %v2604 = vmul.f32 %v2602, 1.442695
  %v2605 = vpow.pop %v2604
  %v2606 = vmul.f32 %v2603, 1.442695
  %v2607 = vpow.pop %v2606
  %v2608 = vadd.f32 %v2605, 1.0
  %v2609 = vadd.f32 %v2607, 1.0
  %v2610 = vrcp.pop %v2608
  %v2611 = vmul.f32 1.0, %v2610
  %v2612 = vrcp.pop %v2609
  %v2613 = vmul.f32 1.0, %v2612
  %v2616 = vcombine.low %v2611, %v2613
  %2618 = vst [vmem:[%s13] sm:$0x77] %v2616
  %2621 = vrot.lane.b32.xlu0 %v2323, 17
  %v2622 = vpop.permute.xlu0 %2621
  %2623 = vrot.lane.b32.xlu0 %v2324, 17
  %v2624 = vpop.permute.xlu0 %2623
  %v2625 = vsel %vm1281, %v2622, %v2624
  %2629 = vst.msk [vmem:[#allocation5] sm:$0xff] %vm1290, %v2622
  %2630 = vst [vmem:[#allocation5 + $0x8] sm:$0xff] %v2625
  %2631 = vst.msk [vmem:[#allocation5 + $0x10] sm:$0xff] %vm1281, %v2624
  %v2632 = vld [vmem:[#allocation5] sm:$0xff]
  %v2633 = vld [vmem:[#allocation5 + $0x8] sm:$0xff]
  %v2634 = vmul.f32 %v2632, %v1299
  %v2635 = vmul.f32 %v2633, %v1300
  %2636 = vst [vmem:[#allocation8] sm:$0xff] %v2634
  %2637 = vst [vmem:[#allocation8 + $0x8] sm:$0xff] %v2635
  %v2638 = vld [vmem:[#allocation5] sm:$0xff]
  %v2639 = vld [vmem:[#allocation5 + $0x8] sm:$0xff]
  %v2640 = vld [vmem:[#allocation5 + $0x10] sm:$0xff]
  %2644 = vrot.lane.b32.xlu0 %v2638, 127
  %v2645 = vpop.permute.xlu0 %2644
  %2646 = vrot.lane.b32.xlu0 %v2639, 127
  %v2647 = vpop.permute.xlu0 %2646
  %2648 = vrot.lane.b32.xlu0 %v2640, 127
  %v2649 = vpop.permute.xlu0 %2648
  %v2650 = vsel %vm1341, %v2645, %v2647
  %v2651 = vsel %vm1341, %v2647, %v2649
  %2654 = vst [vmem:[#allocation8 + $0x10] sm:$0xff] %v2650
  %2655 = vst [vmem:[#allocation8 + $0x18] sm:$0xff] %v2651
  %v2656 = vld [vmem:[#allocation5] sm:$0xff]
  %v2657 = vld [vmem:[#allocation5 + $0x8] sm:$0xff]
  %v2658 = vld [vmem:[#allocation5 + $0x10] sm:$0xff]
  %v2659 = vmul.f32 %v2656, %v1363
  %v2660 = vmul.f32 %v2657, %v1367
  %v2661 = vmul.f32 %v2658, %v1365
  %2665 = vrot.lane.b32.xlu0 %v2659, 126
  %v2666 = vpop.permute.xlu0 %2665
  %2667 = vrot.lane.b32.xlu0 %v2660, 126
  %v2668 = vpop.permute.xlu0 %2667
  %2669 = vrot.lane.b32.xlu0 %v2661, 126
  %v2670 = vpop.permute.xlu0 %2669
  %v2671 = vsel %vm1395, %v2666, %v2668
  %v2672 = vsel %vm1395, %v2668, %v2670
  %2675 = vst [vmem:[#allocation8 + $0x20] sm:$0xff] %v2671
  %2676 = vst [vmem:[#allocation8 + $0x28] sm:$0xff] %v2672
  %v2677 = vld [vmem:[#allocation5] sm:$0xff]
  %v2678 = vld [vmem:[#allocation5 + $0x8] sm:$0xff]
  %v2679 = vld [vmem:[#allocation5 + $0x10] sm:$0xff]
  %v2680 = vmul.f32 %v2677, %v1417
  %v2681 = vmul.f32 %v2678, %v1420
  %v2682 = vmul.f32 %v2679, %v1419
  %2686 = vrot.lane.b32.xlu0 %v2680, 112
  %v2687 = vpop.permute.xlu0 %2686
  %2688 = vrot.lane.b32.xlu0 %v2681, 112
  %v2689 = vpop.permute.xlu0 %2688
  %2690 = vrot.lane.b32.xlu0 %v2682, 112
  %v2691 = vpop.permute.xlu0 %2690
  %v2692 = vsel %vm1448, %v2687, %v2689
  %v2693 = vsel %vm1448, %v2689, %v2691
  %2696 = vst [vmem:[#allocation8 + $0x30] sm:$0xff] %v2692
  %2697 = vst [vmem:[#allocation8 + $0x38] sm:$0xff] %v2693
  %v2698 = vld [vmem:[#allocation5] sm:$0xff]
  %v2699 = vld [vmem:[#allocation5 + $0x8] sm:$0xff]
  %v2700 = vld [vmem:[#allocation5 + $0x10] sm:$0xff]
  %2704 = vrot.lane.b32.xlu0 %v2698, 111
  %v2705 = vpop.permute.xlu0 %2704
  %2706 = vrot.lane.b32.xlu0 %v2699, 111
  %v2707 = vpop.permute.xlu0 %2706
  %2708 = vrot.lane.b32.xlu0 %v2700, 111
  %v2709 = vpop.permute.xlu0 %2708
  %v2710 = vsel %vm1485, %v2705, %v2707
  %v2711 = vsel %vm1485, %v2707, %v2709
  %2714 = vst [vmem:[#allocation8 + $0x40] sm:$0xff] %v2710
  %2715 = vst [vmem:[#allocation8 + $0x48] sm:$0xff] %v2711
  %v2716 = vld [vmem:[#allocation5] sm:$0xff]
  %v2717 = vld [vmem:[#allocation5 + $0x8] sm:$0xff]
  %v2718 = vld [vmem:[#allocation5 + $0x10] sm:$0xff]
  %v2719 = vmul.f32 %v2716, %v1505
  %v2720 = vmul.f32 %v2717, %v1509
  %v2721 = vmul.f32 %v2718, %v1507
  %2725 = vrot.lane.b32.xlu0 %v2719, 110
  %v2726 = vpop.permute.xlu0 %2725
  %2727 = vrot.lane.b32.xlu0 %v2720, 110
  %v2728 = vpop.permute.xlu0 %2727
  %2729 = vrot.lane.b32.xlu0 %v2721, 110
  %v2730 = vpop.permute.xlu0 %2729
  %v2731 = vsel %vm1537, %v2726, %v2728
  %v2732 = vsel %vm1537, %v2728, %v2730
  %2735 = vst [vmem:[#allocation8 + $0x50] sm:$0xff] %v2731
  %2736 = vst [vmem:[#allocation8 + $0x58] sm:$0xff] %v2732
  %v2737 = vld [vmem:[#allocation5] sm:$0xff]
  %v2738 = vld [vmem:[#allocation5 + $0x8] sm:$0xff]
  %v2739 = vld [vmem:[#allocation5 + $0x10] sm:$0xff]
  %v2740 = vmul.f32 %v2737, %v1557
  %v2741 = vmul.f32 %v2738, %v1561
  %v2742 = vmul.f32 %v2739, %v1559
  %2746 = vrot.lane.b32.xlu0 %v2740, 96
  %v2747 = vpop.permute.xlu0 %2746
  %2748 = vrot.lane.b32.xlu0 %v2741, 96
  %v2749 = vpop.permute.xlu0 %2748
  %2750 = vrot.lane.b32.xlu0 %v2742, 96
  %v2751 = vpop.permute.xlu0 %2750
  %v2752 = vsel %vm1589, %v2747, %v2749
  %v2753 = vsel %vm1589, %v2749, %v2751
  %2756 = vst [vmem:[#allocation8 + $0x60] sm:$0xff] %v2752
  %2757 = vst [vmem:[#allocation8 + $0x68] sm:$0xff] %v2753
  %v2758 = vld [vmem:[#allocation5] sm:$0xff]
  %v2759 = vld [vmem:[#allocation5 + $0x8] sm:$0xff]
  %v2760 = vld [vmem:[#allocation5 + $0x10] sm:$0xff]
  %2764 = vrot.lane.b32.xlu0 %v2758, 95
  %v2765 = vpop.permute.xlu0 %2764
  %2766 = vrot.lane.b32.xlu0 %v2759, 95
  %v2767 = vpop.permute.xlu0 %2766
  %2768 = vrot.lane.b32.xlu0 %v2760, 95
  %v2769 = vpop.permute.xlu0 %2768
  %v2770 = vsel %vm1626, %v2765, %v2767
  %v2771 = vsel %vm1626, %v2767, %v2769
  %2774 = vst [vmem:[#allocation8 + $0x70] sm:$0xff] %v2770
  %2775 = vst [vmem:[#allocation8 + $0x78] sm:$0xff] %v2771
  %v2776 = vld [vmem:[#allocation5] sm:$0xff]
  %v2777 = vld [vmem:[#allocation5 + $0x8] sm:$0xff]
  %v2778 = vld [vmem:[#allocation5 + $0x10] sm:$0xff]
  %v2779 = vmul.f32 %v2776, %v1646
  %v2780 = vmul.f32 %v2777, %v1649
  %v2781 = vmul.f32 %v2778, %v1648
  %2785 = vrot.lane.b32.xlu0 %v2779, 94
  %v2786 = vpop.permute.xlu0 %2785
  %2787 = vrot.lane.b32.xlu0 %v2780, 94
  %v2788 = vpop.permute.xlu0 %2787
  %2789 = vrot.lane.b32.xlu0 %v2781, 94
  %v2790 = vpop.permute.xlu0 %2789
  %v2791 = vsel %vm1677, %v2786, %v2788
  %v2792 = vsel %vm1677, %v2788, %v2790
  %2795 = vst [vmem:[#allocation8 + $0x80] sm:$0xff] %v2791
  %2796 = vst [vmem:[#allocation8 + $0x88] sm:$0xff] %v2792
  %v2797 = vld [vmem:[#allocation8] sm:$0xff]
  %v2798 = vld [vmem:[#allocation8 + $0x8] sm:$0xff]
  %v2799 = vld [vmem:[#allocation8 + $0x10] sm:$0xff]
  %v2800 = vld [vmem:[#allocation8 + $0x18] sm:$0xff]
  %v2801 = vld [vmem:[#allocation8 + $0x20] sm:$0xff]
  %v2802 = vld [vmem:[#allocation8 + $0x28] sm:$0xff]
  %v2803 = vld [vmem:[#allocation8 + $0x30] sm:$0xff]
  %v2804 = vld [vmem:[#allocation8 + $0x38] sm:$0xff]
  %v2805 = vld [vmem:[#allocation8 + $0x40] sm:$0xff]
  %v2806 = vld [vmem:[#allocation8 + $0x48] sm:$0xff]
  %v2807 = vld [vmem:[#allocation8 + $0x50] sm:$0xff]
  %v2808 = vld [vmem:[#allocation8 + $0x58] sm:$0xff]
  %v2809 = vld [vmem:[#allocation8 + $0x60] sm:$0xff]
  %v2810 = vld [vmem:[#allocation8 + $0x68] sm:$0xff]
  %v2811 = vld [vmem:[#allocation8 + $0x70] sm:$0xff]
  %v2812 = vld [vmem:[#allocation8 + $0x78] sm:$0xff]
  %v2813 = vld [vmem:[#allocation8 + $0x80] sm:$0xff]
  %v2814 = vld [vmem:[#allocation8 + $0x88] sm:$0xff]
  %v2815 = vld [vmem:[%s6] sm:$0x7]
  %2817 = vset.pattern.permute.xlu0 0
  %2818 = vperm.xlu0 %2817, %v2815
  %v2819 = vpop.permute.xlu0 %2818
  %2821 = vmatprep.subr.mxu0 %v2798
  %2822 = vmatpush1.msra.mxu0 %v2797
  %2823 = vmatprep.subr.mxu0 %v2800
  %2824 = vmatpush1.msra.mxu0 %v2799
  %2825 = vmatprep.subr.mxu0 %v2802
  %2826 = vmatpush1.msra.mxu0 %v2801
  %2827 = vmatprep.subr.mxu0 %v2804
  %2828 = vmatpush1.msra.mxu0 %v2803
  %2829 = vmatprep.subr.mxu0 %v2806
  %2830 = vmatpush1.msra.mxu0 %v2805
  %2831 = vmatprep.subr.mxu0 %v2808
  %2832 = vmatpush1.msra.mxu0 %v2807
  %2833 = vmatprep.subr.mxu0 %v2810
  %2834 = vmatpush1.msra.mxu0 %v2809
  %2835 = vmatprep.subr.mxu0 %v2812
  %2836 = vmatpush1.msra.mxu0 %v2811
  %2837 = vmatprep.subr.mxu0 %v2814
  %2838 = vmatpush1.msra.mxu0 %v2813
  %2839 = vmatprep.subr.mxu0 0.0
  %2840 = vmatpush1.msra.mxu0 0.0
  %2841 = vmatprep.subr.mxu0 0.0
  %2842 = vmatpush1.msra.mxu0 0.0
  %2843 = vmatprep.subr.mxu0 0.0
  %2844 = vmatpush1.msra.mxu0 0.0
  %2845 = vmatprep.subr.mxu0 0.0
  %2846 = vmatpush1.msra.mxu0 0.0
  %2847 = vmatprep.subr.mxu0 0.0
  %2848 = vmatpush1.msra.mxu0 0.0
  %2849 = vmatprep.subr.mxu0 0.0
  %2850 = vmatpush1.msra.mxu0 0.0
  %2851 = vmatprep.subr.mxu0 0.0
  %2852 = vmatpush1.msra.mxu0 0.0
  %2853 = vmatprep.subr.mxu0 0.0
  %2854 = vmatpush1.msra.mxu0 0.0
  %2855 = vmatprep.subr.mxu0 0.0
  %2856 = vmatpush1.msra.mxu0 0.0
  %2857 = vmatprep.subr.mxu0 0.0
  %2858 = vmatpush1.msra.mxu0 0.0
  %2859 = vmatprep.subr.mxu0 0.0
  %2860 = vmatpush1.msra.mxu0 0.0
  %2861 = vmatprep.subr.mxu0 0.0
  %2862 = vmatpush1.msra.mxu0 0.0
  %2863 = vmatprep.subr.mxu0 0.0
  %2864 = vmatpush1.msra.mxu0 0.0
  %2865 = vmatprep.subr.mxu0 0.0
  %2866 = vmatpush1.msra.mxu0 0.0
  %2867 = vmatprep.subr.mxu0 0.0
  %2868 = vmatpush1.msra.mxu0 0.0
  %2869 = vmatprep.subr.mxu0 0.0
  %2870 = vmatpush1.msra.mxu0 0.0
  %2871 = vmatprep.subr.mxu0 0.0
  %2872 = vmatpush1.msra.mxu0 0.0
  %2873 = vmatprep.subr.mxu0 0.0
  %2874 = vmatpush1.msra.mxu0 0.0
  %2875 = vmatprep.subr.mxu0 0.0
  %2876 = vmatpush1.msra.mxu0 0.0
  %2877 = vmatprep.subr.mxu0 0.0
  %2878 = vmatpush1.msra.mxu0 0.0
  %2879 = vmatprep.subr.mxu0 0.0
  %2880 = vmatpush1.msra.mxu0 0.0
  %2881 = vmatprep.subr.mxu0 0.0
  %2882 = vmatpush1.msra.mxu0 0.0
  %2883 = vmatprep.subr.mxu0 0.0
  %2884 = vmatpush1.msra.mxu0 0.0
  %2885 = vmatprep.mubr.f32.mxu0 0.0
  %2886 = vmatmul.mubr.f32.gmra.mrb[0].mxu0 %v2529
  %v2887 = vpop.f32.mrb[0].mxu0
  %v2888 = vadd.f32 %v2819, %v2887
  %v2889 = vpop.f32.mrb[0].mxu0
  %v2890 = vadd.f32 %v2819, %v2889
  %2891 = vdwg.mxu0
  %v2892 = vxor.u32 %v2888, 2147483648
  %v2893 = vxor.u32 %v2890, 2147483648
  %v2894 = vmul.f32 %v2892, 1.442695
  %v2895 = vpow.pop %v2894
  %v2896 = vmul.f32 %v2893, 1.442695
  %v2897 = vpow.pop %v2896
  %v2898 = vadd.f32 %v2895, 1.0
  %v2899 = vadd.f32 %v2897, 1.0
  %v2900 = vrcp.pop %v2898
  %v2901 = vmul.f32 1.0, %v2900
  %v2902 = vrcp.pop %v2899
  %v2903 = vmul.f32 1.0, %v2902
  %v2906 = vcombine.low %v2901, %v2903
  %s2908 = scalar_lea.vmem %s13, 8
  %2909 = vst [vmem:[%s2908] sm:$0x77] %v2906
  // Predicated region
  $region54: #{tpu_custom_call.1} parent=0 // pred_check
    _
  $region55: #{tpu_custom_call.1} parent=0 // pred_check_branch
    %2911 = sbr.rel (0) target = $region57
  $region56: #{tpu_custom_call.1} parent=0 // pred_region
    _
  $region57: #{tpu_custom_call.1} parent=0 // pred_fallthru
    _
  // Predicated region
  $region58: #{tpu_custom_call.1} parent=0 // pred_check
    _
  $region59: #{tpu_custom_call.1} parent=0 // pred_check_branch
    %2913 = sbr.rel (0) target = $region61
  $region60: #{tpu_custom_call.1} parent=0 // pred_region
    _
  $region61: #{tpu_custom_call.1} parent=0 // pred_fallthru
    _

</llo_original>
